<compile_context>
chip_gen: v6e
topology: v6e:2x2x1
jax: 0.10.0
libtpu: 0.0.40
codegen_flags: <defaults>
</compile_context>

<pallas_src>
import functools

import numpy as np

import jax
import jax.numpy as jnp
from jax.experimental import pallas as pl
from jax.experimental.pallas import tpu as pltpu


# ----------------------------------------------------------------------------
# Hanabi move-count helper (same arithmetic the reference module relies on).
# ----------------------------------------------------------------------------
def count_total_moves(num_players: int, num_colors: int, num_ranks: int, hand_size: int) -> int:
    return (
        hand_size                          # discard
        + hand_size                        # play
        + (num_players - 1) * num_colors   # reveal color
        + (num_players - 1) * num_ranks    # reveal rank
    )


# ----------------------------------------------------------------------------
# Pallas kernel: in-kernel remap + single one-hot MXU input projection,
# then an unrolled LSTM recurrence that skips padded steps with pl.when.
# ----------------------------------------------------------------------------
def _lstm_kernel(num_players, count_moves,
                 meta_ref, players_ref, moves_ref, wih_t_ref, whh_t_ref, b_ref,
                 h0_ref, c0_ref, out_ref, xproj_ref, h_sc, c_sc):
    H = h0_ref.shape[1]
    T_MAX = players_ref.shape[0]
    D_in = wih_t_ref.shape[0]
    seq_len = meta_ref[0]
    offset = meta_ref[1]

    # --- Vectorized relative-player remap + flat move id (no host Python loop).
    p = players_ref[...]                                         # (T_MAX, 1) int32
    m = moves_ref[...]                                           # (T_MAX, 1) int32
    p_rel = jnp.where(p >= offset, p - offset, p + (num_players - offset))
    ids = p_rel * count_moves + m                                # (T_MAX, 1) int32

    # --- One-hot via iota-compare; ONE MXU push for the whole input projection.
    col = jax.lax.broadcasted_iota(jnp.int32, (T_MAX, D_in), 1)
    onehot = (col == ids).astype(jnp.float32)                    # (T_MAX, D_in)
    xproj_ref[...] = (
        jnp.dot(onehot, wih_t_ref[...], preferred_element_type=jnp.float32)
        + b_ref[...]                                             # bias folded in once
    )

    whh_t = whh_t_ref[...]                                       # hoisted (H, 4H)
    h_sc[...] = h0_ref[...]
    c_sc[...] = c0_ref[...]

    # --- Fully-unrolled recurrence; padded steps are skipped at runtime.
    for t in range(T_MAX):
        @pl.when(t < seq_len)
        def _step(t=t):
            gates = xproj_ref[t:t + 1, :] + jnp.dot(
                h_sc[...], whh_t, preferred_element_type=jnp.float32)   # (1, 4H)

            # Two full-vreg EUP pushes instead of four partial-lane ones.
            sg = jax.nn.sigmoid(gates)
            th = jnp.tanh(gates)
            i_g = sg[:, 0 * H:1 * H]
            f_g = sg[:, 1 * H:2 * H]
            g_g = th[:, 2 * H:3 * H]
            o_g = sg[:, 3 * H:4 * H]

            c_new = f_g * c_sc[...] + i_g * g_g
            h_sc[...] = o_g * jnp.tanh(c_new)
            c_sc[...] = c_new

    out_ref[...] = h_sc[...]


def _make_lstm_fn(t_max: int, d_in: int, hidden: int, num_players: int, count_moves: int):
    """Build a jitted, shape-static callable: one compile for all history lengths."""
    smem = pl.BlockSpec(memory_space=pltpu.MemorySpace.SMEM)
    vmem = pl.BlockSpec(memory_space=pltpu.MemorySpace.VMEM)
    kernel = functools.partial(_lstm_kernel, num_players, count_moves)
    call = pl.pallas_call(
        kernel,
        out_shape=jax.ShapeDtypeStruct((1, hidden), jnp.float32),
        in_specs=[smem, vmem, vmem, vmem, vmem, vmem, vmem, vmem],
        out_specs=vmem,
        scratch_shapes=[
            pltpu.VMEM((t_max, 4 * hidden), jnp.float32),   # x_proj for all steps
            pltpu.VMEM((1, hidden), jnp.float32),           # h state
            pltpu.VMEM((1, hidden), jnp.float32),           # c state
        ],
    )

    def fn(meta, players, moves, wih_t, whh_t, bias, h0, c0):
        return call(meta, players, moves, wih_t, whh_t, bias, h0, c0)[0]

    return jax.jit(fn)


# ----------------------------------------------------------------------------
# LastMovesEncoder in JAX: parameter container + forward glue.
# ----------------------------------------------------------------------------
class LastMovesEncoderPallas:
    # TODO(synk): batched variant (B sequences packed into the sublane/MXU-row
    # dim + a "parallel" batch grid for v7x's 2 TCs) is the next-level win; the
    # module API is single-sequence so this kernel stays single-sequence.
    T_MAX = 32  # static max history length (padded; one compile total)

    def __init__(self, num_players, hand_size, num_colors, num_ranks, emb_dim_history, key):
        self.num_players = num_players
        self.hand_size = hand_size
        self.num_colors = num_colors
        self.num_ranks = num_ranks
        self.emb_dim_history = emb_dim_history
        self.count_total_moves = count_total_moves(num_players, num_colors, num_ranks, hand_size)
        d_in = num_players * self.count_total_moves
        H = emb_dim_history

        k = jax.random.split(key, 6)
        bound = 1.0 / jnp.sqrt(H)  # PyTorch LSTM default init: U(-1/sqrt(H), 1/sqrt(H))
        self.w_ih = jax.random.uniform(k[0], (4 * H, d_in), jnp.float32, -bound, bound)
        self.w_hh = jax.random.uniform(k[1], (4 * H, H), jnp.float32, -bound, bound)
        self.b_ih = jax.random.uniform(k[2], (4 * H,), jnp.float32, -bound, bound)
        self.b_hh = jax.random.uniform(k[3], (4 * H,), jnp.float32, -bound, bound)
        self.h0 = jax.random.normal(k[4], (1, H), jnp.float32)
        self.c0 = jax.random.normal(k[5], (1, H), jnp.float32)

        # Precompute kernel-layout parameters ONCE (no per-call transposes/adds).
        self.wih_t = jnp.transpose(self.w_ih).astype(jnp.float32)          # (D_in, 4H)
        self.whh_t = jnp.transpose(self.w_hh).astype(jnp.float32)          # (H, 4H)
        self.bias = (self.b_ih + self.b_hh).reshape(1, 4 * H).astype(jnp.float32)

        self._lstm_fn = _make_lstm_fn(self.T_MAX, d_in, H, num_players, self.count_total_moves)

    def forward(self, players, move_ids, cur_player_offset):
        """players / move_ids: python lists mirroring the (player, move) info
        carried by HanabiHistoryItem (move2id already applied)."""
        if len(move_ids) == 0:
            return self.h0[-1]
        T = len(move_ids)
        assert T <= self.T_MAX, "history longer than static T_MAX"

        # Host-side glue is only reverse + pad (numpy, no per-element Python math);
        # the relative-player remap and one-hot happen inside the kernel.
        p = np.zeros((self.T_MAX, 1), np.int32)
        m = np.zeros((self.T_MAX, 1), np.int32)
        p[:T, 0] = np.asarray(players, np.int32)[::-1]
        m[:T, 0] = np.asarray(move_ids, np.int32)[::-1]
        meta = np.asarray([T, cur_player_offset], np.int32)

        return self._lstm_fn(meta, p, m, self.wih_t, self.whh_t, self.bias,
                             self.h0, self.c0)


# ----------------------------------------------------------------------------
# Pure-JAX reference (correctness sanity check).
# ----------------------------------------------------------------------------
def _lstm_ref(x, w_ih, w_hh, b_ih, b_hh, h0, c0):
    H = h0.shape[-1]
    h, c = h0.reshape(1, H), c0.reshape(1, H)
    for t in range(x.shape[0]):
        gates = x[t:t + 1] @ w_ih.T + b_ih + h @ w_hh.T + b_hh
        i_g = jax.nn.sigmoid(gates[:, 0:H])
        f_g = jax.nn.sigmoid(gates[:, H:2 * H])
        g_g = jnp.tanh(gates[:, 2 * H:3 * H])
        o_g = jax.nn.sigmoid(gates[:, 3 * H:4 * H])
        c = f_g * c + i_g * g_g
        h = o_g * jnp.tanh(c)
    return h[0]


def _ref_from_history(enc, players, moves, cur_player_offset):
    combined = []
    for p, m in zip(reversed(players), reversed(moves)):
        p_rel = (p - cur_player_offset if p >= cur_player_offset
                 else enc.num_players + p - cur_player_offset)
        combined.append(p_rel * enc.count_total_moves + m)
    x_ref = jax.nn.one_hot(jnp.asarray(combined, jnp.int32),
                           enc.num_players * enc.count_total_moves, dtype=jnp.float32)
    return _lstm_ref(x_ref, enc.w_ih, enc.w_hh, enc.b_ih, enc.b_hh, enc.h0, enc.c0)


if __name__ == "__main__":
    key = jax.random.PRNGKey(0)
    k_enc, k_pl, k_mv = jax.random.split(key, 3)

    num_players, hand_size, num_colors, num_ranks = 2, 5, 5, 5
    emb_dim_history = 32
    seq_len = 8
    cur_player_offset = 1

    enc = LastMovesEncoderPallas(num_players, hand_size, num_colors, num_ranks,
                                 emb_dim_history, k_enc)

    # Synthetic history: (player, move_id) pairs, deterministic.
    players = [int(p) for p in jax.random.randint(k_pl, (seq_len,), 0, num_players)]
    moves = [int(m) for m in jax.random.randint(k_mv, (seq_len,), 0, enc.count_total_moves)]

    out = enc.forward(players, moves, cur_player_offset)
    out = jax.block_until_ready(out)
    assert out.shape == (emb_dim_history,)

    # Sanity check against pure-JAX LSTM reference (unpadded, one-hot path).
    ref = _ref_from_history(enc, players, moves, cur_player_offset)
    assert jnp.allclose(out, ref, atol=1e-5, rtol=1e-5), (out, ref)

    # A different (shorter) history length must reuse the SAME compiled kernel
    # (static T_MAX + pl.when-skipped padded steps) and still match the reference.
    out3 = jax.block_until_ready(enc.forward(players[:3], moves[:3], cur_player_offset))
    ref3 = _ref_from_history(enc, players[:3], moves[:3], cur_player_offset)
    assert jnp.allclose(out3, ref3, atol=1e-5, rtol=1e-5), (out3, ref3)

    # Single-step history.
    out1 = jax.block_until_ready(enc.forward(players[:1], moves[:1], cur_player_offset))
    ref1 = _ref_from_history(enc, players[:1], moves[:1], cur_player_offset)
    assert jnp.allclose(out1, ref1, atol=1e-5, rtol=1e-5), (out1, ref1)

    # Empty-history path (module returns h0[-1] without the RNN).
    empty = enc.forward([], [], cur_player_offset)
    assert empty.shape == (emb_dim_history,)

    print("KERNEL_OK")
</pallas_src>

<mosaic_0001>
module attributes {stable_mosaic.version = 11 : i64} {
  func.func @_lstm_kernel(%arg0: memref<2xi32, #tpu.memory_space<smem>>, %arg1: memref<32x1xi32, #tpu.memory_space<vmem>>, %arg2: memref<32x1xi32, #tpu.memory_space<vmem>>, %arg3: memref<40x128xf32, #tpu.memory_space<vmem>>, %arg4: memref<32x128xf32, #tpu.memory_space<vmem>>, %arg5: memref<1x128xf32, #tpu.memory_space<vmem>>, %arg6: memref<1x32xf32, #tpu.memory_space<vmem>>, %arg7: memref<1x32xf32, #tpu.memory_space<vmem>>, %arg8: memref<1x32xf32, #tpu.memory_space<vmem>>, %arg9: memref<32x128xf32, #tpu.memory_space<vmem>>, %arg10: memref<1x32xf32, #tpu.memory_space<vmem>>, %arg11: memref<1x32xf32, #tpu.memory_space<vmem>>) attributes {dimension_semantics = [], scalar_prefetch = 0 : i64, scratch_operands = 3 : i64, tpu.core_type = #tpu.core_type<tc>} {
    %c0 = arith.constant 0 : index
    %0 = memref.load %arg0[%c0] : memref<2xi32, #tpu.memory_space<smem>>
    %c1 = arith.constant 1 : index
    %1 = memref.load %arg0[%c1] : memref<2xi32, #tpu.memory_space<smem>>
    %c0_0 = arith.constant 0 : index
    %c0_1 = arith.constant 0 : index
    %2 = vector.load %arg1[%c0_0, %c0_1] : memref<32x1xi32, #tpu.memory_space<vmem>>, vector<32x1xi32>
    %c0_2 = arith.constant 0 : index
    %c0_3 = arith.constant 0 : index
    %3 = vector.load %arg2[%c0_2, %c0_3] : memref<32x1xi32, #tpu.memory_space<vmem>>, vector<32x1xi32>
    %4 = vector.broadcast %1 : i32 to vector<32x1xi32>
    %5 = arith.cmpi sge, %2, %4 : vector<32x1xi32>
    %6 = vector.broadcast %1 : i32 to vector<32x1xi32>
    %7 = arith.subi %2, %6 : vector<32x1xi32>
    %c2_i32 = arith.constant 2 : i32
    %8 = arith.subi %c2_i32, %1 : i32
    %9 = vector.broadcast %8 : i32 to vector<32x1xi32>
    %10 = arith.addi %2, %9 : vector<32x1xi32>
    %11 = arith.select %5, %7, %10 : vector<32x1xi1>, vector<32x1xi32>
    %c20_i32 = arith.constant 20 : i32
    %12 = vector.broadcast %c20_i32 : i32 to vector<32x1xi32>
    %13 = arith.muli %11, %12 : vector<32x1xi32>
    %14 = arith.addi %13, %3 : vector<32x1xi32>
    %15 = tpu.iota {dimensions = array<i32: 1>} : vector<32x40xi32>
    %16 = vector.broadcast %14 : vector<32x1xi32> to vector<32x40xi32>
    %17 = arith.cmpi eq, %15, %16 : vector<32x40xi32>
    %18 = arith.extui %17 : vector<32x40xi1> to vector<32x40xi32>
    %19 = arith.sitofp %18 : vector<32x40xi32> to vector<32x40xf32>
    %c0_4 = arith.constant 0 : index
    %c0_5 = arith.constant 0 : index
    %20 = vector.load %arg3[%c0_4, %c0_5] : memref<40x128xf32, #tpu.memory_space<vmem>>, vector<40x128xf32>
    %cst = arith.constant dense<0.000000e+00> : vector<32x128xf32>
    %21 = tpu.matmul %19, %20, %cst {dimension_numbers = #tpu.dot_dimension_numbers<[1], [0], [0], [1], [0, 0, 1, 1], [], []>} : vector<32x40xf32>, vector<40x128xf32>, vector<32x128xf32> -> vector<32x128xf32>
    %c0_6 = arith.constant 0 : index
    %c0_7 = arith.constant 0 : index
    %22 = vector.load %arg5[%c0_6, %c0_7] : memref<1x128xf32, #tpu.memory_space<vmem>>, vector<1x128xf32>
    %23 = vector.broadcast %22 : vector<1x128xf32> to vector<32x128xf32>
    %24 = arith.addf %21, %23 : vector<32x128xf32>
    %c0_8 = arith.constant 0 : index
    %c0_9 = arith.constant 0 : index
    %25 = vector.load %arg9[%c0_8, %c0_9] : memref<32x128xf32, #tpu.memory_space<vmem>>, vector<32x128xf32>
    tpu.vector_store %arg9[%c0_8, %c0_9], %24 {strides = array<i32>} : memref<32x128xf32, #tpu.memory_space<vmem>>, vector<32x128xf32>,
    %c0_10 = arith.constant 0 : index
    %c0_11 = arith.constant 0 : index
    %26 = vector.load %arg4[%c0_10, %c0_11] : memref<32x128xf32, #tpu.memory_space<vmem>>, vector<32x128xf32>
    %c0_12 = arith.constant 0 : index
    %c0_13 = arith.constant 0 : index
    %27 = vector.load %arg6[%c0_12, %c0_13] : memref<1x32xf32, #tpu.memory_space<vmem>>, vector<1x32xf32>
    %c0_14 = arith.constant 0 : index
    %c0_15 = arith.constant 0 : index
    %28 = vector.load %arg10[%c0_14, %c0_15] : memref<1x32xf32, #tpu.memory_space<vmem>>, vector<1x32xf32>
    tpu.vector_store %arg10[%c0_14, %c0_15], %27 {strides = array<i32>} : memref<1x32xf32, #tpu.memory_space<vmem>>, vector<1x32xf32>,
    %c0_16 = arith.constant 0 : index
    %c0_17 = arith.constant 0 : index
    %29 = vector.load %arg7[%c0_16, %c0_17] : memref<1x32xf32, #tpu.memory_space<vmem>>, vector<1x32xf32>
    %c0_18 = arith.constant 0 : index
    %c0_19 = arith.constant 0 : index
    %30 = vector.load %arg11[%c0_18, %c0_19] : memref<1x32xf32, #tpu.memory_space<vmem>>, vector<1x32xf32>
    tpu.vector_store %arg11[%c0_18, %c0_19], %29 {strides = array<i32>} : memref<1x32xf32, #tpu.memory_space<vmem>>, vector<1x32xf32>,
    %c0_i32 = arith.constant 0 : i32
    %31 = arith.cmpi sgt, %0, %c0_i32 : i32
    %32 = arith.extui %31 : i1 to i32
    %c0_i32_20 = arith.constant 0 : i32
    %33 = arith.cmpi ne, %32, %c0_i32_20 : i32
    scf.if %33 {
      %c0_58 = arith.constant 0 : index
      %c0_59 = arith.constant 0 : index
      %129 = vector.load %arg9[%c0_58, %c0_59] : memref<32x128xf32, #tpu.memory_space<vmem>>, vector<1x128xf32>
      %c0_60 = arith.constant 0 : index
      %c0_61 = arith.constant 0 : index
      %130 = vector.load %arg10[%c0_60, %c0_61] : memref<1x32xf32, #tpu.memory_space<vmem>>, vector<1x32xf32>
      %cst_62 = arith.constant dense<0.000000e+00> : vector<1x128xf32>
      %131 = tpu.matmul %130, %26, %cst_62 {dimension_numbers = #tpu.dot_dimension_numbers<[1], [0], [0], [1], [0, 0, 1, 1], [], []>} : vector<1x32xf32>, vector<32x128xf32>, vector<1x128xf32> -> vector<1x128xf32>
      %132 = arith.addf %129, %131 : vector<1x128xf32>
      %133 = arith.negf %132 : vector<1x128xf32>
      %134 = math.exp %133 : vector<1x128xf32>
      %cst_63 = arith.constant 1.000000e+00 : f32
      %135 = vector.broadcast %cst_63 : f32 to vector<1x128xf32>
      %136 = arith.addf %135, %134 : vector<1x128xf32>
      %137 = arith.divf %135, %136 : vector<1x128xf32>
      %138 = math.tanh %132 : vector<1x128xf32>
      %139 = vector.extract_strided_slice %137 {offsets = [0, 0], sizes = [1, 32], strides = [1, 1]} : vector<1x128xf32> to vector<1x32xf32>
      %140 = vector.extract_strided_slice %137 {offsets = [0, 32], sizes = [1, 32], strides = [1, 1]} : vector<1x128xf32> to vector<1x32xf32>
      %141 = vector.extract_strided_slice %138 {offsets = [0, 64], sizes = [1, 32], strides = [1, 1]} : vector<1x128xf32> to vector<1x32xf32>
      %142 = vector.extract_strided_slice %137 {offsets = [0, 96], sizes = [1, 32], strides = [1, 1]} : vector<1x128xf32> to vector<1x32xf32>
      %c0_64 = arith.constant 0 : index
      %c0_65 = arith.constant 0 : index
      %143 = vector.load %arg11[%c0_64, %c0_65] : memref<1x32xf32, #tpu.memory_space<vmem>>, vector<1x32xf32>
      %144 = arith.mulf %140, %143 : vector<1x32xf32>
      %145 = arith.mulf %139, %141 : vector<1x32xf32>
      %146 = arith.addf %144, %145 : vector<1x32xf32>
      %147 = math.tanh %146 : vector<1x32xf32>
      %148 = arith.mulf %142, %147 : vector<1x32xf32>
      %c0_66 = arith.constant 0 : index
      %c0_67 = arith.constant 0 : index
      %149 = vector.load %arg10[%c0_66, %c0_67] : memref<1x32xf32, #tpu.memory_space<vmem>>, vector<1x32xf32>
      tpu.vector_store %arg10[%c0_66, %c0_67], %148 {strides = array<i32>} : memref<1x32xf32, #tpu.memory_space<vmem>>, vector<1x32xf32>,
      %c0_68 = arith.constant 0 : index
      %c0_69 = arith.constant 0 : index
      %150 = vector.load %arg11[%c0_68, %c0_69] : memref<1x32xf32, #tpu.memory_space<vmem>>, vector<1x32xf32>
      tpu.vector_store %arg11[%c0_68, %c0_69], %146 {strides = array<i32>} : memref<1x32xf32, #tpu.memory_space<vmem>>, vector<1x32xf32>,
    } else {
    }
    %c1_i32 = arith.constant 1 : i32
    %34 = arith.cmpi sgt, %0, %c1_i32 : i32
    %35 = arith.extui %34 : i1 to i32
    %c0_i32_21 = arith.constant 0 : i32
    %36 = arith.cmpi ne, %35, %c0_i32_21 : i32
    scf.if %36 {
      %c1_58 = arith.constant 1 : index
      %c0_59 = arith.constant 0 : index
      %129 = vector.load %arg9[%c1_58, %c0_59] : memref<32x128xf32, #tpu.memory_space<vmem>>, vector<1x128xf32>
      %c0_60 = arith.constant 0 : index
      %c0_61 = arith.constant 0 : index
      %130 = vector.load %arg10[%c0_60, %c0_61] : memref<1x32xf32, #tpu.memory_space<vmem>>, vector<1x32xf32>
      %cst_62 = arith.constant dense<0.000000e+00> : vector<1x128xf32>
      %131 = tpu.matmul %130, %26, %cst_62 {dimension_numbers = #tpu.dot_dimension_numbers<[1], [0], [0], [1], [0, 0, 1, 1], [], []>} : vector<1x32xf32>, vector<32x128xf32>, vector<1x128xf32> -> vector<1x128xf32>
      %132 = arith.addf %129, %131 : vector<1x128xf32>
      %133 = arith.negf %132 : vector<1x128xf32>
      %134 = math.exp %133 : vector<1x128xf32>
      %cst_63 = arith.constant 1.000000e+00 : f32
      %135 = vector.broadcast %cst_63 : f32 to vector<1x128xf32>
      %136 = arith.addf %135, %134 : vector<1x128xf32>
      %137 = arith.divf %135, %136 : vector<1x128xf32>
      %138 = math.tanh %132 : vector<1x128xf32>
      %139 = vector.extract_strided_slice %137 {offsets = [0, 0], sizes = [1, 32], strides = [1, 1]} : vector<1x128xf32> to vector<1x32xf32>
      %140 = vector.extract_strided_slice %137 {offsets = [0, 32], sizes = [1, 32], strides = [1, 1]} : vector<1x128xf32> to vector<1x32xf32>
      %141 = vector.extract_strided_slice %138 {offsets = [0, 64], sizes = [1, 32], strides = [1, 1]} : vector<1x128xf32> to vector<1x32xf32>
      %142 = vector.extract_strided_slice %137 {offsets = [0, 96], sizes = [1, 32], strides = [1, 1]} : vector<1x128xf32> to vector<1x32xf32>
      %c0_64 = arith.constant 0 : index
      %c0_65 = arith.constant 0 : index
      %143 = vector.load %arg11[%c0_64, %c0_65] : memref<1x32xf32, #tpu.memory_space<vmem>>, vector<1x32xf32>
      %144 = arith.mulf %140, %143 : vector<1x32xf32>
      %145 = arith.mulf %139, %141 : vector<1x32xf32>
      %146 = arith.addf %144, %145 : vector<1x32xf32>
      %147 = math.tanh %146 : vector<1x32xf32>
      %148 = arith.mulf %142, %147 : vector<1x32xf32>
      %c0_66 = arith.constant 0 : index
      %c0_67 = arith.constant 0 : index
      %149 = vector.load %arg10[%c0_66, %c0_67] : memref<1x32xf32, #tpu.memory_space<vmem>>, vector<1x32xf32>
      tpu.vector_store %arg10[%c0_66, %c0_67], %148 {strides = array<i32>} : memref<1x32xf32, #tpu.memory_space<vmem>>, vector<1x32xf32>,
      %c0_68 = arith.constant 0 : index
      %c0_69 = arith.constant 0 : index
      %150 = vector.load %arg11[%c0_68, %c0_69] : memref<1x32xf32, #tpu.memory_space<vmem>>, vector<1x32xf32>
      tpu.vector_store %arg11[%c0_68, %c0_69], %146 {strides = array<i32>} : memref<1x32xf32, #tpu.memory_space<vmem>>, vector<1x32xf32>,
    } else {
    }
    %c2_i32_22 = arith.constant 2 : i32
    %37 = arith.cmpi sgt, %0, %c2_i32_22 : i32
    %38 = arith.extui %37 : i1 to i32
    %c0_i32_23 = arith.constant 0 : i32
    %39 = arith.cmpi ne, %38, %c0_i32_23 : i32
    scf.if %39 {
      %c2 = arith.constant 2 : index
      %c0_58 = arith.constant 0 : index
      %129 = vector.load %arg9[%c2, %c0_58] : memref<32x128xf32, #tpu.memory_space<vmem>>, vector<1x128xf32>
      %c0_59 = arith.constant 0 : index
      %c0_60 = arith.constant 0 : index
      %130 = vector.load %arg10[%c0_59, %c0_60] : memref<1x32xf32, #tpu.memory_space<vmem>>, vector<1x32xf32>
      %cst_61 = arith.constant dense<0.000000e+00> : vector<1x128xf32>
      %131 = tpu.matmul %130, %26, %cst_61 {dimension_numbers = #tpu.dot_dimension_numbers<[1], [0], [0], [1], [0, 0, 1, 1], [], []>} : vector<1x32xf32>, vector<32x128xf32>, vector<1x128xf32> -> vector<1x128xf32>
      %132 = arith.addf %129, %131 : vector<1x128xf32>
      %133 = arith.negf %132 : vector<1x128xf32>
      %134 = math.exp %133 : vector<1x128xf32>
      %cst_62 = arith.constant 1.000000e+00 : f32
      %135 = vector.broadcast %cst_62 : f32 to vector<1x128xf32>
      %136 = arith.addf %135, %134 : vector<1x128xf32>
      %137 = arith.divf %135, %136 : vector<1x128xf32>
      %138 = math.tanh %132 : vector<1x128xf32>
      %139 = vector.extract_strided_slice %137 {offsets = [0, 0], sizes = [1, 32], strides = [1, 1]} : vector<1x128xf32> to vector<1x32xf32>
      %140 = vector.extract_strided_slice %137 {offsets = [0, 32], sizes = [1, 32], strides = [1, 1]} : vector<1x128xf32> to vector<1x32xf32>
      %141 = vector.extract_strided_slice %138 {offsets = [0, 64], sizes = [1, 32], strides = [1, 1]} : vector<1x128xf32> to vector<1x32xf32>
      %142 = vector.extract_strided_slice %137 {offsets = [0, 96], sizes = [1, 32], strides = [1, 1]} : vector<1x128xf32> to vector<1x32xf32>
      %c0_63 = arith.constant 0 : index
      %c0_64 = arith.constant 0 : index
      %143 = vector.load %arg11[%c0_63, %c0_64] : memref<1x32xf32, #tpu.memory_space<vmem>>, vector<1x32xf32>
      %144 = arith.mulf %140, %143 : vector<1x32xf32>
      %145 = arith.mulf %139, %141 : vector<1x32xf32>
      %146 = arith.addf %144, %145 : vector<1x32xf32>
      %147 = math.tanh %146 : vector<1x32xf32>
      %148 = arith.mulf %142, %147 : vector<1x32xf32>
      %c0_65 = arith.constant 0 : index
      %c0_66 = arith.constant 0 : index
      %149 = vector.load %arg10[%c0_65, %c0_66] : memref<1x32xf32, #tpu.memory_space<vmem>>, vector<1x32xf32>
      tpu.vector_store %arg10[%c0_65, %c0_66], %148 {strides = array<i32>} : memref<1x32xf32, #tpu.memory_space<vmem>>, vector<1x32xf32>,
      %c0_67 = arith.constant 0 : index
      %c0_68 = arith.constant 0 : index
      %150 = vector.load %arg11[%c0_67, %c0_68] : memref<1x32xf32, #tpu.memory_space<vmem>>, vector<1x32xf32>
      tpu.vector_store %arg11[%c0_67, %c0_68], %146 {strides = array<i32>} : memref<1x32xf32, #tpu.memory_space<vmem>>, vector<1x32xf32>,
    } else {
    }
    %c3_i32 = arith.constant 3 : i32
    %40 = arith.cmpi sgt, %0, %c3_i32 : i32
    %41 = arith.extui %40 : i1 to i32
    %c0_i32_24 = arith.constant 0 : i32
    %42 = arith.cmpi ne, %41, %c0_i32_24 : i32
    scf.if %42 {
      %c3 = arith.constant 3 : index
      %c0_58 = arith.constant 0 : index
      %129 = vector.load %arg9[%c3, %c0_58] : memref<32x128xf32, #tpu.memory_space<vmem>>, vector<1x128xf32>
      %c0_59 = arith.constant 0 : index
      %c0_60 = arith.constant 0 : index
      %130 = vector.load %arg10[%c0_59, %c0_60] : memref<1x32xf32, #tpu.memory_space<vmem>>, vector<1x32xf32>
      %cst_61 = arith.constant dense<0.000000e+00> : vector<1x128xf32>
      %131 = tpu.matmul %130, %26, %cst_61 {dimension_numbers = #tpu.dot_dimension_numbers<[1], [0], [0], [1], [0, 0, 1, 1], [], []>} : vector<1x32xf32>, vector<32x128xf32>, vector<1x128xf32> -> vector<1x128xf32>
      %132 = arith.addf %129, %131 : vector<1x128xf32>
      %133 = arith.negf %132 : vector<1x128xf32>
      %134 = math.exp %133 : vector<1x128xf32>
      %cst_62 = arith.constant 1.000000e+00 : f32
      %135 = vector.broadcast %cst_62 : f32 to vector<1x128xf32>
      %136 = arith.addf %135, %134 : vector<1x128xf32>
      %137 = arith.divf %135, %136 : vector<1x128xf32>
      %138 = math.tanh %132 : vector<1x128xf32>
      %139 = vector.extract_strided_slice %137 {offsets = [0, 0], sizes = [1, 32], strides = [1, 1]} : vector<1x128xf32> to vector<1x32xf32>
      %140 = vector.extract_strided_slice %137 {offsets = [0, 32], sizes = [1, 32], strides = [1, 1]} : vector<1x128xf32> to vector<1x32xf32>
      %141 = vector.extract_strided_slice %138 {offsets = [0, 64], sizes = [1, 32], strides = [1, 1]} : vector<1x128xf32> to vector<1x32xf32>
      %142 = vector.extract_strided_slice %137 {offsets = [0, 96], sizes = [1, 32], strides = [1, 1]} : vector<1x128xf32> to vector<1x32xf32>
      %c0_63 = arith.constant 0 : index
      %c0_64 = arith.constant 0 : index
      %143 = vector.load %arg11[%c0_63, %c0_64] : memref<1x32xf32, #tpu.memory_space<vmem>>, vector<1x32xf32>
      %144 = arith.mulf %140, %143 : vector<1x32xf32>
      %145 = arith.mulf %139, %141 : vector<1x32xf32>
      %146 = arith.addf %144, %145 : vector<1x32xf32>
      %147 = math.tanh %146 : vector<1x32xf32>
      %148 = arith.mulf %142, %147 : vector<1x32xf32>
      %c0_65 = arith.constant 0 : index
      %c0_66 = arith.constant 0 : index
      %149 = vector.load %arg10[%c0_65, %c0_66] : memref<1x32xf32, #tpu.memory_space<vmem>>, vector<1x32xf32>
      tpu.vector_store %arg10[%c0_65, %c0_66], %148 {strides = array<i32>} : memref<1x32xf32, #tpu.memory_space<vmem>>, vector<1x32xf32>,
      %c0_67 = arith.constant 0 : index
      %c0_68 = arith.constant 0 : index
      %150 = vector.load %arg11[%c0_67, %c0_68] : memref<1x32xf32, #tpu.memory_space<vmem>>, vector<1x32xf32>
      tpu.vector_store %arg11[%c0_67, %c0_68], %146 {strides = array<i32>} : memref<1x32xf32, #tpu.memory_space<vmem>>, vector<1x32xf32>,
    } else {
    }
    %c4_i32 = arith.constant 4 : i32
    %43 = arith.cmpi sgt, %0, %c4_i32 : i32
    %44 = arith.extui %43 : i1 to i32
    %c0_i32_25 = arith.constant 0 : i32
    %45 = arith.cmpi ne, %44, %c0_i32_25 : i32
    scf.if %45 {
      %c4 = arith.constant 4 : index
      %c0_58 = arith.constant 0 : index
      %129 = vector.load %arg9[%c4, %c0_58] : memref<32x128xf32, #tpu.memory_space<vmem>>, vector<1x128xf32>
      %c0_59 = arith.constant 0 : index
      %c0_60 = arith.constant 0 : index
      %130 = vector.load %arg10[%c0_59, %c0_60] : memref<1x32xf32, #tpu.memory_space<vmem>>, vector<1x32xf32>
      %cst_61 = arith.constant dense<0.000000e+00> : vector<1x128xf32>
      %131 = tpu.matmul %130, %26, %cst_61 {dimension_numbers = #tpu.dot_dimension_numbers<[1], [0], [0], [1], [0, 0, 1, 1], [], []>} : vector<1x32xf32>, vector<32x128xf32>, vector<1x128xf32> -> vector<1x128xf32>
      %132 = arith.addf %129, %131 : vector<1x128xf32>
      %133 = arith.negf %132 : vector<1x128xf32>
      %134 = math.exp %133 : vector<1x128xf32>
      %cst_62 = arith.constant 1.000000e+00 : f32
      %135 = vector.broadcast %cst_62 : f32 to vector<1x128xf32>
      %136 = arith.addf %135, %134 : vector<1x128xf32>
      %137 = arith.divf %135, %136 : vector<1x128xf32>
      %138 = math.tanh %132 : vector<1x128xf32>
      %139 = vector.extract_strided_slice %137 {offsets = [0, 0], sizes = [1, 32], strides = [1, 1]} : vector<1x128xf32> to vector<1x32xf32>
      %140 = vector.extract_strided_slice %137 {offsets = [0, 32], sizes = [1, 32], strides = [1, 1]} : vector<1x128xf32> to vector<1x32xf32>
      %141 = vector.extract_strided_slice %138 {offsets = [0, 64], sizes = [1, 32], strides = [1, 1]} : vector<1x128xf32> to vector<1x32xf32>
      %142 = vector.extract_strided_slice %137 {offsets = [0, 96], sizes = [1, 32], strides = [1, 1]} : vector<1x128xf32> to vector<1x32xf32>
      %c0_63 = arith.constant 0 : index
      %c0_64 = arith.constant 0 : index
      %143 = vector.load %arg11[%c0_63, %c0_64] : memref<1x32xf32, #tpu.memory_space<vmem>>, vector<1x32xf32>
      %144 = arith.mulf %140, %143 : vector<1x32xf32>
      %145 = arith.mulf %139, %141 : vector<1x32xf32>
      %146 = arith.addf %144, %145 : vector<1x32xf32>
      %147 = math.tanh %146 : vector<1x32xf32>
      %148 = arith.mulf %142, %147 : vector<1x32xf32>
      %c0_65 = arith.constant 0 : index
      %c0_66 = arith.constant 0 : index
      %149 = vector.load %arg10[%c0_65, %c0_66] : memref<1x32xf32, #tpu.memory_space<vmem>>, vector<1x32xf32>
      tpu.vector_store %arg10[%c0_65, %c0_66], %148 {strides = array<i32>} : memref<1x32xf32, #tpu.memory_space<vmem>>, vector<1x32xf32>,
      %c0_67 = arith.constant 0 : index
      %c0_68 = arith.constant 0 : index
      %150 = vector.load %arg11[%c0_67, %c0_68] : memref<1x32xf32, #tpu.memory_space<vmem>>, vector<1x32xf32>
      tpu.vector_store %arg11[%c0_67, %c0_68], %146 {strides = array<i32>} : memref<1x32xf32, #tpu.memory_space<vmem>>, vector<1x32xf32>,
    } else {
    }
    %c5_i32 = arith.constant 5 : i32
    %46 = arith.cmpi sgt, %0, %c5_i32 : i32
    %47 = arith.extui %46 : i1 to i32
    %c0_i32_26 = arith.constant 0 : i32
    %48 = arith.cmpi ne, %47, %c0_i32_26 : i32
    scf.if %48 {
      %c5 = arith.constant 5 : index
      %c0_58 = arith.constant 0 : index
      %129 = vector.load %arg9[%c5, %c0_58] : memref<32x128xf32, #tpu.memory_space<vmem>>, vector<1x128xf32>
      %c0_59 = arith.constant 0 : index
      %c0_60 = arith.constant 0 : index
      %130 = vector.load %arg10[%c0_59, %c0_60] : memref<1x32xf32, #tpu.memory_space<vmem>>, vector<1x32xf32>
      %cst_61 = arith.constant dense<0.000000e+00> : vector<1x128xf32>
      %131 = tpu.matmul %130, %26, %cst_61 {dimension_numbers = #tpu.dot_dimension_numbers<[1], [0], [0], [1], [0, 0, 1, 1], [], []>} : vector<1x32xf32>, vector<32x128xf32>, vector<1x128xf32> -> vector<1x128xf32>
      %132 = arith.addf %129, %131 : vector<1x128xf32>
      %133 = arith.negf %132 : vector<1x128xf32>
      %134 = math.exp %133 : vector<1x128xf32>
      %cst_62 = arith.constant 1.000000e+00 : f32
      %135 = vector.broadcast %cst_62 : f32 to vector<1x128xf32>
      %136 = arith.addf %135, %134 : vector<1x128xf32>
      %137 = arith.divf %135, %136 : vector<1x128xf32>
      %138 = math.tanh %132 : vector<1x128xf32>
      %139 = vector.extract_strided_slice %137 {offsets = [0, 0], sizes = [1, 32], strides = [1, 1]} : vector<1x128xf32> to vector<1x32xf32>
      %140 = vector.extract_strided_slice %137 {offsets = [0, 32], sizes = [1, 32], strides = [1, 1]} : vector<1x128xf32> to vector<1x32xf32>
      %141 = vector.extract_strided_slice %138 {offsets = [0, 64], sizes = [1, 32], strides = [1, 1]} : vector<1x128xf32> to vector<1x32xf32>
      %142 = vector.extract_strided_slice %137 {offsets = [0, 96], sizes = [1, 32], strides = [1, 1]} : vector<1x128xf32> to vector<1x32xf32>
      %c0_63 = arith.constant 0 : index
      %c0_64 = arith.constant 0 : index
      %143 = vector.load %arg11[%c0_63, %c0_64] : memref<1x32xf32, #tpu.memory_space<vmem>>, vector<1x32xf32>
      %144 = arith.mulf %140, %143 : vector<1x32xf32>
      %145 = arith.mulf %139, %141 : vector<1x32xf32>
      %146 = arith.addf %144, %145 : vector<1x32xf32>
      %147 = math.tanh %146 : vector<1x32xf32>
      %148 = arith.mulf %142, %147 : vector<1x32xf32>
      %c0_65 = arith.constant 0 : index
      %c0_66 = arith.constant 0 : index
      %149 = vector.load %arg10[%c0_65, %c0_66] : memref<1x32xf32, #tpu.memory_space<vmem>>, vector<1x32xf32>
      tpu.vector_store %arg10[%c0_65, %c0_66], %148 {strides = array<i32>} : memref<1x32xf32, #tpu.memory_space<vmem>>, vector<1x32xf32>,
      %c0_67 = arith.constant 0 : index
      %c0_68 = arith.constant 0 : index
      %150 = vector.load %arg11[%c0_67, %c0_68] : memref<1x32xf32, #tpu.memory_space<vmem>>, vector<1x32xf32>
      tpu.vector_store %arg11[%c0_67, %c0_68], %146 {strides = array<i32>} : memref<1x32xf32, #tpu.memory_space<vmem>>, vector<1x32xf32>,
    } else {
    }
    %c6_i32 = arith.constant 6 : i32
    %49 = arith.cmpi sgt, %0, %c6_i32 : i32
    %50 = arith.extui %49 : i1 to i32
    %c0_i32_27 = arith.constant 0 : i32
    %51 = arith.cmpi ne, %50, %c0_i32_27 : i32
    scf.if %51 {
      %c6 = arith.constant 6 : index
      %c0_58 = arith.constant 0 : index
      %129 = vector.load %arg9[%c6, %c0_58] : memref<32x128xf32, #tpu.memory_space<vmem>>, vector<1x128xf32>
      %c0_59 = arith.constant 0 : index
      %c0_60 = arith.constant 0 : index
      %130 = vector.load %arg10[%c0_59, %c0_60] : memref<1x32xf32, #tpu.memory_space<vmem>>, vector<1x32xf32>
      %cst_61 = arith.constant dense<0.000000e+00> : vector<1x128xf32>
      %131 = tpu.matmul %130, %26, %cst_61 {dimension_numbers = #tpu.dot_dimension_numbers<[1], [0], [0], [1], [0, 0, 1, 1], [], []>} : vector<1x32xf32>, vector<32x128xf32>, vector<1x128xf32> -> vector<1x128xf32>
      %132 = arith.addf %129, %131 : vector<1x128xf32>
      %133 = arith.negf %132 : vector<1x128xf32>
      %134 = math.exp %133 : vector<1x128xf32>
      %cst_62 = arith.constant 1.000000e+00 : f32
      %135 = vector.broadcast %cst_62 : f32 to vector<1x128xf32>
      %136 = arith.addf %135, %134 : vector<1x128xf32>
      %137 = arith.divf %135, %136 : vector<1x128xf32>
      %138 = math.tanh %132 : vector<1x128xf32>
      %139 = vector.extract_strided_slice %137 {offsets = [0, 0], sizes = [1, 32], strides = [1, 1]} : vector<1x128xf32> to vector<1x32xf32>
      %140 = vector.extract_strided_slice %137 {offsets = [0, 32], sizes = [1, 32], strides = [1, 1]} : vector<1x128xf32> to vector<1x32xf32>
      %141 = vector.extract_strided_slice %138 {offsets = [0, 64], sizes = [1, 32], strides = [1, 1]} : vector<1x128xf32> to vector<1x32xf32>
      %142 = vector.extract_strided_slice %137 {offsets = [0, 96], sizes = [1, 32], strides = [1, 1]} : vector<1x128xf32> to vector<1x32xf32>
      %c0_63 = arith.constant 0 : index
      %c0_64 = arith.constant 0 : index
      %143 = vector.load %arg11[%c0_63, %c0_64] : memref<1x32xf32, #tpu.memory_space<vmem>>, vector<1x32xf32>
      %144 = arith.mulf %140, %143 : vector<1x32xf32>
      %145 = arith.mulf %139, %141 : vector<1x32xf32>
      %146 = arith.addf %144, %145 : vector<1x32xf32>
      %147 = math.tanh %146 : vector<1x32xf32>
      %148 = arith.mulf %142, %147 : vector<1x32xf32>
      %c0_65 = arith.constant 0 : index
      %c0_66 = arith.constant 0 : index
      %149 = vector.load %arg10[%c0_65, %c0_66] : memref<1x32xf32, #tpu.memory_space<vmem>>, vector<1x32xf32>
      tpu.vector_store %arg10[%c0_65, %c0_66], %148 {strides = array<i32>} : memref<1x32xf32, #tpu.memory_space<vmem>>, vector<1x32xf32>,
      %c0_67 = arith.constant 0 : index
      %c0_68 = arith.constant 0 : index
      %150 = vector.load %arg11[%c0_67, %c0_68] : memref<1x32xf32, #tpu.memory_space<vmem>>, vector<1x32xf32>
      tpu.vector_store %arg11[%c0_67, %c0_68], %146 {strides = array<i32>} : memref<1x32xf32, #tpu.memory_space<vmem>>, vector<1x32xf32>,
    } else {
    }
    %c7_i32 = arith.constant 7 : i32
    %52 = arith.cmpi sgt, %0, %c7_i32 : i32
    %53 = arith.extui %52 : i1 to i32
    %c0_i32_28 = arith.constant 0 : i32
    %54 = arith.cmpi ne, %53, %c0_i32_28 : i32
    scf.if %54 {
      %c7 = arith.constant 7 : index
      %c0_58 = arith.constant 0 : index
      %129 = vector.load %arg9[%c7, %c0_58] : memref<32x128xf32, #tpu.memory_space<vmem>>, vector<1x128xf32>
      %c0_59 = arith.constant 0 : index
      %c0_60 = arith.constant 0 : index
      %130 = vector.load %arg10[%c0_59, %c0_60] : memref<1x32xf32, #tpu.memory_space<vmem>>, vector<1x32xf32>
      %cst_61 = arith.constant dense<0.000000e+00> : vector<1x128xf32>
      %131 = tpu.matmul %130, %26, %cst_61 {dimension_numbers = #tpu.dot_dimension_numbers<[1], [0], [0], [1], [0, 0, 1, 1], [], []>} : vector<1x32xf32>, vector<32x128xf32>, vector<1x128xf32> -> vector<1x128xf32>
      %132 = arith.addf %129, %131 : vector<1x128xf32>
      %133 = arith.negf %132 : vector<1x128xf32>
      %134 = math.exp %133 : vector<1x128xf32>
      %cst_62 = arith.constant 1.000000e+00 : f32
      %135 = vector.broadcast %cst_62 : f32 to vector<1x128xf32>
      %136 = arith.addf %135, %134 : vector<1x128xf32>
      %137 = arith.divf %135, %136 : vector<1x128xf32>
      %138 = math.tanh %132 : vector<1x128xf32>
      %139 = vector.extract_strided_slice %137 {offsets = [0, 0], sizes = [1, 32], strides = [1, 1]} : vector<1x128xf32> to vector<1x32xf32>
      %140 = vector.extract_strided_slice %137 {offsets = [0, 32], sizes = [1, 32], strides = [1, 1]} : vector<1x128xf32> to vector<1x32xf32>
      %141 = vector.extract_strided_slice %138 {offsets = [0, 64], sizes = [1, 32], strides = [1, 1]} : vector<1x128xf32> to vector<1x32xf32>
      %142 = vector.extract_strided_slice %137 {offsets = [0, 96], sizes = [1, 32], strides = [1, 1]} : vector<1x128xf32> to vector<1x32xf32>
      %c0_63 = arith.constant 0 : index
      %c0_64 = arith.constant 0 : index
      %143 = vector.load %arg11[%c0_63, %c0_64] : memref<1x32xf32, #tpu.memory_space<vmem>>, vector<1x32xf32>
      %144 = arith.mulf %140, %143 : vector<1x32xf32>
      %145 = arith.mulf %139, %141 : vector<1x32xf32>
      %146 = arith.addf %144, %145 : vector<1x32xf32>
      %147 = math.tanh %146 : vector<1x32xf32>
      %148 = arith.mulf %142, %147 : vector<1x32xf32>
      %c0_65 = arith.constant 0 : index
      %c0_66 = arith.constant 0 : index
      %149 = vector.load %arg10[%c0_65, %c0_66] : memref<1x32xf32, #tpu.memory_space<vmem>>, vector<1x32xf32>
      tpu.vector_store %arg10[%c0_65, %c0_66], %148 {strides = array<i32>} : memref<1x32xf32, #tpu.memory_space<vmem>>, vector<1x32xf32>,
      %c0_67 = arith.constant 0 : index
      %c0_68 = arith.constant 0 : index
      %150 = vector.load %arg11[%c0_67, %c0_68] : memref<1x32xf32, #tpu.memory_space<vmem>>, vector<1x32xf32>
      tpu.vector_store %arg11[%c0_67, %c0_68], %146 {strides = array<i32>} : memref<1x32xf32, #tpu.memory_space<vmem>>, vector<1x32xf32>,
    } else {
    }
    %c8_i32 = arith.constant 8 : i32
    %55 = arith.cmpi sgt, %0, %c8_i32 : i32
    %56 = arith.extui %55 : i1 to i32
    %c0_i32_29 = arith.constant 0 : i32
    %57 = arith.cmpi ne, %56, %c0_i32_29 : i32
    scf.if %57 {
      %c8 = arith.constant 8 : index
      %c0_58 = arith.constant 0 : index
      %129 = vector.load %arg9[%c8, %c0_58] : memref<32x128xf32, #tpu.memory_space<vmem>>, vector<1x128xf32>
      %c0_59 = arith.constant 0 : index
      %c0_60 = arith.constant 0 : index
      %130 = vector.load %arg10[%c0_59, %c0_60] : memref<1x32xf32, #tpu.memory_space<vmem>>, vector<1x32xf32>
      %cst_61 = arith.constant dense<0.000000e+00> : vector<1x128xf32>
      %131 = tpu.matmul %130, %26, %cst_61 {dimension_numbers = #tpu.dot_dimension_numbers<[1], [0], [0], [1], [0, 0, 1, 1], [], []>} : vector<1x32xf32>, vector<32x128xf32>, vector<1x128xf32> -> vector<1x128xf32>
      %132 = arith.addf %129, %131 : vector<1x128xf32>
      %133 = arith.negf %132 : vector<1x128xf32>
      %134 = math.exp %133 : vector<1x128xf32>
      %cst_62 = arith.constant 1.000000e+00 : f32
      %135 = vector.broadcast %cst_62 : f32 to vector<1x128xf32>
      %136 = arith.addf %135, %134 : vector<1x128xf32>
      %137 = arith.divf %135, %136 : vector<1x128xf32>
      %138 = math.tanh %132 : vector<1x128xf32>
      %139 = vector.extract_strided_slice %137 {offsets = [0, 0], sizes = [1, 32], strides = [1, 1]} : vector<1x128xf32> to vector<1x32xf32>
      %140 = vector.extract_strided_slice %137 {offsets = [0, 32], sizes = [1, 32], strides = [1, 1]} : vector<1x128xf32> to vector<1x32xf32>
      %141 = vector.extract_strided_slice %138 {offsets = [0, 64], sizes = [1, 32], strides = [1, 1]} : vector<1x128xf32> to vector<1x32xf32>
      %142 = vector.extract_strided_slice %137 {offsets = [0, 96], sizes = [1, 32], strides = [1, 1]} : vector<1x128xf32> to vector<1x32xf32>
      %c0_63 = arith.constant 0 : index
      %c0_64 = arith.constant 0 : index
      %143 = vector.load %arg11[%c0_63, %c0_64] : memref<1x32xf32, #tpu.memory_space<vmem>>, vector<1x32xf32>
      %144 = arith.mulf %140, %143 : vector<1x32xf32>
      %145 = arith.mulf %139, %141 : vector<1x32xf32>
      %146 = arith.addf %144, %145 : vector<1x32xf32>
      %147 = math.tanh %146 : vector<1x32xf32>
      %148 = arith.mulf %142, %147 : vector<1x32xf32>
      %c0_65 = arith.constant 0 : index
      %c0_66 = arith.constant 0 : index
      %149 = vector.load %arg10[%c0_65, %c0_66] : memref<1x32xf32, #tpu.memory_space<vmem>>, vector<1x32xf32>
      tpu.vector_store %arg10[%c0_65, %c0_66], %148 {strides = array<i32>} : memref<1x32xf32, #tpu.memory_space<vmem>>, vector<1x32xf32>,
      %c0_67 = arith.constant 0 : index
      %c0_68 = arith.constant 0 : index
      %150 = vector.load %arg11[%c0_67, %c0_68] : memref<1x32xf32, #tpu.memory_space<vmem>>, vector<1x32xf32>
      tpu.vector_store %arg11[%c0_67, %c0_68], %146 {strides = array<i32>} : memref<1x32xf32, #tpu.memory_space<vmem>>, vector<1x32xf32>,
    } else {
    }
    %c9_i32 = arith.constant 9 : i32
    %58 = arith.cmpi sgt, %0, %c9_i32 : i32
    %59 = arith.extui %58 : i1 to i32
    %c0_i32_30 = arith.constant 0 : i32
    %60 = arith.cmpi ne, %59, %c0_i32_30 : i32
    scf.if %60 {
      %c9 = arith.constant 9 : index
      %c0_58 = arith.constant 0 : index
      %129 = vector.load %arg9[%c9, %c0_58] : memref<32x128xf32, #tpu.memory_space<vmem>>, vector<1x128xf32>
      %c0_59 = arith.constant 0 : index
      %c0_60 = arith.constant 0 : index
      %130 = vector.load %arg10[%c0_59, %c0_60] : memref<1x32xf32, #tpu.memory_space<vmem>>, vector<1x32xf32>
      %cst_61 = arith.constant dense<0.000000e+00> : vector<1x128xf32>
      %131 = tpu.matmul %130, %26, %cst_61 {dimension_numbers = #tpu.dot_dimension_numbers<[1], [0], [0], [1], [0, 0, 1, 1], [], []>} : vector<1x32xf32>, vector<32x128xf32>, vector<1x128xf32> -> vector<1x128xf32>
      %132 = arith.addf %129, %131 : vector<1x128xf32>
      %133 = arith.negf %132 : vector<1x128xf32>
      %134 = math.exp %133 : vector<1x128xf32>
      %cst_62 = arith.constant 1.000000e+00 : f32
      %135 = vector.broadcast %cst_62 : f32 to vector<1x128xf32>
      %136 = arith.addf %135, %134 : vector<1x128xf32>
      %137 = arith.divf %135, %136 : vector<1x128xf32>
      %138 = math.tanh %132 : vector<1x128xf32>
      %139 = vector.extract_strided_slice %137 {offsets = [0, 0], sizes = [1, 32], strides = [1, 1]} : vector<1x128xf32> to vector<1x32xf32>
      %140 = vector.extract_strided_slice %137 {offsets = [0, 32], sizes = [1, 32], strides = [1, 1]} : vector<1x128xf32> to vector<1x32xf32>
      %141 = vector.extract_strided_slice %138 {offsets = [0, 64], sizes = [1, 32], strides = [1, 1]} : vector<1x128xf32> to vector<1x32xf32>
      %142 = vector.extract_strided_slice %137 {offsets = [0, 96], sizes = [1, 32], strides = [1, 1]} : vector<1x128xf32> to vector<1x32xf32>
      %c0_63 = arith.constant 0 : index
      %c0_64 = arith.constant 0 : index
      %143 = vector.load %arg11[%c0_63, %c0_64] : memref<1x32xf32, #tpu.memory_space<vmem>>, vector<1x32xf32>
      %144 = arith.mulf %140, %143 : vector<1x32xf32>
      %145 = arith.mulf %139, %141 : vector<1x32xf32>
      %146 = arith.addf %144, %145 : vector<1x32xf32>
      %147 = math.tanh %146 : vector<1x32xf32>
      %148 = arith.mulf %142, %147 : vector<1x32xf32>
      %c0_65 = arith.constant 0 : index
      %c0_66 = arith.constant 0 : index
      %149 = vector.load %arg10[%c0_65, %c0_66] : memref<1x32xf32, #tpu.memory_space<vmem>>, vector<1x32xf32>
      tpu.vector_store %arg10[%c0_65, %c0_66], %148 {strides = array<i32>} : memref<1x32xf32, #tpu.memory_space<vmem>>, vector<1x32xf32>,
      %c0_67 = arith.constant 0 : index
      %c0_68 = arith.constant 0 : index
      %150 = vector.load %arg11[%c0_67, %c0_68] : memref<1x32xf32, #tpu.memory_space<vmem>>, vector<1x32xf32>
      tpu.vector_store %arg11[%c0_67, %c0_68], %146 {strides = array<i32>} : memref<1x32xf32, #tpu.memory_space<vmem>>, vector<1x32xf32>,
    } else {
    }
    %c10_i32 = arith.constant 10 : i32
    %61 = arith.cmpi sgt, %0, %c10_i32 : i32
    %62 = arith.extui %61 : i1 to i32
    %c0_i32_31 = arith.constant 0 : i32
    %63 = arith.cmpi ne, %62, %c0_i32_31 : i32
    scf.if %63 {
      %c10 = arith.constant 10 : index
      %c0_58 = arith.constant 0 : index
      %129 = vector.load %arg9[%c10, %c0_58] : memref<32x128xf32, #tpu.memory_space<vmem>>, vector<1x128xf32>
      %c0_59 = arith.constant 0 : index
      %c0_60 = arith.constant 0 : index
      %130 = vector.load %arg10[%c0_59, %c0_60] : memref<1x32xf32, #tpu.memory_space<vmem>>, vector<1x32xf32>
      %cst_61 = arith.constant dense<0.000000e+00> : vector<1x128xf32>
      %131 = tpu.matmul %130, %26, %cst_61 {dimension_numbers = #tpu.dot_dimension_numbers<[1], [0], [0], [1], [0, 0, 1, 1], [], []>} : vector<1x32xf32>, vector<32x128xf32>, vector<1x128xf32> -> vector<1x128xf32>
      %132 = arith.addf %129, %131 : vector<1x128xf32>
      %133 = arith.negf %132 : vector<1x128xf32>
      %134 = math.exp %133 : vector<1x128xf32>
      %cst_62 = arith.constant 1.000000e+00 : f32
      %135 = vector.broadcast %cst_62 : f32 to vector<1x128xf32>
      %136 = arith.addf %135, %134 : vector<1x128xf32>
      %137 = arith.divf %135, %136 : vector<1x128xf32>
      %138 = math.tanh %132 : vector<1x128xf32>
      %139 = vector.extract_strided_slice %137 {offsets = [0, 0], sizes = [1, 32], strides = [1, 1]} : vector<1x128xf32> to vector<1x32xf32>
      %140 = vector.extract_strided_slice %137 {offsets = [0, 32], sizes = [1, 32], strides = [1, 1]} : vector<1x128xf32> to vector<1x32xf32>
      %141 = vector.extract_strided_slice %138 {offsets = [0, 64], sizes = [1, 32], strides = [1, 1]} : vector<1x128xf32> to vector<1x32xf32>
      %142 = vector.extract_strided_slice %137 {offsets = [0, 96], sizes = [1, 32], strides = [1, 1]} : vector<1x128xf32> to vector<1x32xf32>
      %c0_63 = arith.constant 0 : index
      %c0_64 = arith.constant 0 : index
      %143 = vector.load %arg11[%c0_63, %c0_64] : memref<1x32xf32, #tpu.memory_space<vmem>>, vector<1x32xf32>
      %144 = arith.mulf %140, %143 : vector<1x32xf32>
      %145 = arith.mulf %139, %141 : vector<1x32xf32>
      %146 = arith.addf %144, %145 : vector<1x32xf32>
      %147 = math.tanh %146 : vector<1x32xf32>
      %148 = arith.mulf %142, %147 : vector<1x32xf32>
      %c0_65 = arith.constant 0 : index
      %c0_66 = arith.constant 0 : index
      %149 = vector.load %arg10[%c0_65, %c0_66] : memref<1x32xf32, #tpu.memory_space<vmem>>, vector<1x32xf32>
      tpu.vector_store %arg10[%c0_65, %c0_66], %148 {strides = array<i32>} : memref<1x32xf32, #tpu.memory_space<vmem>>, vector<1x32xf32>,
      %c0_67 = arith.constant 0 : index
      %c0_68 = arith.constant 0 : index
      %150 = vector.load %arg11[%c0_67, %c0_68] : memref<1x32xf32, #tpu.memory_space<vmem>>, vector<1x32xf32>
      tpu.vector_store %arg11[%c0_67, %c0_68], %146 {strides = array<i32>} : memref<1x32xf32, #tpu.memory_space<vmem>>, vector<1x32xf32>,
    } else {
    }
    %c11_i32 = arith.constant 11 : i32
    %64 = arith.cmpi sgt, %0, %c11_i32 : i32
    %65 = arith.extui %64 : i1 to i32
    %c0_i32_32 = arith.constant 0 : i32
    %66 = arith.cmpi ne, %65, %c0_i32_32 : i32
    scf.if %66 {
      %c11 = arith.constant 11 : index
      %c0_58 = arith.constant 0 : index
      %129 = vector.load %arg9[%c11, %c0_58] : memref<32x128xf32, #tpu.memory_space<vmem>>, vector<1x128xf32>
      %c0_59 = arith.constant 0 : index
      %c0_60 = arith.constant 0 : index
      %130 = vector.load %arg10[%c0_59, %c0_60] : memref<1x32xf32, #tpu.memory_space<vmem>>, vector<1x32xf32>
      %cst_61 = arith.constant dense<0.000000e+00> : vector<1x128xf32>
      %131 = tpu.matmul %130, %26, %cst_61 {dimension_numbers = #tpu.dot_dimension_numbers<[1], [0], [0], [1], [0, 0, 1, 1], [], []>} : vector<1x32xf32>, vector<32x128xf32>, vector<1x128xf32> -> vector<1x128xf32>
      %132 = arith.addf %129, %131 : vector<1x128xf32>
      %133 = arith.negf %132 : vector<1x128xf32>
      %134 = math.exp %133 : vector<1x128xf32>
      %cst_62 = arith.constant 1.000000e+00 : f32
      %135 = vector.broadcast %cst_62 : f32 to vector<1x128xf32>
      %136 = arith.addf %135, %134 : vector<1x128xf32>
      %137 = arith.divf %135, %136 : vector<1x128xf32>
      %138 = math.tanh %132 : vector<1x128xf32>
      %139 = vector.extract_strided_slice %137 {offsets = [0, 0], sizes = [1, 32], strides = [1, 1]} : vector<1x128xf32> to vector<1x32xf32>
      %140 = vector.extract_strided_slice %137 {offsets = [0, 32], sizes = [1, 32], strides = [1, 1]} : vector<1x128xf32> to vector<1x32xf32>
      %141 = vector.extract_strided_slice %138 {offsets = [0, 64], sizes = [1, 32], strides = [1, 1]} : vector<1x128xf32> to vector<1x32xf32>
      %142 = vector.extract_strided_slice %137 {offsets = [0, 96], sizes = [1, 32], strides = [1, 1]} : vector<1x128xf32> to vector<1x32xf32>
      %c0_63 = arith.constant 0 : index
      %c0_64 = arith.constant 0 : index
      %143 = vector.load %arg11[%c0_63, %c0_64] : memref<1x32xf32, #tpu.memory_space<vmem>>, vector<1x32xf32>
      %144 = arith.mulf %140, %143 : vector<1x32xf32>
      %145 = arith.mulf %139, %141 : vector<1x32xf32>
      %146 = arith.addf %144, %145 : vector<1x32xf32>
      %147 = math.tanh %146 : vector<1x32xf32>
      %148 = arith.mulf %142, %147 : vector<1x32xf32>
      %c0_65 = arith.constant 0 : index
      %c0_66 = arith.constant 0 : index
      %149 = vector.load %arg10[%c0_65, %c0_66] : memref<1x32xf32, #tpu.memory_space<vmem>>, vector<1x32xf32>
      tpu.vector_store %arg10[%c0_65, %c0_66], %148 {strides = array<i32>} : memref<1x32xf32, #tpu.memory_space<vmem>>, vector<1x32xf32>,
      %c0_67 = arith.constant 0 : index
      %c0_68 = arith.constant 0 : index
      %150 = vector.load %arg11[%c0_67, %c0_68] : memref<1x32xf32, #tpu.memory_space<vmem>>, vector<1x32xf32>
      tpu.vector_store %arg11[%c0_67, %c0_68], %146 {strides = array<i32>} : memref<1x32xf32, #tpu.memory_space<vmem>>, vector<1x32xf32>,
    } else {
    }
    %c12_i32 = arith.constant 12 : i32
    %67 = arith.cmpi sgt, %0, %c12_i32 : i32
    %68 = arith.extui %67 : i1 to i32
    %c0_i32_33 = arith.constant 0 : i32
    %69 = arith.cmpi ne, %68, %c0_i32_33 : i32
    scf.if %69 {
      %c12 = arith.constant 12 : index
      %c0_58 = arith.constant 0 : index
      %129 = vector.load %arg9[%c12, %c0_58] : memref<32x128xf32, #tpu.memory_space<vmem>>, vector<1x128xf32>
      %c0_59 = arith.constant 0 : index
      %c0_60 = arith.constant 0 : index
      %130 = vector.load %arg10[%c0_59, %c0_60] : memref<1x32xf32, #tpu.memory_space<vmem>>, vector<1x32xf32>
      %cst_61 = arith.constant dense<0.000000e+00> : vector<1x128xf32>
      %131 = tpu.matmul %130, %26, %cst_61 {dimension_numbers = #tpu.dot_dimension_numbers<[1], [0], [0], [1], [0, 0, 1, 1], [], []>} : vector<1x32xf32>, vector<32x128xf32>, vector<1x128xf32> -> vector<1x128xf32>
      %132 = arith.addf %129, %131 : vector<1x128xf32>
      %133 = arith.negf %132 : vector<1x128xf32>
      %134 = math.exp %133 : vector<1x128xf32>
      %cst_62 = arith.constant 1.000000e+00 : f32
      %135 = vector.broadcast %cst_62 : f32 to vector<1x128xf32>
      %136 = arith.addf %135, %134 : vector<1x128xf32>
      %137 = arith.divf %135, %136 : vector<1x128xf32>
      %138 = math.tanh %132 : vector<1x128xf32>
      %139 = vector.extract_strided_slice %137 {offsets = [0, 0], sizes = [1, 32], strides = [1, 1]} : vector<1x128xf32> to vector<1x32xf32>
      %140 = vector.extract_strided_slice %137 {offsets = [0, 32], sizes = [1, 32], strides = [1, 1]} : vector<1x128xf32> to vector<1x32xf32>
      %141 = vector.extract_strided_slice %138 {offsets = [0, 64], sizes = [1, 32], strides = [1, 1]} : vector<1x128xf32> to vector<1x32xf32>
      %142 = vector.extract_strided_slice %137 {offsets = [0, 96], sizes = [1, 32], strides = [1, 1]} : vector<1x128xf32> to vector<1x32xf32>
      %c0_63 = arith.constant 0 : index
      %c0_64 = arith.constant 0 : index
      %143 = vector.load %arg11[%c0_63, %c0_64] : memref<1x32xf32, #tpu.memory_space<vmem>>, vector<1x32xf32>
      %144 = arith.mulf %140, %143 : vector<1x32xf32>
      %145 = arith.mulf %139, %141 : vector<1x32xf32>
      %146 = arith.addf %144, %145 : vector<1x32xf32>
      %147 = math.tanh %146 : vector<1x32xf32>
      %148 = arith.mulf %142, %147 : vector<1x32xf32>
      %c0_65 = arith.constant 0 : index
      %c0_66 = arith.constant 0 : index
      %149 = vector.load %arg10[%c0_65, %c0_66] : memref<1x32xf32, #tpu.memory_space<vmem>>, vector<1x32xf32>
      tpu.vector_store %arg10[%c0_65, %c0_66], %148 {strides = array<i32>} : memref<1x32xf32, #tpu.memory_space<vmem>>, vector<1x32xf32>,
      %c0_67 = arith.constant 0 : index
      %c0_68 = arith.constant 0 : index
      %150 = vector.load %arg11[%c0_67, %c0_68] : memref<1x32xf32, #tpu.memory_space<vmem>>, vector<1x32xf32>
      tpu.vector_store %arg11[%c0_67, %c0_68], %146 {strides = array<i32>} : memref<1x32xf32, #tpu.memory_space<vmem>>, vector<1x32xf32>,
    } else {
    }
    %c13_i32 = arith.constant 13 : i32
    %70 = arith.cmpi sgt, %0, %c13_i32 : i32
    %71 = arith.extui %70 : i1 to i32
    %c0_i32_34 = arith.constant 0 : i32
    %72 = arith.cmpi ne, %71, %c0_i32_34 : i32
    scf.if %72 {
      %c13 = arith.constant 13 : index
      %c0_58 = arith.constant 0 : index
      %129 = vector.load %arg9[%c13, %c0_58] : memref<32x128xf32, #tpu.memory_space<vmem>>, vector<1x128xf32>
      %c0_59 = arith.constant 0 : index
      %c0_60 = arith.constant 0 : index
      %130 = vector.load %arg10[%c0_59, %c0_60] : memref<1x32xf32, #tpu.memory_space<vmem>>, vector<1x32xf32>
      %cst_61 = arith.constant dense<0.000000e+00> : vector<1x128xf32>
      %131 = tpu.matmul %130, %26, %cst_61 {dimension_numbers = #tpu.dot_dimension_numbers<[1], [0], [0], [1], [0, 0, 1, 1], [], []>} : vector<1x32xf32>, vector<32x128xf32>, vector<1x128xf32> -> vector<1x128xf32>
      %132 = arith.addf %129, %131 : vector<1x128xf32>
      %133 = arith.negf %132 : vector<1x128xf32>
      %134 = math.exp %133 : vector<1x128xf32>
      %cst_62 = arith.constant 1.000000e+00 : f32
      %135 = vector.broadcast %cst_62 : f32 to vector<1x128xf32>
      %136 = arith.addf %135, %134 : vector<1x128xf32>
      %137 = arith.divf %135, %136 : vector<1x128xf32>
      %138 = math.tanh %132 : vector<1x128xf32>
      %139 = vector.extract_strided_slice %137 {offsets = [0, 0], sizes = [1, 32], strides = [1, 1]} : vector<1x128xf32> to vector<1x32xf32>
      %140 = vector.extract_strided_slice %137 {offsets = [0, 32], sizes = [1, 32], strides = [1, 1]} : vector<1x128xf32> to vector<1x32xf32>
      %141 = vector.extract_strided_slice %138 {offsets = [0, 64], sizes = [1, 32], strides = [1, 1]} : vector<1x128xf32> to vector<1x32xf32>
      %142 = vector.extract_strided_slice %137 {offsets = [0, 96], sizes = [1, 32], strides = [1, 1]} : vector<1x128xf32> to vector<1x32xf32>
      %c0_63 = arith.constant 0 : index
      %c0_64 = arith.constant 0 : index
      %143 = vector.load %arg11[%c0_63, %c0_64] : memref<1x32xf32, #tpu.memory_space<vmem>>, vector<1x32xf32>
      %144 = arith.mulf %140, %143 : vector<1x32xf32>
      %145 = arith.mulf %139, %141 : vector<1x32xf32>
      %146 = arith.addf %144, %145 : vector<1x32xf32>
      %147 = math.tanh %146 : vector<1x32xf32>
      %148 = arith.mulf %142, %147 : vector<1x32xf32>
      %c0_65 = arith.constant 0 : index
      %c0_66 = arith.constant 0 : index
      %149 = vector.load %arg10[%c0_65, %c0_66] : memref<1x32xf32, #tpu.memory_space<vmem>>, vector<1x32xf32>
      tpu.vector_store %arg10[%c0_65, %c0_66], %148 {strides = array<i32>} : memref<1x32xf32, #tpu.memory_space<vmem>>, vector<1x32xf32>,
      %c0_67 = arith.constant 0 : index
      %c0_68 = arith.constant 0 : index
      %150 = vector.load %arg11[%c0_67, %c0_68] : memref<1x32xf32, #tpu.memory_space<vmem>>, vector<1x32xf32>
      tpu.vector_store %arg11[%c0_67, %c0_68], %146 {strides = array<i32>} : memref<1x32xf32, #tpu.memory_space<vmem>>, vector<1x32xf32>,
    } else {
    }
    %c14_i32 = arith.constant 14 : i32
    %73 = arith.cmpi sgt, %0, %c14_i32 : i32
    %74 = arith.extui %73 : i1 to i32
    %c0_i32_35 = arith.constant 0 : i32
    %75 = arith.cmpi ne, %74, %c0_i32_35 : i32
    scf.if %75 {
      %c14 = arith.constant 14 : index
      %c0_58 = arith.constant 0 : index
      %129 = vector.load %arg9[%c14, %c0_58] : memref<32x128xf32, #tpu.memory_space<vmem>>, vector<1x128xf32>
      %c0_59 = arith.constant 0 : index
      %c0_60 = arith.constant 0 : index
      %130 = vector.load %arg10[%c0_59, %c0_60] : memref<1x32xf32, #tpu.memory_space<vmem>>, vector<1x32xf32>
      %cst_61 = arith.constant dense<0.000000e+00> : vector<1x128xf32>
      %131 = tpu.matmul %130, %26, %cst_61 {dimension_numbers = #tpu.dot_dimension_numbers<[1], [0], [0], [1], [0, 0, 1, 1], [], []>} : vector<1x32xf32>, vector<32x128xf32>, vector<1x128xf32> -> vector<1x128xf32>
      %132 = arith.addf %129, %131 : vector<1x128xf32>
      %133 = arith.negf %132 : vector<1x128xf32>
      %134 = math.exp %133 : vector<1x128xf32>
      %cst_62 = arith.constant 1.000000e+00 : f32
      %135 = vector.broadcast %cst_62 : f32 to vector<1x128xf32>
      %136 = arith.addf %135, %134 : vector<1x128xf32>
      %137 = arith.divf %135, %136 : vector<1x128xf32>
      %138 = math.tanh %132 : vector<1x128xf32>
      %139 = vector.extract_strided_slice %137 {offsets = [0, 0], sizes = [1, 32], strides = [1, 1]} : vector<1x128xf32> to vector<1x32xf32>
      %140 = vector.extract_strided_slice %137 {offsets = [0, 32], sizes = [1, 32], strides = [1, 1]} : vector<1x128xf32> to vector<1x32xf32>
      %141 = vector.extract_strided_slice %138 {offsets = [0, 64], sizes = [1, 32], strides = [1, 1]} : vector<1x128xf32> to vector<1x32xf32>
      %142 = vector.extract_strided_slice %137 {offsets = [0, 96], sizes = [1, 32], strides = [1, 1]} : vector<1x128xf32> to vector<1x32xf32>
      %c0_63 = arith.constant 0 : index
      %c0_64 = arith.constant 0 : index
      %143 = vector.load %arg11[%c0_63, %c0_64] : memref<1x32xf32, #tpu.memory_space<vmem>>, vector<1x32xf32>
      %144 = arith.mulf %140, %143 : vector<1x32xf32>
      %145 = arith.mulf %139, %141 : vector<1x32xf32>
      %146 = arith.addf %144, %145 : vector<1x32xf32>
      %147 = math.tanh %146 : vector<1x32xf32>
      %148 = arith.mulf %142, %147 : vector<1x32xf32>
      %c0_65 = arith.constant 0 : index
      %c0_66 = arith.constant 0 : index
      %149 = vector.load %arg10[%c0_65, %c0_66] : memref<1x32xf32, #tpu.memory_space<vmem>>, vector<1x32xf32>
      tpu.vector_store %arg10[%c0_65, %c0_66], %148 {strides = array<i32>} : memref<1x32xf32, #tpu.memory_space<vmem>>, vector<1x32xf32>,
      %c0_67 = arith.constant 0 : index
      %c0_68 = arith.constant 0 : index
      %150 = vector.load %arg11[%c0_67, %c0_68] : memref<1x32xf32, #tpu.memory_space<vmem>>, vector<1x32xf32>
      tpu.vector_store %arg11[%c0_67, %c0_68], %146 {strides = array<i32>} : memref<1x32xf32, #tpu.memory_space<vmem>>, vector<1x32xf32>,
    } else {
    }
    %c15_i32 = arith.constant 15 : i32
    %76 = arith.cmpi sgt, %0, %c15_i32 : i32
    %77 = arith.extui %76 : i1 to i32
    %c0_i32_36 = arith.constant 0 : i32
    %78 = arith.cmpi ne, %77, %c0_i32_36 : i32
    scf.if %78 {
      %c15 = arith.constant 15 : index
      %c0_58 = arith.constant 0 : index
      %129 = vector.load %arg9[%c15, %c0_58] : memref<32x128xf32, #tpu.memory_space<vmem>>, vector<1x128xf32>
      %c0_59 = arith.constant 0 : index
      %c0_60 = arith.constant 0 : index
      %130 = vector.load %arg10[%c0_59, %c0_60] : memref<1x32xf32, #tpu.memory_space<vmem>>, vector<1x32xf32>
      %cst_61 = arith.constant dense<0.000000e+00> : vector<1x128xf32>
      %131 = tpu.matmul %130, %26, %cst_61 {dimension_numbers = #tpu.dot_dimension_numbers<[1], [0], [0], [1], [0, 0, 1, 1], [], []>} : vector<1x32xf32>, vector<32x128xf32>, vector<1x128xf32> -> vector<1x128xf32>
      %132 = arith.addf %129, %131 : vector<1x128xf32>
      %133 = arith.negf %132 : vector<1x128xf32>
      %134 = math.exp %133 : vector<1x128xf32>
      %cst_62 = arith.constant 1.000000e+00 : f32
      %135 = vector.broadcast %cst_62 : f32 to vector<1x128xf32>
      %136 = arith.addf %135, %134 : vector<1x128xf32>
      %137 = arith.divf %135, %136 : vector<1x128xf32>
      %138 = math.tanh %132 : vector<1x128xf32>
      %139 = vector.extract_strided_slice %137 {offsets = [0, 0], sizes = [1, 32], strides = [1, 1]} : vector<1x128xf32> to vector<1x32xf32>
      %140 = vector.extract_strided_slice %137 {offsets = [0, 32], sizes = [1, 32], strides = [1, 1]} : vector<1x128xf32> to vector<1x32xf32>
      %141 = vector.extract_strided_slice %138 {offsets = [0, 64], sizes = [1, 32], strides = [1, 1]} : vector<1x128xf32> to vector<1x32xf32>
      %142 = vector.extract_strided_slice %137 {offsets = [0, 96], sizes = [1, 32], strides = [1, 1]} : vector<1x128xf32> to vector<1x32xf32>
      %c0_63 = arith.constant 0 : index
      %c0_64 = arith.constant 0 : index
      %143 = vector.load %arg11[%c0_63, %c0_64] : memref<1x32xf32, #tpu.memory_space<vmem>>, vector<1x32xf32>
      %144 = arith.mulf %140, %143 : vector<1x32xf32>
      %145 = arith.mulf %139, %141 : vector<1x32xf32>
      %146 = arith.addf %144, %145 : vector<1x32xf32>
      %147 = math.tanh %146 : vector<1x32xf32>
      %148 = arith.mulf %142, %147 : vector<1x32xf32>
      %c0_65 = arith.constant 0 : index
      %c0_66 = arith.constant 0 : index
      %149 = vector.load %arg10[%c0_65, %c0_66] : memref<1x32xf32, #tpu.memory_space<vmem>>, vector<1x32xf32>
      tpu.vector_store %arg10[%c0_65, %c0_66], %148 {strides = array<i32>} : memref<1x32xf32, #tpu.memory_space<vmem>>, vector<1x32xf32>,
      %c0_67 = arith.constant 0 : index
      %c0_68 = arith.constant 0 : index
      %150 = vector.load %arg11[%c0_67, %c0_68] : memref<1x32xf32, #tpu.memory_space<vmem>>, vector<1x32xf32>
      tpu.vector_store %arg11[%c0_67, %c0_68], %146 {strides = array<i32>} : memref<1x32xf32, #tpu.memory_space<vmem>>, vector<1x32xf32>,
    } else {
    }
    %c16_i32 = arith.constant 16 : i32
    %79 = arith.cmpi sgt, %0, %c16_i32 : i32
    %80 = arith.extui %79 : i1 to i32
    %c0_i32_37 = arith.constant 0 : i32
    %81 = arith.cmpi ne, %80, %c0_i32_37 : i32
    scf.if %81 {
      %c16 = arith.constant 16 : index
      %c0_58 = arith.constant 0 : index
      %129 = vector.load %arg9[%c16, %c0_58] : memref<32x128xf32, #tpu.memory_space<vmem>>, vector<1x128xf32>
      %c0_59 = arith.constant 0 : index
      %c0_60 = arith.constant 0 : index
      %130 = vector.load %arg10[%c0_59, %c0_60] : memref<1x32xf32, #tpu.memory_space<vmem>>, vector<1x32xf32>
      %cst_61 = arith.constant dense<0.000000e+00> : vector<1x128xf32>
      %131 = tpu.matmul %130, %26, %cst_61 {dimension_numbers = #tpu.dot_dimension_numbers<[1], [0], [0], [1], [0, 0, 1, 1], [], []>} : vector<1x32xf32>, vector<32x128xf32>, vector<1x128xf32> -> vector<1x128xf32>
      %132 = arith.addf %129, %131 : vector<1x128xf32>
      %133 = arith.negf %132 : vector<1x128xf32>
      %134 = math.exp %133 : vector<1x128xf32>
      %cst_62 = arith.constant 1.000000e+00 : f32
      %135 = vector.broadcast %cst_62 : f32 to vector<1x128xf32>
      %136 = arith.addf %135, %134 : vector<1x128xf32>
      %137 = arith.divf %135, %136 : vector<1x128xf32>
      %138 = math.tanh %132 : vector<1x128xf32>
      %139 = vector.extract_strided_slice %137 {offsets = [0, 0], sizes = [1, 32], strides = [1, 1]} : vector<1x128xf32> to vector<1x32xf32>
      %140 = vector.extract_strided_slice %137 {offsets = [0, 32], sizes = [1, 32], strides = [1, 1]} : vector<1x128xf32> to vector<1x32xf32>
      %141 = vector.extract_strided_slice %138 {offsets = [0, 64], sizes = [1, 32], strides = [1, 1]} : vector<1x128xf32> to vector<1x32xf32>
      %142 = vector.extract_strided_slice %137 {offsets = [0, 96], sizes = [1, 32], strides = [1, 1]} : vector<1x128xf32> to vector<1x32xf32>
      %c0_63 = arith.constant 0 : index
      %c0_64 = arith.constant 0 : index
      %143 = vector.load %arg11[%c0_63, %c0_64] : memref<1x32xf32, #tpu.memory_space<vmem>>, vector<1x32xf32>
      %144 = arith.mulf %140, %143 : vector<1x32xf32>
      %145 = arith.mulf %139, %141 : vector<1x32xf32>
      %146 = arith.addf %144, %145 : vector<1x32xf32>
      %147 = math.tanh %146 : vector<1x32xf32>
      %148 = arith.mulf %142, %147 : vector<1x32xf32>
      %c0_65 = arith.constant 0 : index
      %c0_66 = arith.constant 0 : index
      %149 = vector.load %arg10[%c0_65, %c0_66] : memref<1x32xf32, #tpu.memory_space<vmem>>, vector<1x32xf32>
      tpu.vector_store %arg10[%c0_65, %c0_66], %148 {strides = array<i32>} : memref<1x32xf32, #tpu.memory_space<vmem>>, vector<1x32xf32>,
      %c0_67 = arith.constant 0 : index
      %c0_68 = arith.constant 0 : index
      %150 = vector.load %arg11[%c0_67, %c0_68] : memref<1x32xf32, #tpu.memory_space<vmem>>, vector<1x32xf32>
      tpu.vector_store %arg11[%c0_67, %c0_68], %146 {strides = array<i32>} : memref<1x32xf32, #tpu.memory_space<vmem>>, vector<1x32xf32>,
    } else {
    }
    %c17_i32 = arith.constant 17 : i32
    %82 = arith.cmpi sgt, %0, %c17_i32 : i32
    %83 = arith.extui %82 : i1 to i32
    %c0_i32_38 = arith.constant 0 : i32
    %84 = arith.cmpi ne, %83, %c0_i32_38 : i32
    scf.if %84 {
      %c17 = arith.constant 17 : index
      %c0_58 = arith.constant 0 : index
      %129 = vector.load %arg9[%c17, %c0_58] : memref<32x128xf32, #tpu.memory_space<vmem>>, vector<1x128xf32>
      %c0_59 = arith.constant 0 : index
      %c0_60 = arith.constant 0 : index
      %130 = vector.load %arg10[%c0_59, %c0_60] : memref<1x32xf32, #tpu.memory_space<vmem>>, vector<1x32xf32>
      %cst_61 = arith.constant dense<0.000000e+00> : vector<1x128xf32>
      %131 = tpu.matmul %130, %26, %cst_61 {dimension_numbers = #tpu.dot_dimension_numbers<[1], [0], [0], [1], [0, 0, 1, 1], [], []>} : vector<1x32xf32>, vector<32x128xf32>, vector<1x128xf32> -> vector<1x128xf32>
      %132 = arith.addf %129, %131 : vector<1x128xf32>
      %133 = arith.negf %132 : vector<1x128xf32>
      %134 = math.exp %133 : vector<1x128xf32>
      %cst_62 = arith.constant 1.000000e+00 : f32
      %135 = vector.broadcast %cst_62 : f32 to vector<1x128xf32>
      %136 = arith.addf %135, %134 : vector<1x128xf32>
      %137 = arith.divf %135, %136 : vector<1x128xf32>
      %138 = math.tanh %132 : vector<1x128xf32>
      %139 = vector.extract_strided_slice %137 {offsets = [0, 0], sizes = [1, 32], strides = [1, 1]} : vector<1x128xf32> to vector<1x32xf32>
      %140 = vector.extract_strided_slice %137 {offsets = [0, 32], sizes = [1, 32], strides = [1, 1]} : vector<1x128xf32> to vector<1x32xf32>
      %141 = vector.extract_strided_slice %138 {offsets = [0, 64], sizes = [1, 32], strides = [1, 1]} : vector<1x128xf32> to vector<1x32xf32>
      %142 = vector.extract_strided_slice %137 {offsets = [0, 96], sizes = [1, 32], strides = [1, 1]} : vector<1x128xf32> to vector<1x32xf32>
      %c0_63 = arith.constant 0 : index
      %c0_64 = arith.constant 0 : index
      %143 = vector.load %arg11[%c0_63, %c0_64] : memref<1x32xf32, #tpu.memory_space<vmem>>, vector<1x32xf32>
      %144 = arith.mulf %140, %143 : vector<1x32xf32>
      %145 = arith.mulf %139, %141 : vector<1x32xf32>
      %146 = arith.addf %144, %145 : vector<1x32xf32>
      %147 = math.tanh %146 : vector<1x32xf32>
      %148 = arith.mulf %142, %147 : vector<1x32xf32>
      %c0_65 = arith.constant 0 : index
      %c0_66 = arith.constant 0 : index
      %149 = vector.load %arg10[%c0_65, %c0_66] : memref<1x32xf32, #tpu.memory_space<vmem>>, vector<1x32xf32>
      tpu.vector_store %arg10[%c0_65, %c0_66], %148 {strides = array<i32>} : memref<1x32xf32, #tpu.memory_space<vmem>>, vector<1x32xf32>,
      %c0_67 = arith.constant 0 : index
      %c0_68 = arith.constant 0 : index
      %150 = vector.load %arg11[%c0_67, %c0_68] : memref<1x32xf32, #tpu.memory_space<vmem>>, vector<1x32xf32>
      tpu.vector_store %arg11[%c0_67, %c0_68], %146 {strides = array<i32>} : memref<1x32xf32, #tpu.memory_space<vmem>>, vector<1x32xf32>,
    } else {
    }
    %c18_i32 = arith.constant 18 : i32
    %85 = arith.cmpi sgt, %0, %c18_i32 : i32
    %86 = arith.extui %85 : i1 to i32
    %c0_i32_39 = arith.constant 0 : i32
    %87 = arith.cmpi ne, %86, %c0_i32_39 : i32
    scf.if %87 {
      %c18 = arith.constant 18 : index
      %c0_58 = arith.constant 0 : index
      %129 = vector.load %arg9[%c18, %c0_58] : memref<32x128xf32, #tpu.memory_space<vmem>>, vector<1x128xf32>
      %c0_59 = arith.constant 0 : index
      %c0_60 = arith.constant 0 : index
      %130 = vector.load %arg10[%c0_59, %c0_60] : memref<1x32xf32, #tpu.memory_space<vmem>>, vector<1x32xf32>
      %cst_61 = arith.constant dense<0.000000e+00> : vector<1x128xf32>
      %131 = tpu.matmul %130, %26, %cst_61 {dimension_numbers = #tpu.dot_dimension_numbers<[1], [0], [0], [1], [0, 0, 1, 1], [], []>} : vector<1x32xf32>, vector<32x128xf32>, vector<1x128xf32> -> vector<1x128xf32>
      %132 = arith.addf %129, %131 : vector<1x128xf32>
      %133 = arith.negf %132 : vector<1x128xf32>
      %134 = math.exp %133 : vector<1x128xf32>
      %cst_62 = arith.constant 1.000000e+00 : f32
      %135 = vector.broadcast %cst_62 : f32 to vector<1x128xf32>
      %136 = arith.addf %135, %134 : vector<1x128xf32>
      %137 = arith.divf %135, %136 : vector<1x128xf32>
      %138 = math.tanh %132 : vector<1x128xf32>
      %139 = vector.extract_strided_slice %137 {offsets = [0, 0], sizes = [1, 32], strides = [1, 1]} : vector<1x128xf32> to vector<1x32xf32>
      %140 = vector.extract_strided_slice %137 {offsets = [0, 32], sizes = [1, 32], strides = [1, 1]} : vector<1x128xf32> to vector<1x32xf32>
      %141 = vector.extract_strided_slice %138 {offsets = [0, 64], sizes = [1, 32], strides = [1, 1]} : vector<1x128xf32> to vector<1x32xf32>
      %142 = vector.extract_strided_slice %137 {offsets = [0, 96], sizes = [1, 32], strides = [1, 1]} : vector<1x128xf32> to vector<1x32xf32>
      %c0_63 = arith.constant 0 : index
      %c0_64 = arith.constant 0 : index
      %143 = vector.load %arg11[%c0_63, %c0_64] : memref<1x32xf32, #tpu.memory_space<vmem>>, vector<1x32xf32>
      %144 = arith.mulf %140, %143 : vector<1x32xf32>
      %145 = arith.mulf %139, %141 : vector<1x32xf32>
      %146 = arith.addf %144, %145 : vector<1x32xf32>
      %147 = math.tanh %146 : vector<1x32xf32>
      %148 = arith.mulf %142, %147 : vector<1x32xf32>
      %c0_65 = arith.constant 0 : index
      %c0_66 = arith.constant 0 : index
      %149 = vector.load %arg10[%c0_65, %c0_66] : memref<1x32xf32, #tpu.memory_space<vmem>>, vector<1x32xf32>
      tpu.vector_store %arg10[%c0_65, %c0_66], %148 {strides = array<i32>} : memref<1x32xf32, #tpu.memory_space<vmem>>, vector<1x32xf32>,
      %c0_67 = arith.constant 0 : index
      %c0_68 = arith.constant 0 : index
      %150 = vector.load %arg11[%c0_67, %c0_68] : memref<1x32xf32, #tpu.memory_space<vmem>>, vector<1x32xf32>
      tpu.vector_store %arg11[%c0_67, %c0_68], %146 {strides = array<i32>} : memref<1x32xf32, #tpu.memory_space<vmem>>, vector<1x32xf32>,
    } else {
    }
    %c19_i32 = arith.constant 19 : i32
    %88 = arith.cmpi sgt, %0, %c19_i32 : i32
    %89 = arith.extui %88 : i1 to i32
    %c0_i32_40 = arith.constant 0 : i32
    %90 = arith.cmpi ne, %89, %c0_i32_40 : i32
    scf.if %90 {
      %c19 = arith.constant 19 : index
      %c0_58 = arith.constant 0 : index
      %129 = vector.load %arg9[%c19, %c0_58] : memref<32x128xf32, #tpu.memory_space<vmem>>, vector<1x128xf32>
      %c0_59 = arith.constant 0 : index
      %c0_60 = arith.constant 0 : index
      %130 = vector.load %arg10[%c0_59, %c0_60] : memref<1x32xf32, #tpu.memory_space<vmem>>, vector<1x32xf32>
      %cst_61 = arith.constant dense<0.000000e+00> : vector<1x128xf32>
      %131 = tpu.matmul %130, %26, %cst_61 {dimension_numbers = #tpu.dot_dimension_numbers<[1], [0], [0], [1], [0, 0, 1, 1], [], []>} : vector<1x32xf32>, vector<32x128xf32>, vector<1x128xf32> -> vector<1x128xf32>
      %132 = arith.addf %129, %131 : vector<1x128xf32>
      %133 = arith.negf %132 : vector<1x128xf32>
      %134 = math.exp %133 : vector<1x128xf32>
      %cst_62 = arith.constant 1.000000e+00 : f32
      %135 = vector.broadcast %cst_62 : f32 to vector<1x128xf32>
      %136 = arith.addf %135, %134 : vector<1x128xf32>
      %137 = arith.divf %135, %136 : vector<1x128xf32>
      %138 = math.tanh %132 : vector<1x128xf32>
      %139 = vector.extract_strided_slice %137 {offsets = [0, 0], sizes = [1, 32], strides = [1, 1]} : vector<1x128xf32> to vector<1x32xf32>
      %140 = vector.extract_strided_slice %137 {offsets = [0, 32], sizes = [1, 32], strides = [1, 1]} : vector<1x128xf32> to vector<1x32xf32>
      %141 = vector.extract_strided_slice %138 {offsets = [0, 64], sizes = [1, 32], strides = [1, 1]} : vector<1x128xf32> to vector<1x32xf32>
      %142 = vector.extract_strided_slice %137 {offsets = [0, 96], sizes = [1, 32], strides = [1, 1]} : vector<1x128xf32> to vector<1x32xf32>
      %c0_63 = arith.constant 0 : index
      %c0_64 = arith.constant 0 : index
      %143 = vector.load %arg11[%c0_63, %c0_64] : memref<1x32xf32, #tpu.memory_space<vmem>>, vector<1x32xf32>
      %144 = arith.mulf %140, %143 : vector<1x32xf32>
      %145 = arith.mulf %139, %141 : vector<1x32xf32>
      %146 = arith.addf %144, %145 : vector<1x32xf32>
      %147 = math.tanh %146 : vector<1x32xf32>
      %148 = arith.mulf %142, %147 : vector<1x32xf32>
      %c0_65 = arith.constant 0 : index
      %c0_66 = arith.constant 0 : index
      %149 = vector.load %arg10[%c0_65, %c0_66] : memref<1x32xf32, #tpu.memory_space<vmem>>, vector<1x32xf32>
      tpu.vector_store %arg10[%c0_65, %c0_66], %148 {strides = array<i32>} : memref<1x32xf32, #tpu.memory_space<vmem>>, vector<1x32xf32>,
      %c0_67 = arith.constant 0 : index
      %c0_68 = arith.constant 0 : index
      %150 = vector.load %arg11[%c0_67, %c0_68] : memref<1x32xf32, #tpu.memory_space<vmem>>, vector<1x32xf32>
      tpu.vector_store %arg11[%c0_67, %c0_68], %146 {strides = array<i32>} : memref<1x32xf32, #tpu.memory_space<vmem>>, vector<1x32xf32>,
    } else {
    }
    %c20_i32_41 = arith.constant 20 : i32
    %91 = arith.cmpi sgt, %0, %c20_i32_41 : i32
    %92 = arith.extui %91 : i1 to i32
    %c0_i32_42 = arith.constant 0 : i32
    %93 = arith.cmpi ne, %92, %c0_i32_42 : i32
    scf.if %93 {
      %c20 = arith.constant 20 : index
      %c0_58 = arith.constant 0 : index
      %129 = vector.load %arg9[%c20, %c0_58] : memref<32x128xf32, #tpu.memory_space<vmem>>, vector<1x128xf32>
      %c0_59 = arith.constant 0 : index
      %c0_60 = arith.constant 0 : index
      %130 = vector.load %arg10[%c0_59, %c0_60] : memref<1x32xf32, #tpu.memory_space<vmem>>, vector<1x32xf32>
      %cst_61 = arith.constant dense<0.000000e+00> : vector<1x128xf32>
      %131 = tpu.matmul %130, %26, %cst_61 {dimension_numbers = #tpu.dot_dimension_numbers<[1], [0], [0], [1], [0, 0, 1, 1], [], []>} : vector<1x32xf32>, vector<32x128xf32>, vector<1x128xf32> -> vector<1x128xf32>
      %132 = arith.addf %129, %131 : vector<1x128xf32>
      %133 = arith.negf %132 : vector<1x128xf32>
      %134 = math.exp %133 : vector<1x128xf32>
      %cst_62 = arith.constant 1.000000e+00 : f32
      %135 = vector.broadcast %cst_62 : f32 to vector<1x128xf32>
      %136 = arith.addf %135, %134 : vector<1x128xf32>
      %137 = arith.divf %135, %136 : vector<1x128xf32>
      %138 = math.tanh %132 : vector<1x128xf32>
      %139 = vector.extract_strided_slice %137 {offsets = [0, 0], sizes = [1, 32], strides = [1, 1]} : vector<1x128xf32> to vector<1x32xf32>
      %140 = vector.extract_strided_slice %137 {offsets = [0, 32], sizes = [1, 32], strides = [1, 1]} : vector<1x128xf32> to vector<1x32xf32>
      %141 = vector.extract_strided_slice %138 {offsets = [0, 64], sizes = [1, 32], strides = [1, 1]} : vector<1x128xf32> to vector<1x32xf32>
      %142 = vector.extract_strided_slice %137 {offsets = [0, 96], sizes = [1, 32], strides = [1, 1]} : vector<1x128xf32> to vector<1x32xf32>
      %c0_63 = arith.constant 0 : index
      %c0_64 = arith.constant 0 : index
      %143 = vector.load %arg11[%c0_63, %c0_64] : memref<1x32xf32, #tpu.memory_space<vmem>>, vector<1x32xf32>
      %144 = arith.mulf %140, %143 : vector<1x32xf32>
      %145 = arith.mulf %139, %141 : vector<1x32xf32>
      %146 = arith.addf %144, %145 : vector<1x32xf32>
      %147 = math.tanh %146 : vector<1x32xf32>
      %148 = arith.mulf %142, %147 : vector<1x32xf32>
      %c0_65 = arith.constant 0 : index
      %c0_66 = arith.constant 0 : index
      %149 = vector.load %arg10[%c0_65, %c0_66] : memref<1x32xf32, #tpu.memory_space<vmem>>, vector<1x32xf32>
      tpu.vector_store %arg10[%c0_65, %c0_66], %148 {strides = array<i32>} : memref<1x32xf32, #tpu.memory_space<vmem>>, vector<1x32xf32>,
      %c0_67 = arith.constant 0 : index
      %c0_68 = arith.constant 0 : index
      %150 = vector.load %arg11[%c0_67, %c0_68] : memref<1x32xf32, #tpu.memory_space<vmem>>, vector<1x32xf32>
      tpu.vector_store %arg11[%c0_67, %c0_68], %146 {strides = array<i32>} : memref<1x32xf32, #tpu.memory_space<vmem>>, vector<1x32xf32>,
    } else {
    }
    %c21_i32 = arith.constant 21 : i32
    %94 = arith.cmpi sgt, %0, %c21_i32 : i32
    %95 = arith.extui %94 : i1 to i32
    %c0_i32_43 = arith.constant 0 : i32
    %96 = arith.cmpi ne, %95, %c0_i32_43 : i32
    scf.if %96 {
      %c21 = arith.constant 21 : index
      %c0_58 = arith.constant 0 : index
      %129 = vector.load %arg9[%c21, %c0_58] : memref<32x128xf32, #tpu.memory_space<vmem>>, vector<1x128xf32>
      %c0_59 = arith.constant 0 : index
      %c0_60 = arith.constant 0 : index
      %130 = vector.load %arg10[%c0_59, %c0_60] : memref<1x32xf32, #tpu.memory_space<vmem>>, vector<1x32xf32>
      %cst_61 = arith.constant dense<0.000000e+00> : vector<1x128xf32>
      %131 = tpu.matmul %130, %26, %cst_61 {dimension_numbers = #tpu.dot_dimension_numbers<[1], [0], [0], [1], [0, 0, 1, 1], [], []>} : vector<1x32xf32>, vector<32x128xf32>, vector<1x128xf32> -> vector<1x128xf32>
      %132 = arith.addf %129, %131 : vector<1x128xf32>
      %133 = arith.negf %132 : vector<1x128xf32>
      %134 = math.exp %133 : vector<1x128xf32>
      %cst_62 = arith.constant 1.000000e+00 : f32
      %135 = vector.broadcast %cst_62 : f32 to vector<1x128xf32>
      %136 = arith.addf %135, %134 : vector<1x128xf32>
      %137 = arith.divf %135, %136 : vector<1x128xf32>
      %138 = math.tanh %132 : vector<1x128xf32>
      %139 = vector.extract_strided_slice %137 {offsets = [0, 0], sizes = [1, 32], strides = [1, 1]} : vector<1x128xf32> to vector<1x32xf32>
      %140 = vector.extract_strided_slice %137 {offsets = [0, 32], sizes = [1, 32], strides = [1, 1]} : vector<1x128xf32> to vector<1x32xf32>
      %141 = vector.extract_strided_slice %138 {offsets = [0, 64], sizes = [1, 32], strides = [1, 1]} : vector<1x128xf32> to vector<1x32xf32>
      %142 = vector.extract_strided_slice %137 {offsets = [0, 96], sizes = [1, 32], strides = [1, 1]} : vector<1x128xf32> to vector<1x32xf32>
      %c0_63 = arith.constant 0 : index
      %c0_64 = arith.constant 0 : index
      %143 = vector.load %arg11[%c0_63, %c0_64] : memref<1x32xf32, #tpu.memory_space<vmem>>, vector<1x32xf32>
      %144 = arith.mulf %140, %143 : vector<1x32xf32>
      %145 = arith.mulf %139, %141 : vector<1x32xf32>
      %146 = arith.addf %144, %145 : vector<1x32xf32>
      %147 = math.tanh %146 : vector<1x32xf32>
      %148 = arith.mulf %142, %147 : vector<1x32xf32>
      %c0_65 = arith.constant 0 : index
      %c0_66 = arith.constant 0 : index
      %149 = vector.load %arg10[%c0_65, %c0_66] : memref<1x32xf32, #tpu.memory_space<vmem>>, vector<1x32xf32>
      tpu.vector_store %arg10[%c0_65, %c0_66], %148 {strides = array<i32>} : memref<1x32xf32, #tpu.memory_space<vmem>>, vector<1x32xf32>,
      %c0_67 = arith.constant 0 : index
      %c0_68 = arith.constant 0 : index
      %150 = vector.load %arg11[%c0_67, %c0_68] : memref<1x32xf32, #tpu.memory_space<vmem>>, vector<1x32xf32>
      tpu.vector_store %arg11[%c0_67, %c0_68], %146 {strides = array<i32>} : memref<1x32xf32, #tpu.memory_space<vmem>>, vector<1x32xf32>,
    } else {
    }
    %c22_i32 = arith.constant 22 : i32
    %97 = arith.cmpi sgt, %0, %c22_i32 : i32
    %98 = arith.extui %97 : i1 to i32
    %c0_i32_44 = arith.constant 0 : i32
    %99 = arith.cmpi ne, %98, %c0_i32_44 : i32
    scf.if %99 {
      %c22 = arith.constant 22 : index
      %c0_58 = arith.constant 0 : index
      %129 = vector.load %arg9[%c22, %c0_58] : memref<32x128xf32, #tpu.memory_space<vmem>>, vector<1x128xf32>
      %c0_59 = arith.constant 0 : index
      %c0_60 = arith.constant 0 : index
      %130 = vector.load %arg10[%c0_59, %c0_60] : memref<1x32xf32, #tpu.memory_space<vmem>>, vector<1x32xf32>
      %cst_61 = arith.constant dense<0.000000e+00> : vector<1x128xf32>
      %131 = tpu.matmul %130, %26, %cst_61 {dimension_numbers = #tpu.dot_dimension_numbers<[1], [0], [0], [1], [0, 0, 1, 1], [], []>} : vector<1x32xf32>, vector<32x128xf32>, vector<1x128xf32> -> vector<1x128xf32>
      %132 = arith.addf %129, %131 : vector<1x128xf32>
      %133 = arith.negf %132 : vector<1x128xf32>
      %134 = math.exp %133 : vector<1x128xf32>
      %cst_62 = arith.constant 1.000000e+00 : f32
      %135 = vector.broadcast %cst_62 : f32 to vector<1x128xf32>
      %136 = arith.addf %135, %134 : vector<1x128xf32>
      %137 = arith.divf %135, %136 : vector<1x128xf32>
      %138 = math.tanh %132 : vector<1x128xf32>
      %139 = vector.extract_strided_slice %137 {offsets = [0, 0], sizes = [1, 32], strides = [1, 1]} : vector<1x128xf32> to vector<1x32xf32>
      %140 = vector.extract_strided_slice %137 {offsets = [0, 32], sizes = [1, 32], strides = [1, 1]} : vector<1x128xf32> to vector<1x32xf32>
      %141 = vector.extract_strided_slice %138 {offsets = [0, 64], sizes = [1, 32], strides = [1, 1]} : vector<1x128xf32> to vector<1x32xf32>
      %142 = vector.extract_strided_slice %137 {offsets = [0, 96], sizes = [1, 32], strides = [1, 1]} : vector<1x128xf32> to vector<1x32xf32>
      %c0_63 = arith.constant 0 : index
      %c0_64 = arith.constant 0 : index
      %143 = vector.load %arg11[%c0_63, %c0_64] : memref<1x32xf32, #tpu.memory_space<vmem>>, vector<1x32xf32>
      %144 = arith.mulf %140, %143 : vector<1x32xf32>
      %145 = arith.mulf %139, %141 : vector<1x32xf32>
      %146 = arith.addf %144, %145 : vector<1x32xf32>
      %147 = math.tanh %146 : vector<1x32xf32>
      %148 = arith.mulf %142, %147 : vector<1x32xf32>
      %c0_65 = arith.constant 0 : index
      %c0_66 = arith.constant 0 : index
      %149 = vector.load %arg10[%c0_65, %c0_66] : memref<1x32xf32, #tpu.memory_space<vmem>>, vector<1x32xf32>
      tpu.vector_store %arg10[%c0_65, %c0_66], %148 {strides = array<i32>} : memref<1x32xf32, #tpu.memory_space<vmem>>, vector<1x32xf32>,
      %c0_67 = arith.constant 0 : index
      %c0_68 = arith.constant 0 : index
      %150 = vector.load %arg11[%c0_67, %c0_68] : memref<1x32xf32, #tpu.memory_space<vmem>>, vector<1x32xf32>
      tpu.vector_store %arg11[%c0_67, %c0_68], %146 {strides = array<i32>} : memref<1x32xf32, #tpu.memory_space<vmem>>, vector<1x32xf32>,
    } else {
    }
    %c23_i32 = arith.constant 23 : i32
    %100 = arith.cmpi sgt, %0, %c23_i32 : i32
    %101 = arith.extui %100 : i1 to i32
    %c0_i32_45 = arith.constant 0 : i32
    %102 = arith.cmpi ne, %101, %c0_i32_45 : i32
    scf.if %102 {
      %c23 = arith.constant 23 : index
      %c0_58 = arith.constant 0 : index
      %129 = vector.load %arg9[%c23, %c0_58] : memref<32x128xf32, #tpu.memory_space<vmem>>, vector<1x128xf32>
      %c0_59 = arith.constant 0 : index
      %c0_60 = arith.constant 0 : index
      %130 = vector.load %arg10[%c0_59, %c0_60] : memref<1x32xf32, #tpu.memory_space<vmem>>, vector<1x32xf32>
      %cst_61 = arith.constant dense<0.000000e+00> : vector<1x128xf32>
      %131 = tpu.matmul %130, %26, %cst_61 {dimension_numbers = #tpu.dot_dimension_numbers<[1], [0], [0], [1], [0, 0, 1, 1], [], []>} : vector<1x32xf32>, vector<32x128xf32>, vector<1x128xf32> -> vector<1x128xf32>
      %132 = arith.addf %129, %131 : vector<1x128xf32>
      %133 = arith.negf %132 : vector<1x128xf32>
      %134 = math.exp %133 : vector<1x128xf32>
      %cst_62 = arith.constant 1.000000e+00 : f32
      %135 = vector.broadcast %cst_62 : f32 to vector<1x128xf32>
      %136 = arith.addf %135, %134 : vector<1x128xf32>
      %137 = arith.divf %135, %136 : vector<1x128xf32>
      %138 = math.tanh %132 : vector<1x128xf32>
      %139 = vector.extract_strided_slice %137 {offsets = [0, 0], sizes = [1, 32], strides = [1, 1]} : vector<1x128xf32> to vector<1x32xf32>
      %140 = vector.extract_strided_slice %137 {offsets = [0, 32], sizes = [1, 32], strides = [1, 1]} : vector<1x128xf32> to vector<1x32xf32>
      %141 = vector.extract_strided_slice %138 {offsets = [0, 64], sizes = [1, 32], strides = [1, 1]} : vector<1x128xf32> to vector<1x32xf32>
      %142 = vector.extract_strided_slice %137 {offsets = [0, 96], sizes = [1, 32], strides = [1, 1]} : vector<1x128xf32> to vector<1x32xf32>
      %c0_63 = arith.constant 0 : index
      %c0_64 = arith.constant 0 : index
      %143 = vector.load %arg11[%c0_63, %c0_64] : memref<1x32xf32, #tpu.memory_space<vmem>>, vector<1x32xf32>
      %144 = arith.mulf %140, %143 : vector<1x32xf32>
      %145 = arith.mulf %139, %141 : vector<1x32xf32>
      %146 = arith.addf %144, %145 : vector<1x32xf32>
      %147 = math.tanh %146 : vector<1x32xf32>
      %148 = arith.mulf %142, %147 : vector<1x32xf32>
      %c0_65 = arith.constant 0 : index
      %c0_66 = arith.constant 0 : index
      %149 = vector.load %arg10[%c0_65, %c0_66] : memref<1x32xf32, #tpu.memory_space<vmem>>, vector<1x32xf32>
      tpu.vector_store %arg10[%c0_65, %c0_66], %148 {strides = array<i32>} : memref<1x32xf32, #tpu.memory_space<vmem>>, vector<1x32xf32>,
      %c0_67 = arith.constant 0 : index
      %c0_68 = arith.constant 0 : index
      %150 = vector.load %arg11[%c0_67, %c0_68] : memref<1x32xf32, #tpu.memory_space<vmem>>, vector<1x32xf32>
      tpu.vector_store %arg11[%c0_67, %c0_68], %146 {strides = array<i32>} : memref<1x32xf32, #tpu.memory_space<vmem>>, vector<1x32xf32>,
    } else {
    }
    %c24_i32 = arith.constant 24 : i32
    %103 = arith.cmpi sgt, %0, %c24_i32 : i32
    %104 = arith.extui %103 : i1 to i32
    %c0_i32_46 = arith.constant 0 : i32
    %105 = arith.cmpi ne, %104, %c0_i32_46 : i32
    scf.if %105 {
      %c24 = arith.constant 24 : index
      %c0_58 = arith.constant 0 : index
      %129 = vector.load %arg9[%c24, %c0_58] : memref<32x128xf32, #tpu.memory_space<vmem>>, vector<1x128xf32>
      %c0_59 = arith.constant 0 : index
      %c0_60 = arith.constant 0 : index
      %130 = vector.load %arg10[%c0_59, %c0_60] : memref<1x32xf32, #tpu.memory_space<vmem>>, vector<1x32xf32>
      %cst_61 = arith.constant dense<0.000000e+00> : vector<1x128xf32>
      %131 = tpu.matmul %130, %26, %cst_61 {dimension_numbers = #tpu.dot_dimension_numbers<[1], [0], [0], [1], [0, 0, 1, 1], [], []>} : vector<1x32xf32>, vector<32x128xf32>, vector<1x128xf32> -> vector<1x128xf32>
      %132 = arith.addf %129, %131 : vector<1x128xf32>
      %133 = arith.negf %132 : vector<1x128xf32>
      %134 = math.exp %133 : vector<1x128xf32>
      %cst_62 = arith.constant 1.000000e+00 : f32
      %135 = vector.broadcast %cst_62 : f32 to vector<1x128xf32>
      %136 = arith.addf %135, %134 : vector<1x128xf32>
      %137 = arith.divf %135, %136 : vector<1x128xf32>
      %138 = math.tanh %132 : vector<1x128xf32>
      %139 = vector.extract_strided_slice %137 {offsets = [0, 0], sizes = [1, 32], strides = [1, 1]} : vector<1x128xf32> to vector<1x32xf32>
      %140 = vector.extract_strided_slice %137 {offsets = [0, 32], sizes = [1, 32], strides = [1, 1]} : vector<1x128xf32> to vector<1x32xf32>
      %141 = vector.extract_strided_slice %138 {offsets = [0, 64], sizes = [1, 32], strides = [1, 1]} : vector<1x128xf32> to vector<1x32xf32>
      %142 = vector.extract_strided_slice %137 {offsets = [0, 96], sizes = [1, 32], strides = [1, 1]} : vector<1x128xf32> to vector<1x32xf32>
      %c0_63 = arith.constant 0 : index
      %c0_64 = arith.constant 0 : index
      %143 = vector.load %arg11[%c0_63, %c0_64] : memref<1x32xf32, #tpu.memory_space<vmem>>, vector<1x32xf32>
      %144 = arith.mulf %140, %143 : vector<1x32xf32>
      %145 = arith.mulf %139, %141 : vector<1x32xf32>
      %146 = arith.addf %144, %145 : vector<1x32xf32>
      %147 = math.tanh %146 : vector<1x32xf32>
      %148 = arith.mulf %142, %147 : vector<1x32xf32>
      %c0_65 = arith.constant 0 : index
      %c0_66 = arith.constant 0 : index
      %149 = vector.load %arg10[%c0_65, %c0_66] : memref<1x32xf32, #tpu.memory_space<vmem>>, vector<1x32xf32>
      tpu.vector_store %arg10[%c0_65, %c0_66], %148 {strides = array<i32>} : memref<1x32xf32, #tpu.memory_space<vmem>>, vector<1x32xf32>,
      %c0_67 = arith.constant 0 : index
      %c0_68 = arith.constant 0 : index
      %150 = vector.load %arg11[%c0_67, %c0_68] : memref<1x32xf32, #tpu.memory_space<vmem>>, vector<1x32xf32>
      tpu.vector_store %arg11[%c0_67, %c0_68], %146 {strides = array<i32>} : memref<1x32xf32, #tpu.memory_space<vmem>>, vector<1x32xf32>,
    } else {
    }
    %c25_i32 = arith.constant 25 : i32
    %106 = arith.cmpi sgt, %0, %c25_i32 : i32
    %107 = arith.extui %106 : i1 to i32
    %c0_i32_47 = arith.constant 0 : i32
    %108 = arith.cmpi ne, %107, %c0_i32_47 : i32
    scf.if %108 {
      %c25 = arith.constant 25 : index
      %c0_58 = arith.constant 0 : index
      %129 = vector.load %arg9[%c25, %c0_58] : memref<32x128xf32, #tpu.memory_space<vmem>>, vector<1x128xf32>
      %c0_59 = arith.constant 0 : index
      %c0_60 = arith.constant 0 : index
      %130 = vector.load %arg10[%c0_59, %c0_60] : memref<1x32xf32, #tpu.memory_space<vmem>>, vector<1x32xf32>
      %cst_61 = arith.constant dense<0.000000e+00> : vector<1x128xf32>
      %131 = tpu.matmul %130, %26, %cst_61 {dimension_numbers = #tpu.dot_dimension_numbers<[1], [0], [0], [1], [0, 0, 1, 1], [], []>} : vector<1x32xf32>, vector<32x128xf32>, vector<1x128xf32> -> vector<1x128xf32>
      %132 = arith.addf %129, %131 : vector<1x128xf32>
      %133 = arith.negf %132 : vector<1x128xf32>
      %134 = math.exp %133 : vector<1x128xf32>
      %cst_62 = arith.constant 1.000000e+00 : f32
      %135 = vector.broadcast %cst_62 : f32 to vector<1x128xf32>
      %136 = arith.addf %135, %134 : vector<1x128xf32>
      %137 = arith.divf %135, %136 : vector<1x128xf32>
      %138 = math.tanh %132 : vector<1x128xf32>
      %139 = vector.extract_strided_slice %137 {offsets = [0, 0], sizes = [1, 32], strides = [1, 1]} : vector<1x128xf32> to vector<1x32xf32>
      %140 = vector.extract_strided_slice %137 {offsets = [0, 32], sizes = [1, 32], strides = [1, 1]} : vector<1x128xf32> to vector<1x32xf32>
      %141 = vector.extract_strided_slice %138 {offsets = [0, 64], sizes = [1, 32], strides = [1, 1]} : vector<1x128xf32> to vector<1x32xf32>
      %142 = vector.extract_strided_slice %137 {offsets = [0, 96], sizes = [1, 32], strides = [1, 1]} : vector<1x128xf32> to vector<1x32xf32>
      %c0_63 = arith.constant 0 : index
      %c0_64 = arith.constant 0 : index
      %143 = vector.load %arg11[%c0_63, %c0_64] : memref<1x32xf32, #tpu.memory_space<vmem>>, vector<1x32xf32>
      %144 = arith.mulf %140, %143 : vector<1x32xf32>
      %145 = arith.mulf %139, %141 : vector<1x32xf32>
      %146 = arith.addf %144, %145 : vector<1x32xf32>
      %147 = math.tanh %146 : vector<1x32xf32>
      %148 = arith.mulf %142, %147 : vector<1x32xf32>
      %c0_65 = arith.constant 0 : index
      %c0_66 = arith.constant 0 : index
      %149 = vector.load %arg10[%c0_65, %c0_66] : memref<1x32xf32, #tpu.memory_space<vmem>>, vector<1x32xf32>
      tpu.vector_store %arg10[%c0_65, %c0_66], %148 {strides = array<i32>} : memref<1x32xf32, #tpu.memory_space<vmem>>, vector<1x32xf32>,
      %c0_67 = arith.constant 0 : index
      %c0_68 = arith.constant 0 : index
      %150 = vector.load %arg11[%c0_67, %c0_68] : memref<1x32xf32, #tpu.memory_space<vmem>>, vector<1x32xf32>
      tpu.vector_store %arg11[%c0_67, %c0_68], %146 {strides = array<i32>} : memref<1x32xf32, #tpu.memory_space<vmem>>, vector<1x32xf32>,
    } else {
    }
    %c26_i32 = arith.constant 26 : i32
    %109 = arith.cmpi sgt, %0, %c26_i32 : i32
    %110 = arith.extui %109 : i1 to i32
    %c0_i32_48 = arith.constant 0 : i32
    %111 = arith.cmpi ne, %110, %c0_i32_48 : i32
    scf.if %111 {
      %c26 = arith.constant 26 : index
      %c0_58 = arith.constant 0 : index
      %129 = vector.load %arg9[%c26, %c0_58] : memref<32x128xf32, #tpu.memory_space<vmem>>, vector<1x128xf32>
      %c0_59 = arith.constant 0 : index
      %c0_60 = arith.constant 0 : index
      %130 = vector.load %arg10[%c0_59, %c0_60] : memref<1x32xf32, #tpu.memory_space<vmem>>, vector<1x32xf32>
      %cst_61 = arith.constant dense<0.000000e+00> : vector<1x128xf32>
      %131 = tpu.matmul %130, %26, %cst_61 {dimension_numbers = #tpu.dot_dimension_numbers<[1], [0], [0], [1], [0, 0, 1, 1], [], []>} : vector<1x32xf32>, vector<32x128xf32>, vector<1x128xf32> -> vector<1x128xf32>
      %132 = arith.addf %129, %131 : vector<1x128xf32>
      %133 = arith.negf %132 : vector<1x128xf32>
      %134 = math.exp %133 : vector<1x128xf32>
      %cst_62 = arith.constant 1.000000e+00 : f32
      %135 = vector.broadcast %cst_62 : f32 to vector<1x128xf32>
      %136 = arith.addf %135, %134 : vector<1x128xf32>
      %137 = arith.divf %135, %136 : vector<1x128xf32>
      %138 = math.tanh %132 : vector<1x128xf32>
      %139 = vector.extract_strided_slice %137 {offsets = [0, 0], sizes = [1, 32], strides = [1, 1]} : vector<1x128xf32> to vector<1x32xf32>
      %140 = vector.extract_strided_slice %137 {offsets = [0, 32], sizes = [1, 32], strides = [1, 1]} : vector<1x128xf32> to vector<1x32xf32>
      %141 = vector.extract_strided_slice %138 {offsets = [0, 64], sizes = [1, 32], strides = [1, 1]} : vector<1x128xf32> to vector<1x32xf32>
      %142 = vector.extract_strided_slice %137 {offsets = [0, 96], sizes = [1, 32], strides = [1, 1]} : vector<1x128xf32> to vector<1x32xf32>
      %c0_63 = arith.constant 0 : index
      %c0_64 = arith.constant 0 : index
      %143 = vector.load %arg11[%c0_63, %c0_64] : memref<1x32xf32, #tpu.memory_space<vmem>>, vector<1x32xf32>
      %144 = arith.mulf %140, %143 : vector<1x32xf32>
      %145 = arith.mulf %139, %141 : vector<1x32xf32>
      %146 = arith.addf %144, %145 : vector<1x32xf32>
      %147 = math.tanh %146 : vector<1x32xf32>
      %148 = arith.mulf %142, %147 : vector<1x32xf32>
      %c0_65 = arith.constant 0 : index
      %c0_66 = arith.constant 0 : index
      %149 = vector.load %arg10[%c0_65, %c0_66] : memref<1x32xf32, #tpu.memory_space<vmem>>, vector<1x32xf32>
      tpu.vector_store %arg10[%c0_65, %c0_66], %148 {strides = array<i32>} : memref<1x32xf32, #tpu.memory_space<vmem>>, vector<1x32xf32>,
      %c0_67 = arith.constant 0 : index
      %c0_68 = arith.constant 0 : index
      %150 = vector.load %arg11[%c0_67, %c0_68] : memref<1x32xf32, #tpu.memory_space<vmem>>, vector<1x32xf32>
      tpu.vector_store %arg11[%c0_67, %c0_68], %146 {strides = array<i32>} : memref<1x32xf32, #tpu.memory_space<vmem>>, vector<1x32xf32>,
    } else {
    }
    %c27_i32 = arith.constant 27 : i32
    %112 = arith.cmpi sgt, %0, %c27_i32 : i32
    %113 = arith.extui %112 : i1 to i32
    %c0_i32_49 = arith.constant 0 : i32
    %114 = arith.cmpi ne, %113, %c0_i32_49 : i32
    scf.if %114 {
      %c27 = arith.constant 27 : index
      %c0_58 = arith.constant 0 : index
      %129 = vector.load %arg9[%c27, %c0_58] : memref<32x128xf32, #tpu.memory_space<vmem>>, vector<1x128xf32>
      %c0_59 = arith.constant 0 : index
      %c0_60 = arith.constant 0 : index
      %130 = vector.load %arg10[%c0_59, %c0_60] : memref<1x32xf32, #tpu.memory_space<vmem>>, vector<1x32xf32>
      %cst_61 = arith.constant dense<0.000000e+00> : vector<1x128xf32>
      %131 = tpu.matmul %130, %26, %cst_61 {dimension_numbers = #tpu.dot_dimension_numbers<[1], [0], [0], [1], [0, 0, 1, 1], [], []>} : vector<1x32xf32>, vector<32x128xf32>, vector<1x128xf32> -> vector<1x128xf32>
      %132 = arith.addf %129, %131 : vector<1x128xf32>
      %133 = arith.negf %132 : vector<1x128xf32>
      %134 = math.exp %133 : vector<1x128xf32>
      %cst_62 = arith.constant 1.000000e+00 : f32
      %135 = vector.broadcast %cst_62 : f32 to vector<1x128xf32>
      %136 = arith.addf %135, %134 : vector<1x128xf32>
      %137 = arith.divf %135, %136 : vector<1x128xf32>
      %138 = math.tanh %132 : vector<1x128xf32>
      %139 = vector.extract_strided_slice %137 {offsets = [0, 0], sizes = [1, 32], strides = [1, 1]} : vector<1x128xf32> to vector<1x32xf32>
      %140 = vector.extract_strided_slice %137 {offsets = [0, 32], sizes = [1, 32], strides = [1, 1]} : vector<1x128xf32> to vector<1x32xf32>
      %141 = vector.extract_strided_slice %138 {offsets = [0, 64], sizes = [1, 32], strides = [1, 1]} : vector<1x128xf32> to vector<1x32xf32>
      %142 = vector.extract_strided_slice %137 {offsets = [0, 96], sizes = [1, 32], strides = [1, 1]} : vector<1x128xf32> to vector<1x32xf32>
      %c0_63 = arith.constant 0 : index
      %c0_64 = arith.constant 0 : index
      %143 = vector.load %arg11[%c0_63, %c0_64] : memref<1x32xf32, #tpu.memory_space<vmem>>, vector<1x32xf32>
      %144 = arith.mulf %140, %143 : vector<1x32xf32>
      %145 = arith.mulf %139, %141 : vector<1x32xf32>
      %146 = arith.addf %144, %145 : vector<1x32xf32>
      %147 = math.tanh %146 : vector<1x32xf32>
      %148 = arith.mulf %142, %147 : vector<1x32xf32>
      %c0_65 = arith.constant 0 : index
      %c0_66 = arith.constant 0 : index
      %149 = vector.load %arg10[%c0_65, %c0_66] : memref<1x32xf32, #tpu.memory_space<vmem>>, vector<1x32xf32>
      tpu.vector_store %arg10[%c0_65, %c0_66], %148 {strides = array<i32>} : memref<1x32xf32, #tpu.memory_space<vmem>>, vector<1x32xf32>,
      %c0_67 = arith.constant 0 : index
      %c0_68 = arith.constant 0 : index
      %150 = vector.load %arg11[%c0_67, %c0_68] : memref<1x32xf32, #tpu.memory_space<vmem>>, vector<1x32xf32>
      tpu.vector_store %arg11[%c0_67, %c0_68], %146 {strides = array<i32>} : memref<1x32xf32, #tpu.memory_space<vmem>>, vector<1x32xf32>,
    } else {
    }
    %c28_i32 = arith.constant 28 : i32
    %115 = arith.cmpi sgt, %0, %c28_i32 : i32
    %116 = arith.extui %115 : i1 to i32
    %c0_i32_50 = arith.constant 0 : i32
    %117 = arith.cmpi ne, %116, %c0_i32_50 : i32
    scf.if %117 {
      %c28 = arith.constant 28 : index
      %c0_58 = arith.constant 0 : index
      %129 = vector.load %arg9[%c28, %c0_58] : memref<32x128xf32, #tpu.memory_space<vmem>>, vector<1x128xf32>
      %c0_59 = arith.constant 0 : index
      %c0_60 = arith.constant 0 : index
      %130 = vector.load %arg10[%c0_59, %c0_60] : memref<1x32xf32, #tpu.memory_space<vmem>>, vector<1x32xf32>
      %cst_61 = arith.constant dense<0.000000e+00> : vector<1x128xf32>
      %131 = tpu.matmul %130, %26, %cst_61 {dimension_numbers = #tpu.dot_dimension_numbers<[1], [0], [0], [1], [0, 0, 1, 1], [], []>} : vector<1x32xf32>, vector<32x128xf32>, vector<1x128xf32> -> vector<1x128xf32>
      %132 = arith.addf %129, %131 : vector<1x128xf32>
      %133 = arith.negf %132 : vector<1x128xf32>
      %134 = math.exp %133 : vector<1x128xf32>
      %cst_62 = arith.constant 1.000000e+00 : f32
      %135 = vector.broadcast %cst_62 : f32 to vector<1x128xf32>
      %136 = arith.addf %135, %134 : vector<1x128xf32>
      %137 = arith.divf %135, %136 : vector<1x128xf32>
      %138 = math.tanh %132 : vector<1x128xf32>
      %139 = vector.extract_strided_slice %137 {offsets = [0, 0], sizes = [1, 32], strides = [1, 1]} : vector<1x128xf32> to vector<1x32xf32>
      %140 = vector.extract_strided_slice %137 {offsets = [0, 32], sizes = [1, 32], strides = [1, 1]} : vector<1x128xf32> to vector<1x32xf32>
      %141 = vector.extract_strided_slice %138 {offsets = [0, 64], sizes = [1, 32], strides = [1, 1]} : vector<1x128xf32> to vector<1x32xf32>
      %142 = vector.extract_strided_slice %137 {offsets = [0, 96], sizes = [1, 32], strides = [1, 1]} : vector<1x128xf32> to vector<1x32xf32>
      %c0_63 = arith.constant 0 : index
      %c0_64 = arith.constant 0 : index
      %143 = vector.load %arg11[%c0_63, %c0_64] : memref<1x32xf32, #tpu.memory_space<vmem>>, vector<1x32xf32>
      %144 = arith.mulf %140, %143 : vector<1x32xf32>
      %145 = arith.mulf %139, %141 : vector<1x32xf32>
      %146 = arith.addf %144, %145 : vector<1x32xf32>
      %147 = math.tanh %146 : vector<1x32xf32>
      %148 = arith.mulf %142, %147 : vector<1x32xf32>
      %c0_65 = arith.constant 0 : index
      %c0_66 = arith.constant 0 : index
      %149 = vector.load %arg10[%c0_65, %c0_66] : memref<1x32xf32, #tpu.memory_space<vmem>>, vector<1x32xf32>
      tpu.vector_store %arg10[%c0_65, %c0_66], %148 {strides = array<i32>} : memref<1x32xf32, #tpu.memory_space<vmem>>, vector<1x32xf32>,
      %c0_67 = arith.constant 0 : index
      %c0_68 = arith.constant 0 : index
      %150 = vector.load %arg11[%c0_67, %c0_68] : memref<1x32xf32, #tpu.memory_space<vmem>>, vector<1x32xf32>
      tpu.vector_store %arg11[%c0_67, %c0_68], %146 {strides = array<i32>} : memref<1x32xf32, #tpu.memory_space<vmem>>, vector<1x32xf32>,
    } else {
    }
    %c29_i32 = arith.constant 29 : i32
    %118 = arith.cmpi sgt, %0, %c29_i32 : i32
    %119 = arith.extui %118 : i1 to i32
    %c0_i32_51 = arith.constant 0 : i32
    %120 = arith.cmpi ne, %119, %c0_i32_51 : i32
    scf.if %120 {
      %c29 = arith.constant 29 : index
      %c0_58 = arith.constant 0 : index
      %129 = vector.load %arg9[%c29, %c0_58] : memref<32x128xf32, #tpu.memory_space<vmem>>, vector<1x128xf32>
      %c0_59 = arith.constant 0 : index
      %c0_60 = arith.constant 0 : index
      %130 = vector.load %arg10[%c0_59, %c0_60] : memref<1x32xf32, #tpu.memory_space<vmem>>, vector<1x32xf32>
      %cst_61 = arith.constant dense<0.000000e+00> : vector<1x128xf32>
      %131 = tpu.matmul %130, %26, %cst_61 {dimension_numbers = #tpu.dot_dimension_numbers<[1], [0], [0], [1], [0, 0, 1, 1], [], []>} : vector<1x32xf32>, vector<32x128xf32>, vector<1x128xf32> -> vector<1x128xf32>
      %132 = arith.addf %129, %131 : vector<1x128xf32>
      %133 = arith.negf %132 : vector<1x128xf32>
      %134 = math.exp %133 : vector<1x128xf32>
      %cst_62 = arith.constant 1.000000e+00 : f32
      %135 = vector.broadcast %cst_62 : f32 to vector<1x128xf32>
      %136 = arith.addf %135, %134 : vector<1x128xf32>
      %137 = arith.divf %135, %136 : vector<1x128xf32>
      %138 = math.tanh %132 : vector<1x128xf32>
      %139 = vector.extract_strided_slice %137 {offsets = [0, 0], sizes = [1, 32], strides = [1, 1]} : vector<1x128xf32> to vector<1x32xf32>
      %140 = vector.extract_strided_slice %137 {offsets = [0, 32], sizes = [1, 32], strides = [1, 1]} : vector<1x128xf32> to vector<1x32xf32>
      %141 = vector.extract_strided_slice %138 {offsets = [0, 64], sizes = [1, 32], strides = [1, 1]} : vector<1x128xf32> to vector<1x32xf32>
      %142 = vector.extract_strided_slice %137 {offsets = [0, 96], sizes = [1, 32], strides = [1, 1]} : vector<1x128xf32> to vector<1x32xf32>
      %c0_63 = arith.constant 0 : index
      %c0_64 = arith.constant 0 : index
      %143 = vector.load %arg11[%c0_63, %c0_64] : memref<1x32xf32, #tpu.memory_space<vmem>>, vector<1x32xf32>
      %144 = arith.mulf %140, %143 : vector<1x32xf32>
      %145 = arith.mulf %139, %141 : vector<1x32xf32>
      %146 = arith.addf %144, %145 : vector<1x32xf32>
      %147 = math.tanh %146 : vector<1x32xf32>
      %148 = arith.mulf %142, %147 : vector<1x32xf32>
      %c0_65 = arith.constant 0 : index
      %c0_66 = arith.constant 0 : index
      %149 = vector.load %arg10[%c0_65, %c0_66] : memref<1x32xf32, #tpu.memory_space<vmem>>, vector<1x32xf32>
      tpu.vector_store %arg10[%c0_65, %c0_66], %148 {strides = array<i32>} : memref<1x32xf32, #tpu.memory_space<vmem>>, vector<1x32xf32>,
      %c0_67 = arith.constant 0 : index
      %c0_68 = arith.constant 0 : index
      %150 = vector.load %arg11[%c0_67, %c0_68] : memref<1x32xf32, #tpu.memory_space<vmem>>, vector<1x32xf32>
      tpu.vector_store %arg11[%c0_67, %c0_68], %146 {strides = array<i32>} : memref<1x32xf32, #tpu.memory_space<vmem>>, vector<1x32xf32>,
    } else {
    }
    %c30_i32 = arith.constant 30 : i32
    %121 = arith.cmpi sgt, %0, %c30_i32 : i32
    %122 = arith.extui %121 : i1 to i32
    %c0_i32_52 = arith.constant 0 : i32
    %123 = arith.cmpi ne, %122, %c0_i32_52 : i32
    scf.if %123 {
      %c30 = arith.constant 30 : index
      %c0_58 = arith.constant 0 : index
      %129 = vector.load %arg9[%c30, %c0_58] : memref<32x128xf32, #tpu.memory_space<vmem>>, vector<1x128xf32>
      %c0_59 = arith.constant 0 : index
      %c0_60 = arith.constant 0 : index
      %130 = vector.load %arg10[%c0_59, %c0_60] : memref<1x32xf32, #tpu.memory_space<vmem>>, vector<1x32xf32>
      %cst_61 = arith.constant dense<0.000000e+00> : vector<1x128xf32>
      %131 = tpu.matmul %130, %26, %cst_61 {dimension_numbers = #tpu.dot_dimension_numbers<[1], [0], [0], [1], [0, 0, 1, 1], [], []>} : vector<1x32xf32>, vector<32x128xf32>, vector<1x128xf32> -> vector<1x128xf32>
      %132 = arith.addf %129, %131 : vector<1x128xf32>
      %133 = arith.negf %132 : vector<1x128xf32>
      %134 = math.exp %133 : vector<1x128xf32>
      %cst_62 = arith.constant 1.000000e+00 : f32
      %135 = vector.broadcast %cst_62 : f32 to vector<1x128xf32>
      %136 = arith.addf %135, %134 : vector<1x128xf32>
      %137 = arith.divf %135, %136 : vector<1x128xf32>
      %138 = math.tanh %132 : vector<1x128xf32>
      %139 = vector.extract_strided_slice %137 {offsets = [0, 0], sizes = [1, 32], strides = [1, 1]} : vector<1x128xf32> to vector<1x32xf32>
      %140 = vector.extract_strided_slice %137 {offsets = [0, 32], sizes = [1, 32], strides = [1, 1]} : vector<1x128xf32> to vector<1x32xf32>
      %141 = vector.extract_strided_slice %138 {offsets = [0, 64], sizes = [1, 32], strides = [1, 1]} : vector<1x128xf32> to vector<1x32xf32>
      %142 = vector.extract_strided_slice %137 {offsets = [0, 96], sizes = [1, 32], strides = [1, 1]} : vector<1x128xf32> to vector<1x32xf32>
      %c0_63 = arith.constant 0 : index
      %c0_64 = arith.constant 0 : index
      %143 = vector.load %arg11[%c0_63, %c0_64] : memref<1x32xf32, #tpu.memory_space<vmem>>, vector<1x32xf32>
      %144 = arith.mulf %140, %143 : vector<1x32xf32>
      %145 = arith.mulf %139, %141 : vector<1x32xf32>
      %146 = arith.addf %144, %145 : vector<1x32xf32>
      %147 = math.tanh %146 : vector<1x32xf32>
      %148 = arith.mulf %142, %147 : vector<1x32xf32>
      %c0_65 = arith.constant 0 : index
      %c0_66 = arith.constant 0 : index
      %149 = vector.load %arg10[%c0_65, %c0_66] : memref<1x32xf32, #tpu.memory_space<vmem>>, vector<1x32xf32>
      tpu.vector_store %arg10[%c0_65, %c0_66], %148 {strides = array<i32>} : memref<1x32xf32, #tpu.memory_space<vmem>>, vector<1x32xf32>,
      %c0_67 = arith.constant 0 : index
      %c0_68 = arith.constant 0 : index
      %150 = vector.load %arg11[%c0_67, %c0_68] : memref<1x32xf32, #tpu.memory_space<vmem>>, vector<1x32xf32>
      tpu.vector_store %arg11[%c0_67, %c0_68], %146 {strides = array<i32>} : memref<1x32xf32, #tpu.memory_space<vmem>>, vector<1x32xf32>,
    } else {
    }
    %c31_i32 = arith.constant 31 : i32
    %124 = arith.cmpi sgt, %0, %c31_i32 : i32
    %125 = arith.extui %124 : i1 to i32
    %c0_i32_53 = arith.constant 0 : i32
    %126 = arith.cmpi ne, %125, %c0_i32_53 : i32
    scf.if %126 {
      %c31 = arith.constant 31 : index
      %c0_58 = arith.constant 0 : index
      %129 = vector.load %arg9[%c31, %c0_58] : memref<32x128xf32, #tpu.memory_space<vmem>>, vector<1x128xf32>
      %c0_59 = arith.constant 0 : index
      %c0_60 = arith.constant 0 : index
      %130 = vector.load %arg10[%c0_59, %c0_60] : memref<1x32xf32, #tpu.memory_space<vmem>>, vector<1x32xf32>
      %cst_61 = arith.constant dense<0.000000e+00> : vector<1x128xf32>
      %131 = tpu.matmul %130, %26, %cst_61 {dimension_numbers = #tpu.dot_dimension_numbers<[1], [0], [0], [1], [0, 0, 1, 1], [], []>} : vector<1x32xf32>, vector<32x128xf32>, vector<1x128xf32> -> vector<1x128xf32>
      %132 = arith.addf %129, %131 : vector<1x128xf32>
      %133 = arith.negf %132 : vector<1x128xf32>
      %134 = math.exp %133 : vector<1x128xf32>
      %cst_62 = arith.constant 1.000000e+00 : f32
      %135 = vector.broadcast %cst_62 : f32 to vector<1x128xf32>
      %136 = arith.addf %135, %134 : vector<1x128xf32>
      %137 = arith.divf %135, %136 : vector<1x128xf32>
      %138 = math.tanh %132 : vector<1x128xf32>
      %139 = vector.extract_strided_slice %137 {offsets = [0, 0], sizes = [1, 32], strides = [1, 1]} : vector<1x128xf32> to vector<1x32xf32>
      %140 = vector.extract_strided_slice %137 {offsets = [0, 32], sizes = [1, 32], strides = [1, 1]} : vector<1x128xf32> to vector<1x32xf32>
      %141 = vector.extract_strided_slice %138 {offsets = [0, 64], sizes = [1, 32], strides = [1, 1]} : vector<1x128xf32> to vector<1x32xf32>
      %142 = vector.extract_strided_slice %137 {offsets = [0, 96], sizes = [1, 32], strides = [1, 1]} : vector<1x128xf32> to vector<1x32xf32>
      %c0_63 = arith.constant 0 : index
      %c0_64 = arith.constant 0 : index
      %143 = vector.load %arg11[%c0_63, %c0_64] : memref<1x32xf32, #tpu.memory_space<vmem>>, vector<1x32xf32>
      %144 = arith.mulf %140, %143 : vector<1x32xf32>
      %145 = arith.mulf %139, %141 : vector<1x32xf32>
      %146 = arith.addf %144, %145 : vector<1x32xf32>
      %147 = math.tanh %146 : vector<1x32xf32>
      %148 = arith.mulf %142, %147 : vector<1x32xf32>
      %c0_65 = arith.constant 0 : index
      %c0_66 = arith.constant 0 : index
      %149 = vector.load %arg10[%c0_65, %c0_66] : memref<1x32xf32, #tpu.memory_space<vmem>>, vector<1x32xf32>
      tpu.vector_store %arg10[%c0_65, %c0_66], %148 {strides = array<i32>} : memref<1x32xf32, #tpu.memory_space<vmem>>, vector<1x32xf32>,
      %c0_67 = arith.constant 0 : index
      %c0_68 = arith.constant 0 : index
      %150 = vector.load %arg11[%c0_67, %c0_68] : memref<1x32xf32, #tpu.memory_space<vmem>>, vector<1x32xf32>
      tpu.vector_store %arg11[%c0_67, %c0_68], %146 {strides = array<i32>} : memref<1x32xf32, #tpu.memory_space<vmem>>, vector<1x32xf32>,
    } else {
    }
    %c0_54 = arith.constant 0 : index
    %c0_55 = arith.constant 0 : index
    %127 = vector.load %arg10[%c0_54, %c0_55] : memref<1x32xf32, #tpu.memory_space<vmem>>, vector<1x32xf32>
    %c0_56 = arith.constant 0 : index
    %c0_57 = arith.constant 0 : index
    %128 = vector.load %arg8[%c0_56, %c0_57] : memref<1x32xf32, #tpu.memory_space<vmem>>, vector<1x32xf32>
    tpu.vector_store %arg8[%c0_56, %c0_57], %127 {strides = array<i32>} : memref<1x32xf32, #tpu.memory_space<vmem>>, vector<1x32xf32>,
    return
  }
}

</mosaic_0001>

<llo_original>
// kernel: fn.1
$region0: #{fn.1}
  #allocation0 [shape = 'u32[]', space=smem, size = 0x4, offset = 0x4, fixed_abs, tag = 'smem constant byte address 0x4 - core index']
  #allocation1 [shape = 'u32[144,128]{1,0:T(1,128)}', space=vmem, size = 0x12000, scoped, tag = 'internal scratch']
  #allocation2 [shape = 'f32[32,128]{1,0:T(8,128)}', space=vmem, size = 0x4000, scoped, tag = 'scratch operand']
  #allocation3 [shape = 'f32[1,32]{1,0:T(1,128)}', space=vmem, size = 0x200, scoped, tag = 'scratch operand']
  #allocation4 [shape = 'f32[1,32]{1,0:T(1,128)}', space=vmem, size = 0x200, scoped, tag = 'scratch operand']
  %s0 = inlined_call_operand.vmem [shape: s32[2], index: 0, kind: input, shape index: {}]
  %s1 = inlined_call_operand.vmem [shape: s32[32,1], index: 1, kind: input, shape index: {}]
  %s2 = inlined_call_operand.vmem [shape: s32[32,1], index: 2, kind: input, shape index: {}]
  %s3 = inlined_call_operand.vmem [shape: f32[40,128], index: 3, kind: input, shape index: {}]
  %s4 = inlined_call_operand.vmem [shape: f32[32,128], index: 4, kind: input, shape index: {}]
  %s5 = inlined_call_operand.vmem [shape: f32[1,128], index: 5, kind: input, shape index: {}]
  %s6 = inlined_call_operand.vmem [shape: f32[1,32], index: 6, kind: input, shape index: {}]
  %s7 = inlined_call_operand.vmem [shape: f32[1,32], index: 7, kind: input, shape index: {}]
  %s8 = inlined_call_operand.hbm [shape: f32[1,32], index: 8, kind: output, shape index: {}]
  %s9 = sld [smem:[#allocation0]]
  $region174: #{fn.1} parent=0
    _
  %s11 = ssub.s32 1, %s9
  %s12 = scalar_select 0, %s11, %s9
  $region1: #{fn.1} parent=0
    #allocation5 [shape = 'u8[512]{0}', space=smem, size = 0x200, scoped, tag = 'input window, operand 0, single buffered']
    #allocation6 [shape = 's32[1]{0}', space=sflag, size = 0x4, scoped, tag = 'scoped memory for fn.1']
    #allocation7 [shape = 's32[1]{0}', space=sflag, size = 0x4, scoped, tag = 'scoped memory for fn.1']
    #allocation8 [shape = 'u8[512]{0}', space=vmem, size = 0x400, scoped, tag = 'output window, operand 0, single buffered']
    %13 = vsyncpa [#allocation7], 0
    %14 = vsyncpa [#allocation6], 0
    // Predicated region
    $region2: #{fn.1} parent=1 // pred_check
      _
    $region3: #{fn.1} parent=1 // pred_check_branch
      %16 = sbr.rel (0) target = $region5
    $region4: #{fn.1} parent=1 // pred_region
      %s18 = ssub.s32 16, 16
      %19 = vsyncadd [#allocation7], %s18
      %s21 = sshll.u32 %s0, 4
      %s22 = int_to_ptr.vmem [resolvable:$true] %s21
      %24 = dma.vmem_to_smem %s22, 16, [#allocation5], [#allocation7]
    $region5: #{fn.1} parent=1 // pred_fallthru
      _
    // Predicated region
    $region6: #{fn.1} parent=1 // pred_check
      _
    $region7: #{fn.1} parent=1 // pred_check_branch
      %26 = sbr.rel (0) target = $region9
    $region8: #{fn.1} parent=1 // pred_region
      _
    $region9: #{fn.1} parent=1 // pred_fallthru
      _
    // Predicated region
    $region10: #{fn.1} parent=1 // pred_check
      _
    $region11: #{fn.1} parent=1 // pred_check_branch
      %28 = sbr.rel (0) target = $region13
    $region12: #{fn.1} parent=1 // pred_region
      _
    $region13: #{fn.1} parent=1 // pred_fallthru
      _
    // Predicated region
    $region14: #{fn.1} parent=1 // pred_check
      _
    $region15: #{fn.1} parent=1 // pred_check_branch
      %30 = sbr.rel (0) target = $region17
    $region16: #{fn.1} parent=1 // pred_region
      _
    $region17: #{fn.1} parent=1 // pred_fallthru
      _
    // Predicated region
    $region18: #{fn.1} parent=1 // pred_check
      _
    $region19: #{fn.1} parent=1 // pred_check_branch
      %32 = sbr.rel (0) target = $region21
    $region20: #{fn.1} parent=1 // pred_region
      _
    $region21: #{fn.1} parent=1 // pred_fallthru
      _
    // Predicated region
    $region22: #{fn.1} parent=1 // pred_check
      _
    $region23: #{fn.1} parent=1 // pred_check_branch
      %34 = sbr.rel (0) target = $region25
    $region24: #{fn.1} parent=1 // pred_region
      _
    $region25: #{fn.1} parent=1 // pred_fallthru
      _
    // Predicated region
    $region26: #{fn.1} parent=1 // pred_check
      _
    $region27: #{fn.1} parent=1 // pred_check_branch
      %36 = sbr.rel (0) target = $region29
    $region28: #{fn.1} parent=1 // pred_region
      _
    $region29: #{fn.1} parent=1 // pred_fallthru
      _
    // Predicated region
    $region30: #{fn.1} parent=1 // pred_check
      _
    $region31: #{fn.1} parent=1 // pred_check_branch
      %38 = sbr.rel (0) target = $region33
    $region32: #{fn.1} parent=1 // pred_region
      _
    $region33: #{fn.1} parent=1 // pred_fallthru
      _
    // Predicated region
    $region34: #{fn.1} parent=1 // pred_check
      _
    $region35: #{fn.1} parent=1 // pred_check_branch
      %40 = sbr.rel (0) target = $region37
    $region36: #{fn.1} parent=1 // pred_region
      %41 = dma.done [#allocation7], 16
    $region37: #{fn.1} parent=1 // pred_fallthru
      _
    %42 = sfence
    %s43 = sld [smem:[#allocation5]]
    %s44 = sld [smem:[#allocation5 + $0x1]]
    %v45 = vld [vmem:[%s1] sm:$0xff]
    %v46 = vld [vmem:[%s1 + $0x8] sm:$0xff]
    %v47 = vld [vmem:[%s1 + $0x10] sm:$0xff]
    %v48 = vld [vmem:[%s1 + $0x18] sm:$0xff]
    %v49 = vld [vmem:[%s2] sm:$0xff]
    %v50 = vld [vmem:[%s2 + $0x8] sm:$0xff]
    %v51 = vld [vmem:[%s2 + $0x10] sm:$0xff]
    %v52 = vld [vmem:[%s2 + $0x18] sm:$0xff]
    %v53 = vstv %s44
    %vm54 = vcmp.ge.s32.totalorder %v45, %v53
    %vm55 = vcmp.ge.s32.totalorder %v46, %v53
    %vm56 = vcmp.ge.s32.totalorder %v47, %v53
    %vm57 = vcmp.ge.s32.totalorder %v48, %v53
    %v58 = vsub.s32 %v45, %v53
    %v59 = vsub.s32 %v46, %v53
    %v60 = vsub.s32 %v47, %v53
    %v61 = vsub.s32 %v48, %v53
    %s62 = ssub.s32 2, %s44
    %v63 = vstv %s62
    %v64 = vadd.s32 %v45, %v63
    %v65 = vadd.s32 %v46, %v63
    %v66 = vadd.s32 %v47, %v63
    %v67 = vadd.s32 %v48, %v63
    %v68 = vsel %vm54, %v58, %v64
    %v69 = vsel %vm55, %v59, %v65
    %v70 = vsel %vm56, %v60, %v66
    %v71 = vsel %vm57, %v61, %v67
    %v72 = vmul.u32 %v68, 20
    %v73 = vmul.u32 %v69, 20
    %v74 = vmul.u32 %v70, 20
    %v75 = vmul.u32 %v71, 20
    %v76 = vadd.s32 %v72, %v49
    %v77 = vadd.s32 %v73, %v50
    %v78 = vadd.s32 %v74, %v51
    %v79 = vadd.s32 %v75, %v52
    %v80 = vlaneseq
    %v81 = vand.u32 %v80, 127
    %82 = vset.pattern.permute.xlu0 0
    %83 = vperm.xlu0 %82, %v76
    %v84 = vpop.permute.xlu0 %83
    %85 = vset.pattern.permute.xlu0 0
    %86 = vperm.xlu0 %85, %v77
    %v87 = vpop.permute.xlu0 %86
    %88 = vset.pattern.permute.xlu0 0
    %89 = vperm.xlu0 %88, %v78
    %v90 = vpop.permute.xlu0 %89
    %91 = vset.pattern.permute.xlu0 0
    %92 = vperm.xlu0 %91, %v79
    %v93 = vpop.permute.xlu0 %92
    %vm94 = vcmp.eq.s32.totalorder %v81, %v84
    %vm95 = vcmp.eq.s32.totalorder %v81, %v87
    %vm96 = vcmp.eq.s32.totalorder %v81, %v90
    %vm97 = vcmp.eq.s32.totalorder %v81, %v93
    %v98 = vsel %vm94, 1, 0
    %v99 = vsel %vm95, 1, 0
    %v100 = vsel %vm96, 1, 0
    %v101 = vsel %vm97, 1, 0
    %v102 = vcvt.s32.f32 %v98
    %v103 = vcvt.s32.f32 %v99
    %v104 = vcvt.s32.f32 %v100
    %v105 = vcvt.s32.f32 %v101
    %v106 = vld [vmem:[%s3] sm:$0xff]
    %v107 = vld [vmem:[%s3 + $0x8] sm:$0xff]
    %v108 = vld [vmem:[%s3 + $0x10] sm:$0xff]
    %v109 = vld [vmem:[%s3 + $0x18] sm:$0xff]
    %v110 = vld [vmem:[%s3 + $0x20] sm:$0xff]
    %v111 = vld [vmem:[%s5] sm:$0x1]
    %v113 = vlaneseq
    %v114 = vshrl.u32 %v113, 7
    %v115 = vsub.s32 0, %v114
    %v116 = vrot.slane %v111, %v115
    %vm118 = vcmask 326656
    %v120 = vsel %vm118, %v102, 0
    %v123 = vsel %vm118, %v103, 0
    %v126 = vsel %vm118, %v104, 0
    %v129 = vsel %vm118, %v105, 0
    %131 = vmatprep.subr.mxu0 0.0
    %132 = vmatpush1.msra.mxu0 0.0
    %133 = vmatprep.subr.mxu0 0.0
    %134 = vmatpush1.msra.mxu0 0.0
    %135 = vmatprep.subr.mxu0 0.0
    %136 = vmatpush1.msra.mxu0 0.0
    %137 = vmatprep.subr.mxu0 0.0
    %138 = vmatpush1.msra.mxu0 0.0
    %139 = vmatprep.subr.mxu0 0.0
    %140 = vmatpush1.msra.mxu0 0.0
    %141 = vmatprep.subr.mxu0 0.0
    %142 = vmatpush1.msra.mxu0 0.0
    %143 = vmatprep.subr.mxu0 0.0
    %144 = vmatpush1.msra.mxu0 0.0
    %145 = vmatprep.subr.mxu0 0.0
    %146 = vmatpush1.msra.mxu0 0.0
    %147 = vmatprep.subr.mxu0 0.0
    %148 = vmatpush1.msra.mxu0 0.0
    %149 = vmatprep.subr.mxu0 0.0
    %150 = vmatpush1.msra.mxu0 0.0
    %151 = vmatprep.subr.mxu0 0.0
    %152 = vmatpush1.msra.mxu0 0.0
    %153 = vmatprep.subr.mxu0 0.0
    %154 = vmatpush1.msra.mxu0 %v110
    %155 = vmatprep.subr.mxu0 0.0
    %156 = vmatpush1.msra.mxu0 %v109
    %157 = vmatprep.subr.mxu0 0.0
    %158 = vmatpush1.msra.mxu0 %v108
    %159 = vmatprep.subr.mxu0 0.0
    %160 = vmatpush1.msra.mxu0 %v107
    %161 = vmatprep.subr.mxu0 0.0
    %162 = vmatpush1.msra.mxu0 %v106
    %163 = vmatprep.subr.mxu0 0.0
    %164 = vmatpush2.msra.mxu0 0.0
    %165 = vmatprep.subr.mxu0 0.0
    %166 = vmatpush2.msra.mxu0 0.0
    %167 = vmatprep.subr.mxu0 0.0
    %168 = vmatpush2.msra.mxu0 0.0
    %169 = vmatprep.subr.mxu0 0.0
    %170 = vmatpush2.msra.mxu0 0.0
    %171 = vmatprep.subr.mxu0 0.0
    %172 = vmatpush2.msra.mxu0 0.0
    %173 = vmatprep.subr.mxu0 0.0
    %174 = vmatpush2.msra.mxu0 0.0
    %175 = vmatprep.subr.mxu0 0.0
    %176 = vmatpush2.msra.mxu0 0.0
    %177 = vmatprep.subr.mxu0 0.0
    %178 = vmatpush2.msra.mxu0 0.0
    %179 = vmatprep.subr.mxu0 0.0
    %180 = vmatpush2.msra.mxu0 0.0
    %181 = vmatprep.subr.mxu0 0.0
    %182 = vmatpush2.msra.mxu0 0.0
    %183 = vmatprep.subr.mxu0 0.0
    %184 = vmatpush2.msra.mxu0 0.0
    %185 = vmatprep.subr.mxu0 0.0
    %186 = vmatpush2.msra.mxu0 0.0
    %187 = vmatprep.subr.mxu0 0.0
    %188 = vmatpush2.msra.mxu0 0.0
    %189 = vmatprep.subr.mxu0 0.0
    %190 = vmatpush2.msra.mxu0 0.0
    %191 = vmatprep.subr.mxu0 0.0
    %192 = vmatpush2.msra.mxu0 0.0
    %193 = vmatprep.subr.mxu0 0.0
    %194 = vmatpush2.msra.mxu0 0.0
    %195 = vmatprep.mubr.f32.mxu0 0.0
    %196 = vmatmul.mubr.f32.gmra.mxu0 %v120
    %v197 = vpop.f32.mrf.mxu0
    %v198 = vadd.f32 %v116, %v197
    %v199 = vpop.f32.mrf.mxu0
    %200 = vmatprep.mubr.f32.mxu0 0.0
    %201 = vmatmul.mubr.f32.gmra.mxu0 %v123
    %v202 = vpop.f32.mrf.mxu0
    %v203 = vadd.f32 %v116, %v202
    %v204 = vpop.f32.mrf.mxu0
    %205 = vmatprep.mubr.f32.mxu0 0.0
    %206 = vmatmul.mubr.f32.gmra.mxu0 %v126
    %v207 = vpop.f32.mrf.mxu0
    %v208 = vadd.f32 %v116, %v207
    %v209 = vpop.f32.mrf.mxu0
    %210 = vmatprep.mubr.f32.mxu0 0.0
    %211 = vmatmul.mubr.f32.gmra.mxu0 %v129
    %v212 = vpop.f32.mrf.mxu0
    %v213 = vadd.f32 %v116, %v212
    %v214 = vpop.f32.mrf.mxu0
    %215 = vdwg.mxu0
    %216 = vst [vmem:[#allocation2] sm:$0xff] %v198
    %217 = vst [vmem:[#allocation2 + $0x8] sm:$0xff] %v203
    %218 = vst [vmem:[#allocation2 + $0x10] sm:$0xff] %v208
    %219 = vst [vmem:[#allocation2 + $0x18] sm:$0xff] %v213
    %v220 = vld [vmem:[%s4] sm:$0xff]
    %v221 = vld [vmem:[%s4 + $0x8] sm:$0xff]
    %v222 = vld [vmem:[%s4 + $0x10] sm:$0xff]
    %v223 = vld [vmem:[%s4 + $0x18] sm:$0xff]
    %v224 = vld [vmem:[%s6] sm:$0x1]
    %vm225 = vcmask 253952
    %226 = vst.msk [vmem:[#allocation3] sm:$0x1] %vm225, %v224
    %v227 = vld [vmem:[%s7] sm:$0x1]
    %228 = vst.msk [vmem:[#allocation4] sm:$0x1] %vm225, %v227
    %p229 = scmp.gt.s32.totalorder %s43, 0
    // Predicated region
    $region38: #{fn.1} parent=1 // pred_check
      %p230 = pneg %p229
    $region39: #{fn.1} parent=1 // pred_check_branch
      %232 = sbr.rel (%p230) target = $region41
    $region40: #{fn.1} parent=1 // pred_region
      %v233 = vld [vmem:[#allocation2] sm:$0x1]
      %v234 = vld [vmem:[#allocation3] sm:$0x1]
      %vm235 = vcmask 261120
      %v237 = vsel %vm235, %v234, 0
      %239 = vmatprep.subr.mxu0 0.0
      %240 = vmatpush1.msra.mxu0 0.0
      %241 = vmatprep.subr.mxu0 0.0
      %242 = vmatpush1.msra.mxu0 0.0
      %243 = vmatprep.subr.mxu0 0.0
      %244 = vmatpush1.msra.mxu0 0.0
      %245 = vmatprep.subr.mxu0 0.0
      %246 = vmatpush1.msra.mxu0 0.0
      %247 = vmatprep.subr.mxu0 0.0
      %248 = vmatpush1.msra.mxu0 0.0
      %249 = vmatprep.subr.mxu0 0.0
      %250 = vmatpush1.msra.mxu0 0.0
      %251 = vmatprep.subr.mxu0 0.0
      %252 = vmatpush1.msra.mxu0 0.0
      %253 = vmatprep.subr.mxu0 0.0
      %254 = vmatpush1.msra.mxu0 0.0
      %255 = vmatprep.subr.mxu0 0.0
      %256 = vmatpush1.msra.mxu0 0.0
      %257 = vmatprep.subr.mxu0 0.0
      %258 = vmatpush1.msra.mxu0 0.0
      %259 = vmatprep.subr.mxu0 0.0
      %260 = vmatpush1.msra.mxu0 0.0
      %261 = vmatprep.subr.mxu0 0.0
      %262 = vmatpush1.msra.mxu0 0.0
      %263 = vmatprep.subr.mxu0 0.0
      %264 = vmatpush1.msra.mxu0 %v223
      %265 = vmatprep.subr.mxu0 0.0
      %266 = vmatpush1.msra.mxu0 %v222
      %267 = vmatprep.subr.mxu0 0.0
      %268 = vmatpush1.msra.mxu0 %v221
      %269 = vmatprep.subr.mxu0 0.0
      %270 = vmatpush1.msra.mxu0 %v220
      %271 = vmatprep.subr.mxu0 0.0
      %272 = vmatpush2.msra.mxu0 0.0
      %273 = vmatprep.subr.mxu0 0.0
      %274 = vmatpush2.msra.mxu0 0.0
      %275 = vmatprep.subr.mxu0 0.0
      %276 = vmatpush2.msra.mxu0 0.0
      %277 = vmatprep.subr.mxu0 0.0
      %278 = vmatpush2.msra.mxu0 0.0
      %279 = vmatprep.subr.mxu0 0.0
      %280 = vmatpush2.msra.mxu0 0.0
      %281 = vmatprep.subr.mxu0 0.0
      %282 = vmatpush2.msra.mxu0 0.0
      %283 = vmatprep.subr.mxu0 0.0
      %284 = vmatpush2.msra.mxu0 0.0
      %285 = vmatprep.subr.mxu0 0.0
      %286 = vmatpush2.msra.mxu0 0.0
      %287 = vmatprep.subr.mxu0 0.0
      %288 = vmatpush2.msra.mxu0 0.0
      %289 = vmatprep.subr.mxu0 0.0
      %290 = vmatpush2.msra.mxu0 0.0
      %291 = vmatprep.subr.mxu0 0.0
      %292 = vmatpush2.msra.mxu0 0.0
      %293 = vmatprep.subr.mxu0 0.0
      %294 = vmatpush2.msra.mxu0 0.0
      %295 = vmatprep.subr.mxu0 0.0
      %296 = vmatpush2.msra.mxu0 0.0
      %297 = vmatprep.subr.mxu0 0.0
      %298 = vmatpush2.msra.mxu0 0.0
      %299 = vmatprep.subr.mxu0 0.0
      %300 = vmatpush2.msra.mxu0 0.0
      %301 = vmatprep.subr.mxu0 0.0
      %302 = vmatpush2.msra.mxu0 0.0
      %303 = vmatprep.mubr.f32.mxu0 0.0
      %304 = vmatmul.mubr.f32.gmra.mxu0 %v237
      %v305 = vpop.f32.mrf.mxu0
      %v306 = vadd.f32 0.0, %v305
      %v307 = vpop.f32.mrf.mxu0
      %308 = vdwg.mxu0
      %v309 = vadd.f32 %v233, %v306
      %v310 = vxor.u32 %v309, 2147483648
      %v311 = vmul.f32 %v310, 1.442695
      %v312 = vpow.pop %v311
      %v313 = vadd.f32 %v312, 1.0
      %v314 = vrcp.pop %v313
      %v315 = vmul.f32 1.0, %v314
      %v316 = vtanh.pop %v309
      %v317 = vld [vmem:[#allocation4] sm:$0x1]
      %v319 = vlaneseq
      %v320 = vshrl.u32 %v319, 7
      %v321 = vsub.s32 0, %v320
      %v322 = vrot.slane %v317, %v321
      %323 = vrot.lane.b32.xlu0 %v322, 32
      %v324 = vpop.permute.xlu0 %323
      %v326 = vmul.f32 %v315, %v324
      %328 = vrot.lane.b32.xlu0 %v316, 64
      %v329 = vpop.permute.xlu0 %328
      %v331 = vmul.f32 %v315, %v329
      %333 = vrot.lane.b32.xlu0 %v331, 32
      %v334 = vpop.permute.xlu0 %333
      %v336 = vadd.f32 %v326, %v334
      %v337 = vtanh.pop %v336
      %339 = vrot.lane.b32.xlu0 %v337, 64
      %v340 = vpop.permute.xlu0 %339
      %v342 = vmul.f32 %v315, %v340
      %344 = vrot.lane.b32.xlu0 %v342, 32
      %v345 = vpop.permute.xlu0 %344
      %347 = vst.msk [vmem:[#allocation3] sm:$0x1] %vm225, %v345
      %349 = vrot.lane.b32.xlu0 %v336, 96
      %v350 = vpop.permute.xlu0 %349
      %352 = vst.msk [vmem:[#allocation4] sm:$0x1] %vm225, %v350
    $region41: #{fn.1} parent=1 // pred_fallthru
      _
    %p353 = scmp.gt.s32.totalorder %s43, 1
    // Predicated region
    $region42: #{fn.1} parent=1 // pred_check
      %p354 = pneg %p353
    $region43: #{fn.1} parent=1 // pred_check_branch
      %356 = sbr.rel (%p354) target = $region45
    $region44: #{fn.1} parent=1 // pred_region
      %v357 = vld [vmem:[#allocation2 + $0x1] sm:$0x1]
      %v358 = vld [vmem:[#allocation3] sm:$0x1]
      %vm359 = vcmask 261120
      %v361 = vsel %vm359, %v358, 0
      %363 = vmatprep.subr.mxu0 0.0
      %364 = vmatpush1.msra.mxu0 0.0
      %365 = vmatprep.subr.mxu0 0.0
      %366 = vmatpush1.msra.mxu0 0.0
      %367 = vmatprep.subr.mxu0 0.0
      %368 = vmatpush1.msra.mxu0 0.0
      %369 = vmatprep.subr.mxu0 0.0
      %370 = vmatpush1.msra.mxu0 0.0
      %371 = vmatprep.subr.mxu0 0.0
      %372 = vmatpush1.msra.mxu0 0.0
      %373 = vmatprep.subr.mxu0 0.0
      %374 = vmatpush1.msra.mxu0 0.0
      %375 = vmatprep.subr.mxu0 0.0
      %376 = vmatpush1.msra.mxu0 0.0
      %377 = vmatprep.subr.mxu0 0.0
      %378 = vmatpush1.msra.mxu0 0.0
      %379 = vmatprep.subr.mxu0 0.0
      %380 = vmatpush1.msra.mxu0 0.0
      %381 = vmatprep.subr.mxu0 0.0
      %382 = vmatpush1.msra.mxu0 0.0
      %383 = vmatprep.subr.mxu0 0.0
      %384 = vmatpush1.msra.mxu0 0.0
      %385 = vmatprep.subr.mxu0 0.0
      %386 = vmatpush1.msra.mxu0 0.0
      %387 = vmatprep.subr.mxu0 0.0
      %388 = vmatpush1.msra.mxu0 %v223
      %389 = vmatprep.subr.mxu0 0.0
      %390 = vmatpush1.msra.mxu0 %v222
      %391 = vmatprep.subr.mxu0 0.0
      %392 = vmatpush1.msra.mxu0 %v221
      %393 = vmatprep.subr.mxu0 0.0
      %394 = vmatpush1.msra.mxu0 %v220
      %395 = vmatprep.subr.mxu0 0.0
      %396 = vmatpush2.msra.mxu0 0.0
      %397 = vmatprep.subr.mxu0 0.0
      %398 = vmatpush2.msra.mxu0 0.0
      %399 = vmatprep.subr.mxu0 0.0
      %400 = vmatpush2.msra.mxu0 0.0
      %401 = vmatprep.subr.mxu0 0.0
      %402 = vmatpush2.msra.mxu0 0.0
      %403 = vmatprep.subr.mxu0 0.0
      %404 = vmatpush2.msra.mxu0 0.0
      %405 = vmatprep.subr.mxu0 0.0
      %406 = vmatpush2.msra.mxu0 0.0
      %407 = vmatprep.subr.mxu0 0.0
      %408 = vmatpush2.msra.mxu0 0.0
      %409 = vmatprep.subr.mxu0 0.0
      %410 = vmatpush2.msra.mxu0 0.0
      %411 = vmatprep.subr.mxu0 0.0
      %412 = vmatpush2.msra.mxu0 0.0
      %413 = vmatprep.subr.mxu0 0.0
      %414 = vmatpush2.msra.mxu0 0.0
      %415 = vmatprep.subr.mxu0 0.0
      %416 = vmatpush2.msra.mxu0 0.0
      %417 = vmatprep.subr.mxu0 0.0
      %418 = vmatpush2.msra.mxu0 0.0
      %419 = vmatprep.subr.mxu0 0.0
      %420 = vmatpush2.msra.mxu0 0.0
      %421 = vmatprep.subr.mxu0 0.0
      %422 = vmatpush2.msra.mxu0 0.0
      %423 = vmatprep.subr.mxu0 0.0
      %424 = vmatpush2.msra.mxu0 0.0
      %425 = vmatprep.subr.mxu0 0.0
      %426 = vmatpush2.msra.mxu0 0.0
      %427 = vmatprep.mubr.f32.mxu0 0.0
      %428 = vmatmul.mubr.f32.gmra.mxu0 %v361
      %v429 = vpop.f32.mrf.mxu0
      %v430 = vadd.f32 0.0, %v429
      %v431 = vpop.f32.mrf.mxu0
      %432 = vdwg.mxu0
      %v433 = vadd.f32 %v357, %v430
      %v434 = vxor.u32 %v433, 2147483648
      %v435 = vmul.f32 %v434, 1.442695
      %v436 = vpow.pop %v435
      %v437 = vadd.f32 %v436, 1.0
      %v438 = vrcp.pop %v437
      %v439 = vmul.f32 1.0, %v438
      %v440 = vtanh.pop %v433
      %v441 = vld [vmem:[#allocation4] sm:$0x1]
      %v443 = vlaneseq
      %v444 = vshrl.u32 %v443, 7
      %v445 = vsub.s32 0, %v444
      %v446 = vrot.slane %v441, %v445
      %447 = vrot.lane.b32.xlu0 %v446, 32
      %v448 = vpop.permute.xlu0 %447
      %v450 = vmul.f32 %v439, %v448
      %452 = vrot.lane.b32.xlu0 %v440, 64
      %v453 = vpop.permute.xlu0 %452
      %v455 = vmul.f32 %v439, %v453
      %457 = vrot.lane.b32.xlu0 %v455, 32
      %v458 = vpop.permute.xlu0 %457
      %v460 = vadd.f32 %v450, %v458
      %v461 = vtanh.pop %v460
      %463 = vrot.lane.b32.xlu0 %v461, 64
      %v464 = vpop.permute.xlu0 %463
      %v466 = vmul.f32 %v439, %v464
      %468 = vrot.lane.b32.xlu0 %v466, 32
      %v469 = vpop.permute.xlu0 %468
      %471 = vst.msk [vmem:[#allocation3] sm:$0x1] %vm225, %v469
      %473 = vrot.lane.b32.xlu0 %v460, 96
      %v474 = vpop.permute.xlu0 %473
      %476 = vst.msk [vmem:[#allocation4] sm:$0x1] %vm225, %v474
    $region45: #{fn.1} parent=1 // pred_fallthru
      _
    %p477 = scmp.gt.s32.totalorder %s43, 2
    // Predicated region
    $region46: #{fn.1} parent=1 // pred_check
      %p478 = pneg %p477
    $region47: #{fn.1} parent=1 // pred_check_branch
      %480 = sbr.rel (%p478) target = $region49
    $region48: #{fn.1} parent=1 // pred_region
      %v481 = vld [vmem:[#allocation2 + $0x2] sm:$0x1]
      %v482 = vld [vmem:[#allocation3] sm:$0x1]
      %vm483 = vcmask 261120
      %v485 = vsel %vm483, %v482, 0
      %487 = vmatprep.subr.mxu0 0.0
      %488 = vmatpush1.msra.mxu0 0.0
      %489 = vmatprep.subr.mxu0 0.0
      %490 = vmatpush1.msra.mxu0 0.0
      %491 = vmatprep.subr.mxu0 0.0
      %492 = vmatpush1.msra.mxu0 0.0
      %493 = vmatprep.subr.mxu0 0.0
      %494 = vmatpush1.msra.mxu0 0.0
      %495 = vmatprep.subr.mxu0 0.0
      %496 = vmatpush1.msra.mxu0 0.0
      %497 = vmatprep.subr.mxu0 0.0
      %498 = vmatpush1.msra.mxu0 0.0
      %499 = vmatprep.subr.mxu0 0.0
      %500 = vmatpush1.msra.mxu0 0.0
      %501 = vmatprep.subr.mxu0 0.0
      %502 = vmatpush1.msra.mxu0 0.0
      %503 = vmatprep.subr.mxu0 0.0
      %504 = vmatpush1.msra.mxu0 0.0
      %505 = vmatprep.subr.mxu0 0.0
      %506 = vmatpush1.msra.mxu0 0.0
      %507 = vmatprep.subr.mxu0 0.0
      %508 = vmatpush1.msra.mxu0 0.0
      %509 = vmatprep.subr.mxu0 0.0
      %510 = vmatpush1.msra.mxu0 0.0
      %511 = vmatprep.subr.mxu0 0.0
      %512 = vmatpush1.msra.mxu0 %v223
      %513 = vmatprep.subr.mxu0 0.0
      %514 = vmatpush1.msra.mxu0 %v222
      %515 = vmatprep.subr.mxu0 0.0
      %516 = vmatpush1.msra.mxu0 %v221
      %517 = vmatprep.subr.mxu0 0.0
      %518 = vmatpush1.msra.mxu0 %v220
      %519 = vmatprep.subr.mxu0 0.0
      %520 = vmatpush2.msra.mxu0 0.0
      %521 = vmatprep.subr.mxu0 0.0
      %522 = vmatpush2.msra.mxu0 0.0
      %523 = vmatprep.subr.mxu0 0.0
      %524 = vmatpush2.msra.mxu0 0.0
      %525 = vmatprep.subr.mxu0 0.0
      %526 = vmatpush2.msra.mxu0 0.0
      %527 = vmatprep.subr.mxu0 0.0
      %528 = vmatpush2.msra.mxu0 0.0
      %529 = vmatprep.subr.mxu0 0.0
      %530 = vmatpush2.msra.mxu0 0.0
      %531 = vmatprep.subr.mxu0 0.0
      %532 = vmatpush2.msra.mxu0 0.0
      %533 = vmatprep.subr.mxu0 0.0
      %534 = vmatpush2.msra.mxu0 0.0
      %535 = vmatprep.subr.mxu0 0.0
      %536 = vmatpush2.msra.mxu0 0.0
      %537 = vmatprep.subr.mxu0 0.0
      %538 = vmatpush2.msra.mxu0 0.0
      %539 = vmatprep.subr.mxu0 0.0
      %540 = vmatpush2.msra.mxu0 0.0
      %541 = vmatprep.subr.mxu0 0.0
      %542 = vmatpush2.msra.mxu0 0.0
      %543 = vmatprep.subr.mxu0 0.0
      %544 = vmatpush2.msra.mxu0 0.0
      %545 = vmatprep.subr.mxu0 0.0
      %546 = vmatpush2.msra.mxu0 0.0
      %547 = vmatprep.subr.mxu0 0.0
      %548 = vmatpush2.msra.mxu0 0.0
      %549 = vmatprep.subr.mxu0 0.0
      %550 = vmatpush2.msra.mxu0 0.0
      %551 = vmatprep.mubr.f32.mxu0 0.0
      %552 = vmatmul.mubr.f32.gmra.mxu0 %v485
      %v553 = vpop.f32.mrf.mxu0
      %v554 = vadd.f32 0.0, %v553
      %v555 = vpop.f32.mrf.mxu0
      %556 = vdwg.mxu0
      %v557 = vadd.f32 %v481, %v554
      %v558 = vxor.u32 %v557, 2147483648
      %v559 = vmul.f32 %v558, 1.442695
      %v560 = vpow.pop %v559
      %v561 = vadd.f32 %v560, 1.0
      %v562 = vrcp.pop %v561
      %v563 = vmul.f32 1.0, %v562
      %v564 = vtanh.pop %v557
      %v565 = vld [vmem:[#allocation4] sm:$0x1]
      %v567 = vlaneseq
      %v568 = vshrl.u32 %v567, 7
      %v569 = vsub.s32 0, %v568
      %v570 = vrot.slane %v565, %v569
      %571 = vrot.lane.b32.xlu0 %v570, 32
      %v572 = vpop.permute.xlu0 %571
      %v574 = vmul.f32 %v563, %v572
      %576 = vrot.lane.b32.xlu0 %v564, 64
      %v577 = vpop.permute.xlu0 %576
      %v579 = vmul.f32 %v563, %v577
      %581 = vrot.lane.b32.xlu0 %v579, 32
      %v582 = vpop.permute.xlu0 %581
      %v584 = vadd.f32 %v574, %v582
      %v585 = vtanh.pop %v584
      %587 = vrot.lane.b32.xlu0 %v585, 64
      %v588 = vpop.permute.xlu0 %587
      %v590 = vmul.f32 %v563, %v588
      %592 = vrot.lane.b32.xlu0 %v590, 32
      %v593 = vpop.permute.xlu0 %592
      %595 = vst.msk [vmem:[#allocation3] sm:$0x1] %vm225, %v593
      %597 = vrot.lane.b32.xlu0 %v584, 96
      %v598 = vpop.permute.xlu0 %597
      %600 = vst.msk [vmem:[#allocation4] sm:$0x1] %vm225, %v598
    $region49: #{fn.1} parent=1 // pred_fallthru
      _
    %p601 = scmp.gt.s32.totalorder %s43, 3
    // Predicated region
    $region50: #{fn.1} parent=1 // pred_check
      %p602 = pneg %p601
    $region51: #{fn.1} parent=1 // pred_check_branch
      %604 = sbr.rel (%p602) target = $region53
    $region52: #{fn.1} parent=1 // pred_region
      %v605 = vld [vmem:[#allocation2 + $0x3] sm:$0x1]
      %v606 = vld [vmem:[#allocation3] sm:$0x1]
      %vm607 = vcmask 261120
      %v609 = vsel %vm607, %v606, 0
      %611 = vmatprep.subr.mxu0 0.0
      %612 = vmatpush1.msra.mxu0 0.0
      %613 = vmatprep.subr.mxu0 0.0
      %614 = vmatpush1.msra.mxu0 0.0
      %615 = vmatprep.subr.mxu0 0.0
      %616 = vmatpush1.msra.mxu0 0.0
      %617 = vmatprep.subr.mxu0 0.0
      %618 = vmatpush1.msra.mxu0 0.0
      %619 = vmatprep.subr.mxu0 0.0
      %620 = vmatpush1.msra.mxu0 0.0
      %621 = vmatprep.subr.mxu0 0.0
      %622 = vmatpush1.msra.mxu0 0.0
      %623 = vmatprep.subr.mxu0 0.0
      %624 = vmatpush1.msra.mxu0 0.0
      %625 = vmatprep.subr.mxu0 0.0
      %626 = vmatpush1.msra.mxu0 0.0
      %627 = vmatprep.subr.mxu0 0.0
      %628 = vmatpush1.msra.mxu0 0.0
      %629 = vmatprep.subr.mxu0 0.0
      %630 = vmatpush1.msra.mxu0 0.0
      %631 = vmatprep.subr.mxu0 0.0
      %632 = vmatpush1.msra.mxu0 0.0
      %633 = vmatprep.subr.mxu0 0.0
      %634 = vmatpush1.msra.mxu0 0.0
      %635 = vmatprep.subr.mxu0 0.0
      %636 = vmatpush1.msra.mxu0 %v223
      %637 = vmatprep.subr.mxu0 0.0
      %638 = vmatpush1.msra.mxu0 %v222
      %639 = vmatprep.subr.mxu0 0.0
      %640 = vmatpush1.msra.mxu0 %v221
      %641 = vmatprep.subr.mxu0 0.0
      %642 = vmatpush1.msra.mxu0 %v220
      %643 = vmatprep.subr.mxu0 0.0
      %644 = vmatpush2.msra.mxu0 0.0
      %645 = vmatprep.subr.mxu0 0.0
      %646 = vmatpush2.msra.mxu0 0.0
      %647 = vmatprep.subr.mxu0 0.0
      %648 = vmatpush2.msra.mxu0 0.0
      %649 = vmatprep.subr.mxu0 0.0
      %650 = vmatpush2.msra.mxu0 0.0
      %651 = vmatprep.subr.mxu0 0.0
      %652 = vmatpush2.msra.mxu0 0.0
      %653 = vmatprep.subr.mxu0 0.0
      %654 = vmatpush2.msra.mxu0 0.0
      %655 = vmatprep.subr.mxu0 0.0
      %656 = vmatpush2.msra.mxu0 0.0
      %657 = vmatprep.subr.mxu0 0.0
      %658 = vmatpush2.msra.mxu0 0.0
      %659 = vmatprep.subr.mxu0 0.0
      %660 = vmatpush2.msra.mxu0 0.0
      %661 = vmatprep.subr.mxu0 0.0
      %662 = vmatpush2.msra.mxu0 0.0
      %663 = vmatprep.subr.mxu0 0.0
      %664 = vmatpush2.msra.mxu0 0.0
      %665 = vmatprep.subr.mxu0 0.0
      %666 = vmatpush2.msra.mxu0 0.0
      %667 = vmatprep.subr.mxu0 0.0
      %668 = vmatpush2.msra.mxu0 0.0
      %669 = vmatprep.subr.mxu0 0.0
      %670 = vmatpush2.msra.mxu0 0.0
      %671 = vmatprep.subr.mxu0 0.0
      %672 = vmatpush2.msra.mxu0 0.0
      %673 = vmatprep.subr.mxu0 0.0
      %674 = vmatpush2.msra.mxu0 0.0
      %675 = vmatprep.mubr.f32.mxu0 0.0
      %676 = vmatmul.mubr.f32.gmra.mxu0 %v609
      %v677 = vpop.f32.mrf.mxu0
      %v678 = vadd.f32 0.0, %v677
      %v679 = vpop.f32.mrf.mxu0
      %680 = vdwg.mxu0
      %v681 = vadd.f32 %v605, %v678
      %v682 = vxor.u32 %v681, 2147483648
      %v683 = vmul.f32 %v682, 1.442695
      %v684 = vpow.pop %v683
      %v685 = vadd.f32 %v684, 1.0
      %v686 = vrcp.pop %v685
      %v687 = vmul.f32 1.0, %v686
      %v688 = vtanh.pop %v681
      %v689 = vld [vmem:[#allocation4] sm:$0x1]
      %v691 = vlaneseq
      %v692 = vshrl.u32 %v691, 7
      %v693 = vsub.s32 0, %v692
      %v694 = vrot.slane %v689, %v693
      %695 = vrot.lane.b32.xlu0 %v694, 32
      %v696 = vpop.permute.xlu0 %695
      %v698 = vmul.f32 %v687, %v696
      %700 = vrot.lane.b32.xlu0 %v688, 64
      %v701 = vpop.permute.xlu0 %700
      %v703 = vmul.f32 %v687, %v701
      %705 = vrot.lane.b32.xlu0 %v703, 32
      %v706 = vpop.permute.xlu0 %705
      %v708 = vadd.f32 %v698, %v706
      %v709 = vtanh.pop %v708
      %711 = vrot.lane.b32.xlu0 %v709, 64
      %v712 = vpop.permute.xlu0 %711
      %v714 = vmul.f32 %v687, %v712
      %716 = vrot.lane.b32.xlu0 %v714, 32
      %v717 = vpop.permute.xlu0 %716
      %719 = vst.msk [vmem:[#allocation3] sm:$0x1] %vm225, %v717
      %721 = vrot.lane.b32.xlu0 %v708, 96
      %v722 = vpop.permute.xlu0 %721
      %724 = vst.msk [vmem:[#allocation4] sm:$0x1] %vm225, %v722
    $region53: #{fn.1} parent=1 // pred_fallthru
      _
    %p725 = scmp.gt.s32.totalorder %s43, 4
    // Predicated region
    $region54: #{fn.1} parent=1 // pred_check
      %p726 = pneg %p725
    $region55: #{fn.1} parent=1 // pred_check_branch
      %728 = sbr.rel (%p726) target = $region57
    $region56: #{fn.1} parent=1 // pred_region
      %v729 = vld [vmem:[#allocation2 + $0x4] sm:$0x1]
      %v730 = vld [vmem:[#allocation3] sm:$0x1]
      %vm731 = vcmask 261120
      %v733 = vsel %vm731, %v730, 0
      %735 = vmatprep.subr.mxu0 0.0
      %736 = vmatpush1.msra.mxu0 0.0
      %737 = vmatprep.subr.mxu0 0.0
      %738 = vmatpush1.msra.mxu0 0.0
      %739 = vmatprep.subr.mxu0 0.0
      %740 = vmatpush1.msra.mxu0 0.0
      %741 = vmatprep.subr.mxu0 0.0
      %742 = vmatpush1.msra.mxu0 0.0
      %743 = vmatprep.subr.mxu0 0.0
      %744 = vmatpush1.msra.mxu0 0.0
      %745 = vmatprep.subr.mxu0 0.0
      %746 = vmatpush1.msra.mxu0 0.0
      %747 = vmatprep.subr.mxu0 0.0
      %748 = vmatpush1.msra.mxu0 0.0
      %749 = vmatprep.subr.mxu0 0.0
      %750 = vmatpush1.msra.mxu0 0.0
      %751 = vmatprep.subr.mxu0 0.0
      %752 = vmatpush1.msra.mxu0 0.0
      %753 = vmatprep.subr.mxu0 0.0
      %754 = vmatpush1.msra.mxu0 0.0
      %755 = vmatprep.subr.mxu0 0.0
      %756 = vmatpush1.msra.mxu0 0.0
      %757 = vmatprep.subr.mxu0 0.0
      %758 = vmatpush1.msra.mxu0 0.0
      %759 = vmatprep.subr.mxu0 0.0
      %760 = vmatpush1.msra.mxu0 %v223
      %761 = vmatprep.subr.mxu0 0.0
      %762 = vmatpush1.msra.mxu0 %v222
      %763 = vmatprep.subr.mxu0 0.0
      %764 = vmatpush1.msra.mxu0 %v221
      %765 = vmatprep.subr.mxu0 0.0
      %766 = vmatpush1.msra.mxu0 %v220
      %767 = vmatprep.subr.mxu0 0.0
      %768 = vmatpush2.msra.mxu0 0.0
      %769 = vmatprep.subr.mxu0 0.0
      %770 = vmatpush2.msra.mxu0 0.0
      %771 = vmatprep.subr.mxu0 0.0
      %772 = vmatpush2.msra.mxu0 0.0
      %773 = vmatprep.subr.mxu0 0.0
      %774 = vmatpush2.msra.mxu0 0.0
      %775 = vmatprep.subr.mxu0 0.0
      %776 = vmatpush2.msra.mxu0 0.0
      %777 = vmatprep.subr.mxu0 0.0
      %778 = vmatpush2.msra.mxu0 0.0
      %779 = vmatprep.subr.mxu0 0.0
      %780 = vmatpush2.msra.mxu0 0.0
      %781 = vmatprep.subr.mxu0 0.0
      %782 = vmatpush2.msra.mxu0 0.0
      %783 = vmatprep.subr.mxu0 0.0
      %784 = vmatpush2.msra.mxu0 0.0
      %785 = vmatprep.subr.mxu0 0.0
      %786 = vmatpush2.msra.mxu0 0.0
      %787 = vmatprep.subr.mxu0 0.0
      %788 = vmatpush2.msra.mxu0 0.0
      %789 = vmatprep.subr.mxu0 0.0
      %790 = vmatpush2.msra.mxu0 0.0
      %791 = vmatprep.subr.mxu0 0.0
      %792 = vmatpush2.msra.mxu0 0.0
      %793 = vmatprep.subr.mxu0 0.0
      %794 = vmatpush2.msra.mxu0 0.0
      %795 = vmatprep.subr.mxu0 0.0
      %796 = vmatpush2.msra.mxu0 0.0
      %797 = vmatprep.subr.mxu0 0.0
      %798 = vmatpush2.msra.mxu0 0.0
      %799 = vmatprep.mubr.f32.mxu0 0.0
      %800 = vmatmul.mubr.f32.gmra.mxu0 %v733
      %v801 = vpop.f32.mrf.mxu0
      %v802 = vadd.f32 0.0, %v801
      %v803 = vpop.f32.mrf.mxu0
      %804 = vdwg.mxu0
      %v805 = vadd.f32 %v729, %v802
      %v806 = vxor.u32 %v805, 2147483648
      %v807 = vmul.f32 %v806, 1.442695
      %v808 = vpow.pop %v807
      %v809 = vadd.f32 %v808, 1.0
      %v810 = vrcp.pop %v809
      %v811 = vmul.f32 1.0, %v810
      %v812 = vtanh.pop %v805
      %v813 = vld [vmem:[#allocation4] sm:$0x1]
      %v815 = vlaneseq
      %v816 = vshrl.u32 %v815, 7
      %v817 = vsub.s32 0, %v816
      %v818 = vrot.slane %v813, %v817
      %819 = vrot.lane.b32.xlu0 %v818, 32
      %v820 = vpop.permute.xlu0 %819
      %v822 = vmul.f32 %v811, %v820
      %824 = vrot.lane.b32.xlu0 %v812, 64
      %v825 = vpop.permute.xlu0 %824
      %v827 = vmul.f32 %v811, %v825
      %829 = vrot.lane.b32.xlu0 %v827, 32
      %v830 = vpop.permute.xlu0 %829
      %v832 = vadd.f32 %v822, %v830
      %v833 = vtanh.pop %v832
      %835 = vrot.lane.b32.xlu0 %v833, 64
      %v836 = vpop.permute.xlu0 %835
      %v838 = vmul.f32 %v811, %v836
      %840 = vrot.lane.b32.xlu0 %v838, 32
      %v841 = vpop.permute.xlu0 %840
      %843 = vst.msk [vmem:[#allocation3] sm:$0x1] %vm225, %v841
      %845 = vrot.lane.b32.xlu0 %v832, 96
      %v846 = vpop.permute.xlu0 %845
      %848 = vst.msk [vmem:[#allocation4] sm:$0x1] %vm225, %v846
    $region57: #{fn.1} parent=1 // pred_fallthru
      _
    %p849 = scmp.gt.s32.totalorder %s43, 5
    // Predicated region
    $region58: #{fn.1} parent=1 // pred_check
      %p850 = pneg %p849
    $region59: #{fn.1} parent=1 // pred_check_branch
      %852 = sbr.rel (%p850) target = $region61
    $region60: #{fn.1} parent=1 // pred_region
      %v853 = vld [vmem:[#allocation2 + $0x5] sm:$0x1]
      %v854 = vld [vmem:[#allocation3] sm:$0x1]
      %vm855 = vcmask 261120
      %v857 = vsel %vm855, %v854, 0
      %859 = vmatprep.subr.mxu0 0.0
      %860 = vmatpush1.msra.mxu0 0.0
      %861 = vmatprep.subr.mxu0 0.0
      %862 = vmatpush1.msra.mxu0 0.0
      %863 = vmatprep.subr.mxu0 0.0
      %864 = vmatpush1.msra.mxu0 0.0
      %865 = vmatprep.subr.mxu0 0.0
      %866 = vmatpush1.msra.mxu0 0.0
      %867 = vmatprep.subr.mxu0 0.0
      %868 = vmatpush1.msra.mxu0 0.0
      %869 = vmatprep.subr.mxu0 0.0
      %870 = vmatpush1.msra.mxu0 0.0
      %871 = vmatprep.subr.mxu0 0.0
      %872 = vmatpush1.msra.mxu0 0.0
      %873 = vmatprep.subr.mxu0 0.0
      %874 = vmatpush1.msra.mxu0 0.0
      %875 = vmatprep.subr.mxu0 0.0
      %876 = vmatpush1.msra.mxu0 0.0
      %877 = vmatprep.subr.mxu0 0.0
      %878 = vmatpush1.msra.mxu0 0.0
      %879 = vmatprep.subr.mxu0 0.0
      %880 = vmatpush1.msra.mxu0 0.0
      %881 = vmatprep.subr.mxu0 0.0
      %882 = vmatpush1.msra.mxu0 0.0
      %883 = vmatprep.subr.mxu0 0.0
      %884 = vmatpush1.msra.mxu0 %v223
      %885 = vmatprep.subr.mxu0 0.0
      %886 = vmatpush1.msra.mxu0 %v222
      %887 = vmatprep.subr.mxu0 0.0
      %888 = vmatpush1.msra.mxu0 %v221
      %889 = vmatprep.subr.mxu0 0.0
      %890 = vmatpush1.msra.mxu0 %v220
      %891 = vmatprep.subr.mxu0 0.0
      %892 = vmatpush2.msra.mxu0 0.0
      %893 = vmatprep.subr.mxu0 0.0
      %894 = vmatpush2.msra.mxu0 0.0
      %895 = vmatprep.subr.mxu0 0.0
      %896 = vmatpush2.msra.mxu0 0.0
      %897 = vmatprep.subr.mxu0 0.0
      %898 = vmatpush2.msra.mxu0 0.0
      %899 = vmatprep.subr.mxu0 0.0
      %900 = vmatpush2.msra.mxu0 0.0
      %901 = vmatprep.subr.mxu0 0.0
      %902 = vmatpush2.msra.mxu0 0.0
      %903 = vmatprep.subr.mxu0 0.0
      %904 = vmatpush2.msra.mxu0 0.0
      %905 = vmatprep.subr.mxu0 0.0
      %906 = vmatpush2.msra.mxu0 0.0
      %907 = vmatprep.subr.mxu0 0.0
      %908 = vmatpush2.msra.mxu0 0.0
      %909 = vmatprep.subr.mxu0 0.0
      %910 = vmatpush2.msra.mxu0 0.0
      %911 = vmatprep.subr.mxu0 0.0
      %912 = vmatpush2.msra.mxu0 0.0
      %913 = vmatprep.subr.mxu0 0.0
      %914 = vmatpush2.msra.mxu0 0.0
      %915 = vmatprep.subr.mxu0 0.0
      %916 = vmatpush2.msra.mxu0 0.0
      %917 = vmatprep.subr.mxu0 0.0
      %918 = vmatpush2.msra.mxu0 0.0
      %919 = vmatprep.subr.mxu0 0.0
      %920 = vmatpush2.msra.mxu0 0.0
      %921 = vmatprep.subr.mxu0 0.0
      %922 = vmatpush2.msra.mxu0 0.0
      %923 = vmatprep.mubr.f32.mxu0 0.0
      %924 = vmatmul.mubr.f32.gmra.mxu0 %v857
      %v925 = vpop.f32.mrf.mxu0
      %v926 = vadd.f32 0.0, %v925
      %v927 = vpop.f32.mrf.mxu0
      %928 = vdwg.mxu0
      %v929 = vadd.f32 %v853, %v926
      %v930 = vxor.u32 %v929, 2147483648
      %v931 = vmul.f32 %v930, 1.442695
      %v932 = vpow.pop %v931
      %v933 = vadd.f32 %v932, 1.0
      %v934 = vrcp.pop %v933
      %v935 = vmul.f32 1.0, %v934
      %v936 = vtanh.pop %v929
      %v937 = vld [vmem:[#allocation4] sm:$0x1]
      %v939 = vlaneseq
      %v940 = vshrl.u32 %v939, 7
      %v941 = vsub.s32 0, %v940
      %v942 = vrot.slane %v937, %v941
      %943 = vrot.lane.b32.xlu0 %v942, 32
      %v944 = vpop.permute.xlu0 %943
      %v946 = vmul.f32 %v935, %v944
      %948 = vrot.lane.b32.xlu0 %v936, 64
      %v949 = vpop.permute.xlu0 %948
      %v951 = vmul.f32 %v935, %v949
      %953 = vrot.lane.b32.xlu0 %v951, 32
      %v954 = vpop.permute.xlu0 %953
      %v956 = vadd.f32 %v946, %v954
      %v957 = vtanh.pop %v956
      %959 = vrot.lane.b32.xlu0 %v957, 64
      %v960 = vpop.permute.xlu0 %959
      %v962 = vmul.f32 %v935, %v960
      %964 = vrot.lane.b32.xlu0 %v962, 32
      %v965 = vpop.permute.xlu0 %964
      %967 = vst.msk [vmem:[#allocation3] sm:$0x1] %vm225, %v965
      %969 = vrot.lane.b32.xlu0 %v956, 96
      %v970 = vpop.permute.xlu0 %969
      %972 = vst.msk [vmem:[#allocation4] sm:$0x1] %vm225, %v970
    $region61: #{fn.1} parent=1 // pred_fallthru
      _
    %p973 = scmp.gt.s32.totalorder %s43, 6
    // Predicated region
    $region62: #{fn.1} parent=1 // pred_check
      %p974 = pneg %p973
    $region63: #{fn.1} parent=1 // pred_check_branch
      %976 = sbr.rel (%p974) target = $region65
    $region64: #{fn.1} parent=1 // pred_region
      %v977 = vld [vmem:[#allocation2 + $0x6] sm:$0x1]
      %v978 = vld [vmem:[#allocation3] sm:$0x1]
      %vm979 = vcmask 261120
      %v981 = vsel %vm979, %v978, 0
      %983 = vmatprep.subr.mxu0 0.0
      %984 = vmatpush1.msra.mxu0 0.0
      %985 = vmatprep.subr.mxu0 0.0
      %986 = vmatpush1.msra.mxu0 0.0
      %987 = vmatprep.subr.mxu0 0.0
      %988 = vmatpush1.msra.mxu0 0.0
      %989 = vmatprep.subr.mxu0 0.0
      %990 = vmatpush1.msra.mxu0 0.0
      %991 = vmatprep.subr.mxu0 0.0
      %992 = vmatpush1.msra.mxu0 0.0
      %993 = vmatprep.subr.mxu0 0.0
      %994 = vmatpush1.msra.mxu0 0.0
      %995 = vmatprep.subr.mxu0 0.0
      %996 = vmatpush1.msra.mxu0 0.0
      %997 = vmatprep.subr.mxu0 0.0
      %998 = vmatpush1.msra.mxu0 0.0
      %999 = vmatprep.subr.mxu0 0.0
      %1000 = vmatpush1.msra.mxu0 0.0
      %1001 = vmatprep.subr.mxu0 0.0
      %1002 = vmatpush1.msra.mxu0 0.0
      %1003 = vmatprep.subr.mxu0 0.0
      %1004 = vmatpush1.msra.mxu0 0.0
      %1005 = vmatprep.subr.mxu0 0.0
      %1006 = vmatpush1.msra.mxu0 0.0
      %1007 = vmatprep.subr.mxu0 0.0
      %1008 = vmatpush1.msra.mxu0 %v223
      %1009 = vmatprep.subr.mxu0 0.0
      %1010 = vmatpush1.msra.mxu0 %v222
      %1011 = vmatprep.subr.mxu0 0.0
      %1012 = vmatpush1.msra.mxu0 %v221
      %1013 = vmatprep.subr.mxu0 0.0
      %1014 = vmatpush1.msra.mxu0 %v220
      %1015 = vmatprep.subr.mxu0 0.0
      %1016 = vmatpush2.msra.mxu0 0.0
      %1017 = vmatprep.subr.mxu0 0.0
      %1018 = vmatpush2.msra.mxu0 0.0
      %1019 = vmatprep.subr.mxu0 0.0
      %1020 = vmatpush2.msra.mxu0 0.0
      %1021 = vmatprep.subr.mxu0 0.0
      %1022 = vmatpush2.msra.mxu0 0.0
      %1023 = vmatprep.subr.mxu0 0.0
      %1024 = vmatpush2.msra.mxu0 0.0
      %1025 = vmatprep.subr.mxu0 0.0
      %1026 = vmatpush2.msra.mxu0 0.0
      %1027 = vmatprep.subr.mxu0 0.0
      %1028 = vmatpush2.msra.mxu0 0.0
      %1029 = vmatprep.subr.mxu0 0.0
      %1030 = vmatpush2.msra.mxu0 0.0
      %1031 = vmatprep.subr.mxu0 0.0
      %1032 = vmatpush2.msra.mxu0 0.0
      %1033 = vmatprep.subr.mxu0 0.0
      %1034 = vmatpush2.msra.mxu0 0.0
      %1035 = vmatprep.subr.mxu0 0.0
      %1036 = vmatpush2.msra.mxu0 0.0
      %1037 = vmatprep.subr.mxu0 0.0
      %1038 = vmatpush2.msra.mxu0 0.0
      %1039 = vmatprep.subr.mxu0 0.0
      %1040 = vmatpush2.msra.mxu0 0.0
      %1041 = vmatprep.subr.mxu0 0.0
      %1042 = vmatpush2.msra.mxu0 0.0
      %1043 = vmatprep.subr.mxu0 0.0
      %1044 = vmatpush2.msra.mxu0 0.0
      %1045 = vmatprep.subr.mxu0 0.0
      %1046 = vmatpush2.msra.mxu0 0.0
      %1047 = vmatprep.mubr.f32.mxu0 0.0
      %1048 = vmatmul.mubr.f32.gmra.mxu0 %v981
      %v1049 = vpop.f32.mrf.mxu0
      %v1050 = vadd.f32 0.0, %v1049
      %v1051 = vpop.f32.mrf.mxu0
      %1052 = vdwg.mxu0
      %v1053 = vadd.f32 %v977, %v1050
      %v1054 = vxor.u32 %v1053, 2147483648
      %v1055 = vmul.f32 %v1054, 1.442695
      %v1056 = vpow.pop %v1055
      %v1057 = vadd.f32 %v1056, 1.0
      %v1058 = vrcp.pop %v1057
      %v1059 = vmul.f32 1.0, %v1058
      %v1060 = vtanh.pop %v1053
      %v1061 = vld [vmem:[#allocation4] sm:$0x1]
      %v1063 = vlaneseq
      %v1064 = vshrl.u32 %v1063, 7
      %v1065 = vsub.s32 0, %v1064
      %v1066 = vrot.slane %v1061, %v1065
      %1067 = vrot.lane.b32.xlu0 %v1066, 32
      %v1068 = vpop.permute.xlu0 %1067
      %v1070 = vmul.f32 %v1059, %v1068
      %1072 = vrot.lane.b32.xlu0 %v1060, 64
      %v1073 = vpop.permute.xlu0 %1072
      %v1075 = vmul.f32 %v1059, %v1073
      %1077 = vrot.lane.b32.xlu0 %v1075, 32
      %v1078 = vpop.permute.xlu0 %1077
      %v1080 = vadd.f32 %v1070, %v1078
      %v1081 = vtanh.pop %v1080
      %1083 = vrot.lane.b32.xlu0 %v1081, 64
      %v1084 = vpop.permute.xlu0 %1083
      %v1086 = vmul.f32 %v1059, %v1084
      %1088 = vrot.lane.b32.xlu0 %v1086, 32
      %v1089 = vpop.permute.xlu0 %1088
      %1091 = vst.msk [vmem:[#allocation3] sm:$0x1] %vm225, %v1089
      %1093 = vrot.lane.b32.xlu0 %v1080, 96
      %v1094 = vpop.permute.xlu0 %1093
      %1096 = vst.msk [vmem:[#allocation4] sm:$0x1] %vm225, %v1094
    $region65: #{fn.1} parent=1 // pred_fallthru
      _
    %p1097 = scmp.gt.s32.totalorder %s43, 7
    // Predicated region
    $region66: #{fn.1} parent=1 // pred_check
      %p1098 = pneg %p1097
    $region67: #{fn.1} parent=1 // pred_check_branch
      %1100 = sbr.rel (%p1098) target = $region69
    $region68: #{fn.1} parent=1 // pred_region
      %v1101 = vld [vmem:[#allocation2 + $0x7] sm:$0x1]
      %v1102 = vld [vmem:[#allocation3] sm:$0x1]
      %vm1103 = vcmask 261120
      %v1105 = vsel %vm1103, %v1102, 0
      %1107 = vmatprep.subr.mxu0 0.0
      %1108 = vmatpush1.msra.mxu0 0.0
      %1109 = vmatprep.subr.mxu0 0.0
      %1110 = vmatpush1.msra.mxu0 0.0
      %1111 = vmatprep.subr.mxu0 0.0
      %1112 = vmatpush1.msra.mxu0 0.0
      %1113 = vmatprep.subr.mxu0 0.0
      %1114 = vmatpush1.msra.mxu0 0.0
      %1115 = vmatprep.subr.mxu0 0.0
      %1116 = vmatpush1.msra.mxu0 0.0
      %1117 = vmatprep.subr.mxu0 0.0
      %1118 = vmatpush1.msra.mxu0 0.0
      %1119 = vmatprep.subr.mxu0 0.0
      %1120 = vmatpush1.msra.mxu0 0.0
      %1121 = vmatprep.subr.mxu0 0.0
      %1122 = vmatpush1.msra.mxu0 0.0
      %1123 = vmatprep.subr.mxu0 0.0
      %1124 = vmatpush1.msra.mxu0 0.0
      %1125 = vmatprep.subr.mxu0 0.0
      %1126 = vmatpush1.msra.mxu0 0.0
      %1127 = vmatprep.subr.mxu0 0.0
      %1128 = vmatpush1.msra.mxu0 0.0
      %1129 = vmatprep.subr.mxu0 0.0
      %1130 = vmatpush1.msra.mxu0 0.0
      %1131 = vmatprep.subr.mxu0 0.0
      %1132 = vmatpush1.msra.mxu0 %v223
      %1133 = vmatprep.subr.mxu0 0.0
      %1134 = vmatpush1.msra.mxu0 %v222
      %1135 = vmatprep.subr.mxu0 0.0
      %1136 = vmatpush1.msra.mxu0 %v221
      %1137 = vmatprep.subr.mxu0 0.0
      %1138 = vmatpush1.msra.mxu0 %v220
      %1139 = vmatprep.subr.mxu0 0.0
      %1140 = vmatpush2.msra.mxu0 0.0
      %1141 = vmatprep.subr.mxu0 0.0
      %1142 = vmatpush2.msra.mxu0 0.0
      %1143 = vmatprep.subr.mxu0 0.0
      %1144 = vmatpush2.msra.mxu0 0.0
      %1145 = vmatprep.subr.mxu0 0.0
      %1146 = vmatpush2.msra.mxu0 0.0
      %1147 = vmatprep.subr.mxu0 0.0
      %1148 = vmatpush2.msra.mxu0 0.0
      %1149 = vmatprep.subr.mxu0 0.0
      %1150 = vmatpush2.msra.mxu0 0.0
      %1151 = vmatprep.subr.mxu0 0.0
      %1152 = vmatpush2.msra.mxu0 0.0
      %1153 = vmatprep.subr.mxu0 0.0
      %1154 = vmatpush2.msra.mxu0 0.0
      %1155 = vmatprep.subr.mxu0 0.0
      %1156 = vmatpush2.msra.mxu0 0.0
      %1157 = vmatprep.subr.mxu0 0.0
      %1158 = vmatpush2.msra.mxu0 0.0
      %1159 = vmatprep.subr.mxu0 0.0
      %1160 = vmatpush2.msra.mxu0 0.0
      %1161 = vmatprep.subr.mxu0 0.0
      %1162 = vmatpush2.msra.mxu0 0.0
      %1163 = vmatprep.subr.mxu0 0.0
      %1164 = vmatpush2.msra.mxu0 0.0
      %1165 = vmatprep.subr.mxu0 0.0
      %1166 = vmatpush2.msra.mxu0 0.0
      %1167 = vmatprep.subr.mxu0 0.0
      %1168 = vmatpush2.msra.mxu0 0.0
      %1169 = vmatprep.subr.mxu0 0.0
      %1170 = vmatpush2.msra.mxu0 0.0
      %1171 = vmatprep.mubr.f32.mxu0 0.0
      %1172 = vmatmul.mubr.f32.gmra.mxu0 %v1105
      %v1173 = vpop.f32.mrf.mxu0
      %v1174 = vadd.f32 0.0, %v1173
      %v1175 = vpop.f32.mrf.mxu0
      %1176 = vdwg.mxu0
      %v1177 = vadd.f32 %v1101, %v1174
      %v1178 = vxor.u32 %v1177, 2147483648
      %v1179 = vmul.f32 %v1178, 1.442695
      %v1180 = vpow.pop %v1179
      %v1181 = vadd.f32 %v1180, 1.0
      %v1182 = vrcp.pop %v1181
      %v1183 = vmul.f32 1.0, %v1182
      %v1184 = vtanh.pop %v1177
      %v1185 = vld [vmem:[#allocation4] sm:$0x1]
      %v1187 = vlaneseq
      %v1188 = vshrl.u32 %v1187, 7
      %v1189 = vsub.s32 0, %v1188
      %v1190 = vrot.slane %v1185, %v1189
      %1191 = vrot.lane.b32.xlu0 %v1190, 32
      %v1192 = vpop.permute.xlu0 %1191
      %v1194 = vmul.f32 %v1183, %v1192
      %1196 = vrot.lane.b32.xlu0 %v1184, 64
      %v1197 = vpop.permute.xlu0 %1196
      %v1199 = vmul.f32 %v1183, %v1197
      %1201 = vrot.lane.b32.xlu0 %v1199, 32
      %v1202 = vpop.permute.xlu0 %1201
      %v1204 = vadd.f32 %v1194, %v1202
      %v1205 = vtanh.pop %v1204
      %1207 = vrot.lane.b32.xlu0 %v1205, 64
      %v1208 = vpop.permute.xlu0 %1207
      %v1210 = vmul.f32 %v1183, %v1208
      %1212 = vrot.lane.b32.xlu0 %v1210, 32
      %v1213 = vpop.permute.xlu0 %1212
      %1215 = vst.msk [vmem:[#allocation3] sm:$0x1] %vm225, %v1213
      %1217 = vrot.lane.b32.xlu0 %v1204, 96
      %v1218 = vpop.permute.xlu0 %1217
      %1220 = vst.msk [vmem:[#allocation4] sm:$0x1] %vm225, %v1218
    $region69: #{fn.1} parent=1 // pred_fallthru
      _
    %p1221 = scmp.gt.s32.totalorder %s43, 8
    // Predicated region
    $region70: #{fn.1} parent=1 // pred_check
      %p1222 = pneg %p1221
    $region71: #{fn.1} parent=1 // pred_check_branch
      %1224 = sbr.rel (%p1222) target = $region73
    $region72: #{fn.1} parent=1 // pred_region
      %v1225 = vld [vmem:[#allocation2 + $0x8] sm:$0x1]
      %v1226 = vld [vmem:[#allocation3] sm:$0x1]
      %vm1227 = vcmask 261120
      %v1229 = vsel %vm1227, %v1226, 0
      %1231 = vmatprep.subr.mxu0 0.0
      %1232 = vmatpush1.msra.mxu0 0.0
      %1233 = vmatprep.subr.mxu0 0.0
      %1234 = vmatpush1.msra.mxu0 0.0
      %1235 = vmatprep.subr.mxu0 0.0
      %1236 = vmatpush1.msra.mxu0 0.0
      %1237 = vmatprep.subr.mxu0 0.0
      %1238 = vmatpush1.msra.mxu0 0.0
      %1239 = vmatprep.subr.mxu0 0.0
      %1240 = vmatpush1.msra.mxu0 0.0
      %1241 = vmatprep.subr.mxu0 0.0
      %1242 = vmatpush1.msra.mxu0 0.0
      %1243 = vmatprep.subr.mxu0 0.0
      %1244 = vmatpush1.msra.mxu0 0.0
      %1245 = vmatprep.subr.mxu0 0.0
      %1246 = vmatpush1.msra.mxu0 0.0
      %1247 = vmatprep.subr.mxu0 0.0
      %1248 = vmatpush1.msra.mxu0 0.0
      %1249 = vmatprep.subr.mxu0 0.0
      %1250 = vmatpush1.msra.mxu0 0.0
      %1251 = vmatprep.subr.mxu0 0.0
      %1252 = vmatpush1.msra.mxu0 0.0
      %1253 = vmatprep.subr.mxu0 0.0
      %1254 = vmatpush1.msra.mxu0 0.0
      %1255 = vmatprep.subr.mxu0 0.0
      %1256 = vmatpush1.msra.mxu0 %v223
      %1257 = vmatprep.subr.mxu0 0.0
      %1258 = vmatpush1.msra.mxu0 %v222
      %1259 = vmatprep.subr.mxu0 0.0
      %1260 = vmatpush1.msra.mxu0 %v221
      %1261 = vmatprep.subr.mxu0 0.0
      %1262 = vmatpush1.msra.mxu0 %v220
      %1263 = vmatprep.subr.mxu0 0.0
      %1264 = vmatpush2.msra.mxu0 0.0
      %1265 = vmatprep.subr.mxu0 0.0
      %1266 = vmatpush2.msra.mxu0 0.0
      %1267 = vmatprep.subr.mxu0 0.0
      %1268 = vmatpush2.msra.mxu0 0.0
      %1269 = vmatprep.subr.mxu0 0.0
      %1270 = vmatpush2.msra.mxu0 0.0
      %1271 = vmatprep.subr.mxu0 0.0
      %1272 = vmatpush2.msra.mxu0 0.0
      %1273 = vmatprep.subr.mxu0 0.0
      %1274 = vmatpush2.msra.mxu0 0.0
      %1275 = vmatprep.subr.mxu0 0.0
      %1276 = vmatpush2.msra.mxu0 0.0
      %1277 = vmatprep.subr.mxu0 0.0
      %1278 = vmatpush2.msra.mxu0 0.0
      %1279 = vmatprep.subr.mxu0 0.0
      %1280 = vmatpush2.msra.mxu0 0.0
      %1281 = vmatprep.subr.mxu0 0.0
      %1282 = vmatpush2.msra.mxu0 0.0
      %1283 = vmatprep.subr.mxu0 0.0
      %1284 = vmatpush2.msra.mxu0 0.0
      %1285 = vmatprep.subr.mxu0 0.0
      %1286 = vmatpush2.msra.mxu0 0.0
      %1287 = vmatprep.subr.mxu0 0.0
      %1288 = vmatpush2.msra.mxu0 0.0
      %1289 = vmatprep.subr.mxu0 0.0
      %1290 = vmatpush2.msra.mxu0 0.0
      %1291 = vmatprep.subr.mxu0 0.0
      %1292 = vmatpush2.msra.mxu0 0.0
      %1293 = vmatprep.subr.mxu0 0.0
      %1294 = vmatpush2.msra.mxu0 0.0
      %1295 = vmatprep.mubr.f32.mxu0 0.0
      %1296 = vmatmul.mubr.f32.gmra.mxu0 %v1229
      %v1297 = vpop.f32.mrf.mxu0
      %v1298 = vadd.f32 0.0, %v1297
      %v1299 = vpop.f32.mrf.mxu0
      %1300 = vdwg.mxu0
      %v1301 = vadd.f32 %v1225, %v1298
      %v1302 = vxor.u32 %v1301, 2147483648
      %v1303 = vmul.f32 %v1302, 1.442695
      %v1304 = vpow.pop %v1303
      %v1305 = vadd.f32 %v1304, 1.0
      %v1306 = vrcp.pop %v1305
      %v1307 = vmul.f32 1.0, %v1306
      %v1308 = vtanh.pop %v1301
      %v1309 = vld [vmem:[#allocation4] sm:$0x1]
      %v1311 = vlaneseq
      %v1312 = vshrl.u32 %v1311, 7
      %v1313 = vsub.s32 0, %v1312
      %v1314 = vrot.slane %v1309, %v1313
      %1315 = vrot.lane.b32.xlu0 %v1314, 32
      %v1316 = vpop.permute.xlu0 %1315
      %v1318 = vmul.f32 %v1307, %v1316
      %1320 = vrot.lane.b32.xlu0 %v1308, 64
      %v1321 = vpop.permute.xlu0 %1320
      %v1323 = vmul.f32 %v1307, %v1321
      %1325 = vrot.lane.b32.xlu0 %v1323, 32
      %v1326 = vpop.permute.xlu0 %1325
      %v1328 = vadd.f32 %v1318, %v1326
      %v1329 = vtanh.pop %v1328
      %1331 = vrot.lane.b32.xlu0 %v1329, 64
      %v1332 = vpop.permute.xlu0 %1331
      %v1334 = vmul.f32 %v1307, %v1332
      %1336 = vrot.lane.b32.xlu0 %v1334, 32
      %v1337 = vpop.permute.xlu0 %1336
      %1339 = vst.msk [vmem:[#allocation3] sm:$0x1] %vm225, %v1337
      %1341 = vrot.lane.b32.xlu0 %v1328, 96
      %v1342 = vpop.permute.xlu0 %1341
      %1344 = vst.msk [vmem:[#allocation4] sm:$0x1] %vm225, %v1342
    $region73: #{fn.1} parent=1 // pred_fallthru
      _
    %p1345 = scmp.gt.s32.totalorder %s43, 9
    // Predicated region
    $region74: #{fn.1} parent=1 // pred_check
      %p1346 = pneg %p1345
    $region75: #{fn.1} parent=1 // pred_check_branch
      %1348 = sbr.rel (%p1346) target = $region77
    $region76: #{fn.1} parent=1 // pred_region
      %v1349 = vld [vmem:[#allocation2 + $0x9] sm:$0x1]
      %v1350 = vld [vmem:[#allocation3] sm:$0x1]
      %vm1351 = vcmask 261120
      %v1353 = vsel %vm1351, %v1350, 0
      %1355 = vmatprep.subr.mxu0 0.0
      %1356 = vmatpush1.msra.mxu0 0.0
      %1357 = vmatprep.subr.mxu0 0.0
      %1358 = vmatpush1.msra.mxu0 0.0
      %1359 = vmatprep.subr.mxu0 0.0
      %1360 = vmatpush1.msra.mxu0 0.0
      %1361 = vmatprep.subr.mxu0 0.0
      %1362 = vmatpush1.msra.mxu0 0.0
      %1363 = vmatprep.subr.mxu0 0.0
      %1364 = vmatpush1.msra.mxu0 0.0
      %1365 = vmatprep.subr.mxu0 0.0
      %1366 = vmatpush1.msra.mxu0 0.0
      %1367 = vmatprep.subr.mxu0 0.0
      %1368 = vmatpush1.msra.mxu0 0.0
      %1369 = vmatprep.subr.mxu0 0.0
      %1370 = vmatpush1.msra.mxu0 0.0
      %1371 = vmatprep.subr.mxu0 0.0
      %1372 = vmatpush1.msra.mxu0 0.0
      %1373 = vmatprep.subr.mxu0 0.0
      %1374 = vmatpush1.msra.mxu0 0.0
      %1375 = vmatprep.subr.mxu0 0.0
      %1376 = vmatpush1.msra.mxu0 0.0
      %1377 = vmatprep.subr.mxu0 0.0
      %1378 = vmatpush1.msra.mxu0 0.0
      %1379 = vmatprep.subr.mxu0 0.0
      %1380 = vmatpush1.msra.mxu0 %v223
      %1381 = vmatprep.subr.mxu0 0.0
      %1382 = vmatpush1.msra.mxu0 %v222
      %1383 = vmatprep.subr.mxu0 0.0
      %1384 = vmatpush1.msra.mxu0 %v221
      %1385 = vmatprep.subr.mxu0 0.0
      %1386 = vmatpush1.msra.mxu0 %v220
      %1387 = vmatprep.subr.mxu0 0.0
      %1388 = vmatpush2.msra.mxu0 0.0
      %1389 = vmatprep.subr.mxu0 0.0
      %1390 = vmatpush2.msra.mxu0 0.0
      %1391 = vmatprep.subr.mxu0 0.0
      %1392 = vmatpush2.msra.mxu0 0.0
      %1393 = vmatprep.subr.mxu0 0.0
      %1394 = vmatpush2.msra.mxu0 0.0
      %1395 = vmatprep.subr.mxu0 0.0
      %1396 = vmatpush2.msra.mxu0 0.0
      %1397 = vmatprep.subr.mxu0 0.0
      %1398 = vmatpush2.msra.mxu0 0.0
      %1399 = vmatprep.subr.mxu0 0.0
      %1400 = vmatpush2.msra.mxu0 0.0
      %1401 = vmatprep.subr.mxu0 0.0
      %1402 = vmatpush2.msra.mxu0 0.0
      %1403 = vmatprep.subr.mxu0 0.0
      %1404 = vmatpush2.msra.mxu0 0.0
      %1405 = vmatprep.subr.mxu0 0.0
      %1406 = vmatpush2.msra.mxu0 0.0
      %1407 = vmatprep.subr.mxu0 0.0
      %1408 = vmatpush2.msra.mxu0 0.0
      %1409 = vmatprep.subr.mxu0 0.0
      %1410 = vmatpush2.msra.mxu0 0.0
      %1411 = vmatprep.subr.mxu0 0.0
      %1412 = vmatpush2.msra.mxu0 0.0
      %1413 = vmatprep.subr.mxu0 0.0
      %1414 = vmatpush2.msra.mxu0 0.0
      %1415 = vmatprep.subr.mxu0 0.0
      %1416 = vmatpush2.msra.mxu0 0.0
      %1417 = vmatprep.subr.mxu0 0.0
      %1418 = vmatpush2.msra.mxu0 0.0
      %1419 = vmatprep.mubr.f32.mxu0 0.0
      %1420 = vmatmul.mubr.f32.gmra.mxu0 %v1353
      %v1421 = vpop.f32.mrf.mxu0
      %v1422 = vadd.f32 0.0, %v1421
      %v1423 = vpop.f32.mrf.mxu0
      %1424 = vdwg.mxu0
      %v1425 = vadd.f32 %v1349, %v1422
      %v1426 = vxor.u32 %v1425, 2147483648
      %v1427 = vmul.f32 %v1426, 1.442695
      %v1428 = vpow.pop %v1427
      %v1429 = vadd.f32 %v1428, 1.0
      %v1430 = vrcp.pop %v1429
      %v1431 = vmul.f32 1.0, %v1430
      %v1432 = vtanh.pop %v1425
      %v1433 = vld [vmem:[#allocation4] sm:$0x1]
      %v1435 = vlaneseq
      %v1436 = vshrl.u32 %v1435, 7
      %v1437 = vsub.s32 0, %v1436
      %v1438 = vrot.slane %v1433, %v1437
      %1439 = vrot.lane.b32.xlu0 %v1438, 32
      %v1440 = vpop.permute.xlu0 %1439
      %v1442 = vmul.f32 %v1431, %v1440
      %1444 = vrot.lane.b32.xlu0 %v1432, 64
      %v1445 = vpop.permute.xlu0 %1444
      %v1447 = vmul.f32 %v1431, %v1445
      %1449 = vrot.lane.b32.xlu0 %v1447, 32
      %v1450 = vpop.permute.xlu0 %1449
      %v1452 = vadd.f32 %v1442, %v1450
      %v1453 = vtanh.pop %v1452
      %1455 = vrot.lane.b32.xlu0 %v1453, 64
      %v1456 = vpop.permute.xlu0 %1455
      %v1458 = vmul.f32 %v1431, %v1456
      %1460 = vrot.lane.b32.xlu0 %v1458, 32
      %v1461 = vpop.permute.xlu0 %1460
      %1463 = vst.msk [vmem:[#allocation3] sm:$0x1] %vm225, %v1461
      %1465 = vrot.lane.b32.xlu0 %v1452, 96
      %v1466 = vpop.permute.xlu0 %1465
      %1468 = vst.msk [vmem:[#allocation4] sm:$0x1] %vm225, %v1466
    $region77: #{fn.1} parent=1 // pred_fallthru
      _
    %p1469 = scmp.gt.s32.totalorder %s43, 10
    // Predicated region
    $region78: #{fn.1} parent=1 // pred_check
      %p1470 = pneg %p1469
    $region79: #{fn.1} parent=1 // pred_check_branch
      %1472 = sbr.rel (%p1470) target = $region81
    $region80: #{fn.1} parent=1 // pred_region
      %v1473 = vld [vmem:[#allocation2 + $0xa] sm:$0x1]
      %v1474 = vld [vmem:[#allocation3] sm:$0x1]
      %vm1475 = vcmask 261120
      %v1477 = vsel %vm1475, %v1474, 0
      %1479 = vmatprep.subr.mxu0 0.0
      %1480 = vmatpush1.msra.mxu0 0.0
      %1481 = vmatprep.subr.mxu0 0.0
      %1482 = vmatpush1.msra.mxu0 0.0
      %1483 = vmatprep.subr.mxu0 0.0
      %1484 = vmatpush1.msra.mxu0 0.0
      %1485 = vmatprep.subr.mxu0 0.0
      %1486 = vmatpush1.msra.mxu0 0.0
      %1487 = vmatprep.subr.mxu0 0.0
      %1488 = vmatpush1.msra.mxu0 0.0
      %1489 = vmatprep.subr.mxu0 0.0
      %1490 = vmatpush1.msra.mxu0 0.0
      %1491 = vmatprep.subr.mxu0 0.0
      %1492 = vmatpush1.msra.mxu0 0.0
      %1493 = vmatprep.subr.mxu0 0.0
      %1494 = vmatpush1.msra.mxu0 0.0
      %1495 = vmatprep.subr.mxu0 0.0
      %1496 = vmatpush1.msra.mxu0 0.0
      %1497 = vmatprep.subr.mxu0 0.0
      %1498 = vmatpush1.msra.mxu0 0.0
      %1499 = vmatprep.subr.mxu0 0.0
      %1500 = vmatpush1.msra.mxu0 0.0
      %1501 = vmatprep.subr.mxu0 0.0
      %1502 = vmatpush1.msra.mxu0 0.0
      %1503 = vmatprep.subr.mxu0 0.0
      %1504 = vmatpush1.msra.mxu0 %v223
      %1505 = vmatprep.subr.mxu0 0.0
      %1506 = vmatpush1.msra.mxu0 %v222
      %1507 = vmatprep.subr.mxu0 0.0
      %1508 = vmatpush1.msra.mxu0 %v221
      %1509 = vmatprep.subr.mxu0 0.0
      %1510 = vmatpush1.msra.mxu0 %v220
      %1511 = vmatprep.subr.mxu0 0.0
      %1512 = vmatpush2.msra.mxu0 0.0
      %1513 = vmatprep.subr.mxu0 0.0
      %1514 = vmatpush2.msra.mxu0 0.0
      %1515 = vmatprep.subr.mxu0 0.0
      %1516 = vmatpush2.msra.mxu0 0.0
      %1517 = vmatprep.subr.mxu0 0.0
      %1518 = vmatpush2.msra.mxu0 0.0
      %1519 = vmatprep.subr.mxu0 0.0
      %1520 = vmatpush2.msra.mxu0 0.0
      %1521 = vmatprep.subr.mxu0 0.0
      %1522 = vmatpush2.msra.mxu0 0.0
      %1523 = vmatprep.subr.mxu0 0.0
      %1524 = vmatpush2.msra.mxu0 0.0
      %1525 = vmatprep.subr.mxu0 0.0
      %1526 = vmatpush2.msra.mxu0 0.0
      %1527 = vmatprep.subr.mxu0 0.0
      %1528 = vmatpush2.msra.mxu0 0.0
      %1529 = vmatprep.subr.mxu0 0.0
      %1530 = vmatpush2.msra.mxu0 0.0
      %1531 = vmatprep.subr.mxu0 0.0
      %1532 = vmatpush2.msra.mxu0 0.0
      %1533 = vmatprep.subr.mxu0 0.0
      %1534 = vmatpush2.msra.mxu0 0.0
      %1535 = vmatprep.subr.mxu0 0.0
      %1536 = vmatpush2.msra.mxu0 0.0
      %1537 = vmatprep.subr.mxu0 0.0
      %1538 = vmatpush2.msra.mxu0 0.0
      %1539 = vmatprep.subr.mxu0 0.0
      %1540 = vmatpush2.msra.mxu0 0.0
      %1541 = vmatprep.subr.mxu0 0.0
      %1542 = vmatpush2.msra.mxu0 0.0
      %1543 = vmatprep.mubr.f32.mxu0 0.0
      %1544 = vmatmul.mubr.f32.gmra.mxu0 %v1477
      %v1545 = vpop.f32.mrf.mxu0
      %v1546 = vadd.f32 0.0, %v1545
      %v1547 = vpop.f32.mrf.mxu0
      %1548 = vdwg.mxu0
      %v1549 = vadd.f32 %v1473, %v1546
      %v1550 = vxor.u32 %v1549, 2147483648
      %v1551 = vmul.f32 %v1550, 1.442695
      %v1552 = vpow.pop %v1551
      %v1553 = vadd.f32 %v1552, 1.0
      %v1554 = vrcp.pop %v1553
      %v1555 = vmul.f32 1.0, %v1554
      %v1556 = vtanh.pop %v1549
      %v1557 = vld [vmem:[#allocation4] sm:$0x1]
      %v1559 = vlaneseq
      %v1560 = vshrl.u32 %v1559, 7
      %v1561 = vsub.s32 0, %v1560
      %v1562 = vrot.slane %v1557, %v1561
      %1563 = vrot.lane.b32.xlu0 %v1562, 32
      %v1564 = vpop.permute.xlu0 %1563
      %v1566 = vmul.f32 %v1555, %v1564
      %1568 = vrot.lane.b32.xlu0 %v1556, 64
      %v1569 = vpop.permute.xlu0 %1568
      %v1571 = vmul.f32 %v1555, %v1569
      %1573 = vrot.lane.b32.xlu0 %v1571, 32
      %v1574 = vpop.permute.xlu0 %1573
      %v1576 = vadd.f32 %v1566, %v1574
      %v1577 = vtanh.pop %v1576
      %1579 = vrot.lane.b32.xlu0 %v1577, 64
      %v1580 = vpop.permute.xlu0 %1579
      %v1582 = vmul.f32 %v1555, %v1580
      %1584 = vrot.lane.b32.xlu0 %v1582, 32
      %v1585 = vpop.permute.xlu0 %1584
      %1587 = vst.msk [vmem:[#allocation3] sm:$0x1] %vm225, %v1585
      %1589 = vrot.lane.b32.xlu0 %v1576, 96
      %v1590 = vpop.permute.xlu0 %1589
      %1592 = vst.msk [vmem:[#allocation4] sm:$0x1] %vm225, %v1590
    $region81: #{fn.1} parent=1 // pred_fallthru
      _
    %p1593 = scmp.gt.s32.totalorder %s43, 11
    // Predicated region
    $region82: #{fn.1} parent=1 // pred_check
      %p1594 = pneg %p1593
    $region83: #{fn.1} parent=1 // pred_check_branch
      %1596 = sbr.rel (%p1594) target = $region85
    $region84: #{fn.1} parent=1 // pred_region
      %v1597 = vld [vmem:[#allocation2 + $0xb] sm:$0x1]
      %v1598 = vld [vmem:[#allocation3] sm:$0x1]
      %vm1599 = vcmask 261120
      %v1601 = vsel %vm1599, %v1598, 0
      %1603 = vmatprep.subr.mxu0 0.0
      %1604 = vmatpush1.msra.mxu0 0.0
      %1605 = vmatprep.subr.mxu0 0.0
      %1606 = vmatpush1.msra.mxu0 0.0
      %1607 = vmatprep.subr.mxu0 0.0
      %1608 = vmatpush1.msra.mxu0 0.0
      %1609 = vmatprep.subr.mxu0 0.0
      %1610 = vmatpush1.msra.mxu0 0.0
      %1611 = vmatprep.subr.mxu0 0.0
      %1612 = vmatpush1.msra.mxu0 0.0
      %1613 = vmatprep.subr.mxu0 0.0
      %1614 = vmatpush1.msra.mxu0 0.0
      %1615 = vmatprep.subr.mxu0 0.0
      %1616 = vmatpush1.msra.mxu0 0.0
      %1617 = vmatprep.subr.mxu0 0.0
      %1618 = vmatpush1.msra.mxu0 0.0
      %1619 = vmatprep.subr.mxu0 0.0
      %1620 = vmatpush1.msra.mxu0 0.0
      %1621 = vmatprep.subr.mxu0 0.0
      %1622 = vmatpush1.msra.mxu0 0.0
      %1623 = vmatprep.subr.mxu0 0.0
      %1624 = vmatpush1.msra.mxu0 0.0
      %1625 = vmatprep.subr.mxu0 0.0
      %1626 = vmatpush1.msra.mxu0 0.0
      %1627 = vmatprep.subr.mxu0 0.0
      %1628 = vmatpush1.msra.mxu0 %v223
      %1629 = vmatprep.subr.mxu0 0.0
      %1630 = vmatpush1.msra.mxu0 %v222
      %1631 = vmatprep.subr.mxu0 0.0
      %1632 = vmatpush1.msra.mxu0 %v221
      %1633 = vmatprep.subr.mxu0 0.0
      %1634 = vmatpush1.msra.mxu0 %v220
      %1635 = vmatprep.subr.mxu0 0.0
      %1636 = vmatpush2.msra.mxu0 0.0
      %1637 = vmatprep.subr.mxu0 0.0
      %1638 = vmatpush2.msra.mxu0 0.0
      %1639 = vmatprep.subr.mxu0 0.0
      %1640 = vmatpush2.msra.mxu0 0.0
      %1641 = vmatprep.subr.mxu0 0.0
      %1642 = vmatpush2.msra.mxu0 0.0
      %1643 = vmatprep.subr.mxu0 0.0
      %1644 = vmatpush2.msra.mxu0 0.0
      %1645 = vmatprep.subr.mxu0 0.0
      %1646 = vmatpush2.msra.mxu0 0.0
      %1647 = vmatprep.subr.mxu0 0.0
      %1648 = vmatpush2.msra.mxu0 0.0
      %1649 = vmatprep.subr.mxu0 0.0
      %1650 = vmatpush2.msra.mxu0 0.0
      %1651 = vmatprep.subr.mxu0 0.0
      %1652 = vmatpush2.msra.mxu0 0.0
      %1653 = vmatprep.subr.mxu0 0.0
      %1654 = vmatpush2.msra.mxu0 0.0
      %1655 = vmatprep.subr.mxu0 0.0
      %1656 = vmatpush2.msra.mxu0 0.0
      %1657 = vmatprep.subr.mxu0 0.0
      %1658 = vmatpush2.msra.mxu0 0.0
      %1659 = vmatprep.subr.mxu0 0.0
      %1660 = vmatpush2.msra.mxu0 0.0
      %1661 = vmatprep.subr.mxu0 0.0
      %1662 = vmatpush2.msra.mxu0 0.0
      %1663 = vmatprep.subr.mxu0 0.0
      %1664 = vmatpush2.msra.mxu0 0.0
      %1665 = vmatprep.subr.mxu0 0.0
      %1666 = vmatpush2.msra.mxu0 0.0
      %1667 = vmatprep.mubr.f32.mxu0 0.0
      %1668 = vmatmul.mubr.f32.gmra.mxu0 %v1601
      %v1669 = vpop.f32.mrf.mxu0
      %v1670 = vadd.f32 0.0, %v1669
      %v1671 = vpop.f32.mrf.mxu0
      %1672 = vdwg.mxu0
      %v1673 = vadd.f32 %v1597, %v1670
      %v1674 = vxor.u32 %v1673, 2147483648
      %v1675 = vmul.f32 %v1674, 1.442695
      %v1676 = vpow.pop %v1675
      %v1677 = vadd.f32 %v1676, 1.0
      %v1678 = vrcp.pop %v1677
      %v1679 = vmul.f32 1.0, %v1678
      %v1680 = vtanh.pop %v1673
      %v1681 = vld [vmem:[#allocation4] sm:$0x1]
      %v1683 = vlaneseq
      %v1684 = vshrl.u32 %v1683, 7
      %v1685 = vsub.s32 0, %v1684
      %v1686 = vrot.slane %v1681, %v1685
      %1687 = vrot.lane.b32.xlu0 %v1686, 32
      %v1688 = vpop.permute.xlu0 %1687
      %v1690 = vmul.f32 %v1679, %v1688
      %1692 = vrot.lane.b32.xlu0 %v1680, 64
      %v1693 = vpop.permute.xlu0 %1692
      %v1695 = vmul.f32 %v1679, %v1693
      %1697 = vrot.lane.b32.xlu0 %v1695, 32
      %v1698 = vpop.permute.xlu0 %1697
      %v1700 = vadd.f32 %v1690, %v1698
      %v1701 = vtanh.pop %v1700
      %1703 = vrot.lane.b32.xlu0 %v1701, 64
      %v1704 = vpop.permute.xlu0 %1703
      %v1706 = vmul.f32 %v1679, %v1704
      %1708 = vrot.lane.b32.xlu0 %v1706, 32
      %v1709 = vpop.permute.xlu0 %1708
      %1711 = vst.msk [vmem:[#allocation3] sm:$0x1] %vm225, %v1709
      %1713 = vrot.lane.b32.xlu0 %v1700, 96
      %v1714 = vpop.permute.xlu0 %1713
      %1716 = vst.msk [vmem:[#allocation4] sm:$0x1] %vm225, %v1714
    $region85: #{fn.1} parent=1 // pred_fallthru
      _
    %p1717 = scmp.gt.s32.totalorder %s43, 12
    // Predicated region
    $region86: #{fn.1} parent=1 // pred_check
      %p1718 = pneg %p1717
    $region87: #{fn.1} parent=1 // pred_check_branch
      %1720 = sbr.rel (%p1718) target = $region89
    $region88: #{fn.1} parent=1 // pred_region
      %v1721 = vld [vmem:[#allocation2 + $0xc] sm:$0x1]
      %v1722 = vld [vmem:[#allocation3] sm:$0x1]
      %vm1723 = vcmask 261120
      %v1725 = vsel %vm1723, %v1722, 0
      %1727 = vmatprep.subr.mxu0 0.0
      %1728 = vmatpush1.msra.mxu0 0.0
      %1729 = vmatprep.subr.mxu0 0.0
      %1730 = vmatpush1.msra.mxu0 0.0
      %1731 = vmatprep.subr.mxu0 0.0
      %1732 = vmatpush1.msra.mxu0 0.0
      %1733 = vmatprep.subr.mxu0 0.0
      %1734 = vmatpush1.msra.mxu0 0.0
      %1735 = vmatprep.subr.mxu0 0.0
      %1736 = vmatpush1.msra.mxu0 0.0
      %1737 = vmatprep.subr.mxu0 0.0
      %1738 = vmatpush1.msra.mxu0 0.0
      %1739 = vmatprep.subr.mxu0 0.0
      %1740 = vmatpush1.msra.mxu0 0.0
      %1741 = vmatprep.subr.mxu0 0.0
      %1742 = vmatpush1.msra.mxu0 0.0
      %1743 = vmatprep.subr.mxu0 0.0
      %1744 = vmatpush1.msra.mxu0 0.0
      %1745 = vmatprep.subr.mxu0 0.0
      %1746 = vmatpush1.msra.mxu0 0.0
      %1747 = vmatprep.subr.mxu0 0.0
      %1748 = vmatpush1.msra.mxu0 0.0
      %1749 = vmatprep.subr.mxu0 0.0
      %1750 = vmatpush1.msra.mxu0 0.0
      %1751 = vmatprep.subr.mxu0 0.0
      %1752 = vmatpush1.msra.mxu0 %v223
      %1753 = vmatprep.subr.mxu0 0.0
      %1754 = vmatpush1.msra.mxu0 %v222
      %1755 = vmatprep.subr.mxu0 0.0
      %1756 = vmatpush1.msra.mxu0 %v221
      %1757 = vmatprep.subr.mxu0 0.0
      %1758 = vmatpush1.msra.mxu0 %v220
      %1759 = vmatprep.subr.mxu0 0.0
      %1760 = vmatpush2.msra.mxu0 0.0
      %1761 = vmatprep.subr.mxu0 0.0
      %1762 = vmatpush2.msra.mxu0 0.0
      %1763 = vmatprep.subr.mxu0 0.0
      %1764 = vmatpush2.msra.mxu0 0.0
      %1765 = vmatprep.subr.mxu0 0.0
      %1766 = vmatpush2.msra.mxu0 0.0
      %1767 = vmatprep.subr.mxu0 0.0
      %1768 = vmatpush2.msra.mxu0 0.0
      %1769 = vmatprep.subr.mxu0 0.0
      %1770 = vmatpush2.msra.mxu0 0.0
      %1771 = vmatprep.subr.mxu0 0.0
      %1772 = vmatpush2.msra.mxu0 0.0
      %1773 = vmatprep.subr.mxu0 0.0
      %1774 = vmatpush2.msra.mxu0 0.0
      %1775 = vmatprep.subr.mxu0 0.0
      %1776 = vmatpush2.msra.mxu0 0.0
      %1777 = vmatprep.subr.mxu0 0.0
      %1778 = vmatpush2.msra.mxu0 0.0
      %1779 = vmatprep.subr.mxu0 0.0
      %1780 = vmatpush2.msra.mxu0 0.0
      %1781 = vmatprep.subr.mxu0 0.0
      %1782 = vmatpush2.msra.mxu0 0.0
      %1783 = vmatprep.subr.mxu0 0.0
      %1784 = vmatpush2.msra.mxu0 0.0
      %1785 = vmatprep.subr.mxu0 0.0
      %1786 = vmatpush2.msra.mxu0 0.0
      %1787 = vmatprep.subr.mxu0 0.0
      %1788 = vmatpush2.msra.mxu0 0.0
      %1789 = vmatprep.subr.mxu0 0.0
      %1790 = vmatpush2.msra.mxu0 0.0
      %1791 = vmatprep.mubr.f32.mxu0 0.0
      %1792 = vmatmul.mubr.f32.gmra.mxu0 %v1725
      %v1793 = vpop.f32.mrf.mxu0
      %v1794 = vadd.f32 0.0, %v1793
      %v1795 = vpop.f32.mrf.mxu0
      %1796 = vdwg.mxu0
      %v1797 = vadd.f32 %v1721, %v1794
      %v1798 = vxor.u32 %v1797, 2147483648
      %v1799 = vmul.f32 %v1798, 1.442695
      %v1800 = vpow.pop %v1799
      %v1801 = vadd.f32 %v1800, 1.0
      %v1802 = vrcp.pop %v1801
      %v1803 = vmul.f32 1.0, %v1802
      %v1804 = vtanh.pop %v1797
      %v1805 = vld [vmem:[#allocation4] sm:$0x1]
      %v1807 = vlaneseq
      %v1808 = vshrl.u32 %v1807, 7
      %v1809 = vsub.s32 0, %v1808
      %v1810 = vrot.slane %v1805, %v1809
      %1811 = vrot.lane.b32.xlu0 %v1810, 32
      %v1812 = vpop.permute.xlu0 %1811
      %v1814 = vmul.f32 %v1803, %v1812
      %1816 = vrot.lane.b32.xlu0 %v1804, 64
      %v1817 = vpop.permute.xlu0 %1816
      %v1819 = vmul.f32 %v1803, %v1817
      %1821 = vrot.lane.b32.xlu0 %v1819, 32
      %v1822 = vpop.permute.xlu0 %1821
      %v1824 = vadd.f32 %v1814, %v1822
      %v1825 = vtanh.pop %v1824
      %1827 = vrot.lane.b32.xlu0 %v1825, 64
      %v1828 = vpop.permute.xlu0 %1827
      %v1830 = vmul.f32 %v1803, %v1828
      %1832 = vrot.lane.b32.xlu0 %v1830, 32
      %v1833 = vpop.permute.xlu0 %1832
      %1835 = vst.msk [vmem:[#allocation3] sm:$0x1] %vm225, %v1833
      %1837 = vrot.lane.b32.xlu0 %v1824, 96
      %v1838 = vpop.permute.xlu0 %1837
      %1840 = vst.msk [vmem:[#allocation4] sm:$0x1] %vm225, %v1838
    $region89: #{fn.1} parent=1 // pred_fallthru
      _
    %p1841 = scmp.gt.s32.totalorder %s43, 13
    // Predicated region
    $region90: #{fn.1} parent=1 // pred_check
      %p1842 = pneg %p1841
    $region91: #{fn.1} parent=1 // pred_check_branch
      %1844 = sbr.rel (%p1842) target = $region93
    $region92: #{fn.1} parent=1 // pred_region
      %v1845 = vld [vmem:[#allocation2 + $0xd] sm:$0x1]
      %v1846 = vld [vmem:[#allocation3] sm:$0x1]
      %vm1847 = vcmask 261120
      %v1849 = vsel %vm1847, %v1846, 0
      %1851 = vmatprep.subr.mxu0 0.0
      %1852 = vmatpush1.msra.mxu0 0.0
      %1853 = vmatprep.subr.mxu0 0.0
      %1854 = vmatpush1.msra.mxu0 0.0
      %1855 = vmatprep.subr.mxu0 0.0
      %1856 = vmatpush1.msra.mxu0 0.0
      %1857 = vmatprep.subr.mxu0 0.0
      %1858 = vmatpush1.msra.mxu0 0.0
      %1859 = vmatprep.subr.mxu0 0.0
      %1860 = vmatpush1.msra.mxu0 0.0
      %1861 = vmatprep.subr.mxu0 0.0
      %1862 = vmatpush1.msra.mxu0 0.0
      %1863 = vmatprep.subr.mxu0 0.0
      %1864 = vmatpush1.msra.mxu0 0.0
      %1865 = vmatprep.subr.mxu0 0.0
      %1866 = vmatpush1.msra.mxu0 0.0
      %1867 = vmatprep.subr.mxu0 0.0
      %1868 = vmatpush1.msra.mxu0 0.0
      %1869 = vmatprep.subr.mxu0 0.0
      %1870 = vmatpush1.msra.mxu0 0.0
      %1871 = vmatprep.subr.mxu0 0.0
      %1872 = vmatpush1.msra.mxu0 0.0
      %1873 = vmatprep.subr.mxu0 0.0
      %1874 = vmatpush1.msra.mxu0 0.0
      %1875 = vmatprep.subr.mxu0 0.0
      %1876 = vmatpush1.msra.mxu0 %v223
      %1877 = vmatprep.subr.mxu0 0.0
      %1878 = vmatpush1.msra.mxu0 %v222
      %1879 = vmatprep.subr.mxu0 0.0
      %1880 = vmatpush1.msra.mxu0 %v221
      %1881 = vmatprep.subr.mxu0 0.0
      %1882 = vmatpush1.msra.mxu0 %v220
      %1883 = vmatprep.subr.mxu0 0.0
      %1884 = vmatpush2.msra.mxu0 0.0
      %1885 = vmatprep.subr.mxu0 0.0
      %1886 = vmatpush2.msra.mxu0 0.0
      %1887 = vmatprep.subr.mxu0 0.0
      %1888 = vmatpush2.msra.mxu0 0.0
      %1889 = vmatprep.subr.mxu0 0.0
      %1890 = vmatpush2.msra.mxu0 0.0
      %1891 = vmatprep.subr.mxu0 0.0
      %1892 = vmatpush2.msra.mxu0 0.0
      %1893 = vmatprep.subr.mxu0 0.0
      %1894 = vmatpush2.msra.mxu0 0.0
      %1895 = vmatprep.subr.mxu0 0.0
      %1896 = vmatpush2.msra.mxu0 0.0
      %1897 = vmatprep.subr.mxu0 0.0
      %1898 = vmatpush2.msra.mxu0 0.0
      %1899 = vmatprep.subr.mxu0 0.0
      %1900 = vmatpush2.msra.mxu0 0.0
      %1901 = vmatprep.subr.mxu0 0.0
      %1902 = vmatpush2.msra.mxu0 0.0
      %1903 = vmatprep.subr.mxu0 0.0
      %1904 = vmatpush2.msra.mxu0 0.0
      %1905 = vmatprep.subr.mxu0 0.0
      %1906 = vmatpush2.msra.mxu0 0.0
      %1907 = vmatprep.subr.mxu0 0.0
      %1908 = vmatpush2.msra.mxu0 0.0
      %1909 = vmatprep.subr.mxu0 0.0
      %1910 = vmatpush2.msra.mxu0 0.0
      %1911 = vmatprep.subr.mxu0 0.0
      %1912 = vmatpush2.msra.mxu0 0.0
      %1913 = vmatprep.subr.mxu0 0.0
      %1914 = vmatpush2.msra.mxu0 0.0
      %1915 = vmatprep.mubr.f32.mxu0 0.0
      %1916 = vmatmul.mubr.f32.gmra.mxu0 %v1849
      %v1917 = vpop.f32.mrf.mxu0
      %v1918 = vadd.f32 0.0, %v1917
      %v1919 = vpop.f32.mrf.mxu0
      %1920 = vdwg.mxu0
      %v1921 = vadd.f32 %v1845, %v1918
      %v1922 = vxor.u32 %v1921, 2147483648
      %v1923 = vmul.f32 %v1922, 1.442695
      %v1924 = vpow.pop %v1923
      %v1925 = vadd.f32 %v1924, 1.0
      %v1926 = vrcp.pop %v1925
      %v1927 = vmul.f32 1.0, %v1926
      %v1928 = vtanh.pop %v1921
      %v1929 = vld [vmem:[#allocation4] sm:$0x1]
      %v1931 = vlaneseq
      %v1932 = vshrl.u32 %v1931, 7
      %v1933 = vsub.s32 0, %v1932
      %v1934 = vrot.slane %v1929, %v1933
      %1935 = vrot.lane.b32.xlu0 %v1934, 32
      %v1936 = vpop.permute.xlu0 %1935
      %v1938 = vmul.f32 %v1927, %v1936
      %1940 = vrot.lane.b32.xlu0 %v1928, 64
      %v1941 = vpop.permute.xlu0 %1940
      %v1943 = vmul.f32 %v1927, %v1941
      %1945 = vrot.lane.b32.xlu0 %v1943, 32
      %v1946 = vpop.permute.xlu0 %1945
      %v1948 = vadd.f32 %v1938, %v1946
      %v1949 = vtanh.pop %v1948
      %1951 = vrot.lane.b32.xlu0 %v1949, 64
      %v1952 = vpop.permute.xlu0 %1951
      %v1954 = vmul.f32 %v1927, %v1952
      %1956 = vrot.lane.b32.xlu0 %v1954, 32
      %v1957 = vpop.permute.xlu0 %1956
      %1959 = vst.msk [vmem:[#allocation3] sm:$0x1] %vm225, %v1957
      %1961 = vrot.lane.b32.xlu0 %v1948, 96
      %v1962 = vpop.permute.xlu0 %1961
      %1964 = vst.msk [vmem:[#allocation4] sm:$0x1] %vm225, %v1962
    $region93: #{fn.1} parent=1 // pred_fallthru
      _
    %p1965 = scmp.gt.s32.totalorder %s43, 14
    // Predicated region
    $region94: #{fn.1} parent=1 // pred_check
      %p1966 = pneg %p1965
    $region95: #{fn.1} parent=1 // pred_check_branch
      %1968 = sbr.rel (%p1966) target = $region97
    $region96: #{fn.1} parent=1 // pred_region
      %v1969 = vld [vmem:[#allocation2 + $0xe] sm:$0x1]
      %v1970 = vld [vmem:[#allocation3] sm:$0x1]
      %vm1971 = vcmask 261120
      %v1973 = vsel %vm1971, %v1970, 0
      %1975 = vmatprep.subr.mxu0 0.0
      %1976 = vmatpush1.msra.mxu0 0.0
      %1977 = vmatprep.subr.mxu0 0.0
      %1978 = vmatpush1.msra.mxu0 0.0
      %1979 = vmatprep.subr.mxu0 0.0
      %1980 = vmatpush1.msra.mxu0 0.0
      %1981 = vmatprep.subr.mxu0 0.0
      %1982 = vmatpush1.msra.mxu0 0.0
      %1983 = vmatprep.subr.mxu0 0.0
      %1984 = vmatpush1.msra.mxu0 0.0
      %1985 = vmatprep.subr.mxu0 0.0
      %1986 = vmatpush1.msra.mxu0 0.0
      %1987 = vmatprep.subr.mxu0 0.0
      %1988 = vmatpush1.msra.mxu0 0.0
      %1989 = vmatprep.subr.mxu0 0.0
      %1990 = vmatpush1.msra.mxu0 0.0
      %1991 = vmatprep.subr.mxu0 0.0
      %1992 = vmatpush1.msra.mxu0 0.0
      %1993 = vmatprep.subr.mxu0 0.0
      %1994 = vmatpush1.msra.mxu0 0.0
      %1995 = vmatprep.subr.mxu0 0.0
      %1996 = vmatpush1.msra.mxu0 0.0
      %1997 = vmatprep.subr.mxu0 0.0
      %1998 = vmatpush1.msra.mxu0 0.0
      %1999 = vmatprep.subr.mxu0 0.0
      %2000 = vmatpush1.msra.mxu0 %v223
      %2001 = vmatprep.subr.mxu0 0.0
      %2002 = vmatpush1.msra.mxu0 %v222
      %2003 = vmatprep.subr.mxu0 0.0
      %2004 = vmatpush1.msra.mxu0 %v221
      %2005 = vmatprep.subr.mxu0 0.0
      %2006 = vmatpush1.msra.mxu0 %v220
      %2007 = vmatprep.subr.mxu0 0.0
      %2008 = vmatpush2.msra.mxu0 0.0
      %2009 = vmatprep.subr.mxu0 0.0
      %2010 = vmatpush2.msra.mxu0 0.0
      %2011 = vmatprep.subr.mxu0 0.0
      %2012 = vmatpush2.msra.mxu0 0.0
      %2013 = vmatprep.subr.mxu0 0.0
      %2014 = vmatpush2.msra.mxu0 0.0
      %2015 = vmatprep.subr.mxu0 0.0
      %2016 = vmatpush2.msra.mxu0 0.0
      %2017 = vmatprep.subr.mxu0 0.0
      %2018 = vmatpush2.msra.mxu0 0.0
      %2019 = vmatprep.subr.mxu0 0.0
      %2020 = vmatpush2.msra.mxu0 0.0
      %2021 = vmatprep.subr.mxu0 0.0
      %2022 = vmatpush2.msra.mxu0 0.0
      %2023 = vmatprep.subr.mxu0 0.0
      %2024 = vmatpush2.msra.mxu0 0.0
      %2025 = vmatprep.subr.mxu0 0.0
      %2026 = vmatpush2.msra.mxu0 0.0
      %2027 = vmatprep.subr.mxu0 0.0
      %2028 = vmatpush2.msra.mxu0 0.0
      %2029 = vmatprep.subr.mxu0 0.0
      %2030 = vmatpush2.msra.mxu0 0.0
      %2031 = vmatprep.subr.mxu0 0.0
      %2032 = vmatpush2.msra.mxu0 0.0
      %2033 = vmatprep.subr.mxu0 0.0
      %2034 = vmatpush2.msra.mxu0 0.0
      %2035 = vmatprep.subr.mxu0 0.0
      %2036 = vmatpush2.msra.mxu0 0.0
      %2037 = vmatprep.subr.mxu0 0.0
      %2038 = vmatpush2.msra.mxu0 0.0
      %2039 = vmatprep.mubr.f32.mxu0 0.0
      %2040 = vmatmul.mubr.f32.gmra.mxu0 %v1973
      %v2041 = vpop.f32.mrf.mxu0
      %v2042 = vadd.f32 0.0, %v2041
      %v2043 = vpop.f32.mrf.mxu0
      %2044 = vdwg.mxu0
      %v2045 = vadd.f32 %v1969, %v2042
      %v2046 = vxor.u32 %v2045, 2147483648
      %v2047 = vmul.f32 %v2046, 1.442695
      %v2048 = vpow.pop %v2047
      %v2049 = vadd.f32 %v2048, 1.0
      %v2050 = vrcp.pop %v2049
      %v2051 = vmul.f32 1.0, %v2050
      %v2052 = vtanh.pop %v2045
      %v2053 = vld [vmem:[#allocation4] sm:$0x1]
      %v2055 = vlaneseq
      %v2056 = vshrl.u32 %v2055, 7
      %v2057 = vsub.s32 0, %v2056
      %v2058 = vrot.slane %v2053, %v2057
      %2059 = vrot.lane.b32.xlu0 %v2058, 32
      %v2060 = vpop.permute.xlu0 %2059
      %v2062 = vmul.f32 %v2051, %v2060
      %2064 = vrot.lane.b32.xlu0 %v2052, 64
      %v2065 = vpop.permute.xlu0 %2064
      %v2067 = vmul.f32 %v2051, %v2065
      %2069 = vrot.lane.b32.xlu0 %v2067, 32
      %v2070 = vpop.permute.xlu0 %2069
      %v2072 = vadd.f32 %v2062, %v2070
      %v2073 = vtanh.pop %v2072
      %2075 = vrot.lane.b32.xlu0 %v2073, 64
      %v2076 = vpop.permute.xlu0 %2075
      %v2078 = vmul.f32 %v2051, %v2076
      %2080 = vrot.lane.b32.xlu0 %v2078, 32
      %v2081 = vpop.permute.xlu0 %2080
      %2083 = vst.msk [vmem:[#allocation3] sm:$0x1] %vm225, %v2081
      %2085 = vrot.lane.b32.xlu0 %v2072, 96
      %v2086 = vpop.permute.xlu0 %2085
      %2088 = vst.msk [vmem:[#allocation4] sm:$0x1] %vm225, %v2086
    $region97: #{fn.1} parent=1 // pred_fallthru
      _
    %p2089 = scmp.gt.s32.totalorder %s43, 15
    // Predicated region
    $region98: #{fn.1} parent=1 // pred_check
      %p2090 = pneg %p2089
    $region99: #{fn.1} parent=1 // pred_check_branch
      %2092 = sbr.rel (%p2090) target = $region101
    $region100: #{fn.1} parent=1 // pred_region
      %v2093 = vld [vmem:[#allocation2 + $0xf] sm:$0x1]
      %v2094 = vld [vmem:[#allocation3] sm:$0x1]
      %vm2095 = vcmask 261120
      %v2097 = vsel %vm2095, %v2094, 0
      %2099 = vmatprep.subr.mxu0 0.0
      %2100 = vmatpush1.msra.mxu0 0.0
      %2101 = vmatprep.subr.mxu0 0.0
      %2102 = vmatpush1.msra.mxu0 0.0
      %2103 = vmatprep.subr.mxu0 0.0
      %2104 = vmatpush1.msra.mxu0 0.0
      %2105 = vmatprep.subr.mxu0 0.0
      %2106 = vmatpush1.msra.mxu0 0.0
      %2107 = vmatprep.subr.mxu0 0.0
      %2108 = vmatpush1.msra.mxu0 0.0
      %2109 = vmatprep.subr.mxu0 0.0
      %2110 = vmatpush1.msra.mxu0 0.0
      %2111 = vmatprep.subr.mxu0 0.0
      %2112 = vmatpush1.msra.mxu0 0.0
      %2113 = vmatprep.subr.mxu0 0.0
      %2114 = vmatpush1.msra.mxu0 0.0
      %2115 = vmatprep.subr.mxu0 0.0
      %2116 = vmatpush1.msra.mxu0 0.0
      %2117 = vmatprep.subr.mxu0 0.0
      %2118 = vmatpush1.msra.mxu0 0.0
      %2119 = vmatprep.subr.mxu0 0.0
      %2120 = vmatpush1.msra.mxu0 0.0
      %2121 = vmatprep.subr.mxu0 0.0
      %2122 = vmatpush1.msra.mxu0 0.0
      %2123 = vmatprep.subr.mxu0 0.0
      %2124 = vmatpush1.msra.mxu0 %v223
      %2125 = vmatprep.subr.mxu0 0.0
      %2126 = vmatpush1.msra.mxu0 %v222
      %2127 = vmatprep.subr.mxu0 0.0
      %2128 = vmatpush1.msra.mxu0 %v221
      %2129 = vmatprep.subr.mxu0 0.0
      %2130 = vmatpush1.msra.mxu0 %v220
      %2131 = vmatprep.subr.mxu0 0.0
      %2132 = vmatpush2.msra.mxu0 0.0
      %2133 = vmatprep.subr.mxu0 0.0
      %2134 = vmatpush2.msra.mxu0 0.0
      %2135 = vmatprep.subr.mxu0 0.0
      %2136 = vmatpush2.msra.mxu0 0.0
      %2137 = vmatprep.subr.mxu0 0.0
      %2138 = vmatpush2.msra.mxu0 0.0
      %2139 = vmatprep.subr.mxu0 0.0
      %2140 = vmatpush2.msra.mxu0 0.0
      %2141 = vmatprep.subr.mxu0 0.0
      %2142 = vmatpush2.msra.mxu0 0.0
      %2143 = vmatprep.subr.mxu0 0.0
      %2144 = vmatpush2.msra.mxu0 0.0
      %2145 = vmatprep.subr.mxu0 0.0
      %2146 = vmatpush2.msra.mxu0 0.0
      %2147 = vmatprep.subr.mxu0 0.0
      %2148 = vmatpush2.msra.mxu0 0.0
      %2149 = vmatprep.subr.mxu0 0.0
      %2150 = vmatpush2.msra.mxu0 0.0
      %2151 = vmatprep.subr.mxu0 0.0
      %2152 = vmatpush2.msra.mxu0 0.0
      %2153 = vmatprep.subr.mxu0 0.0
      %2154 = vmatpush2.msra.mxu0 0.0
      %2155 = vmatprep.subr.mxu0 0.0
      %2156 = vmatpush2.msra.mxu0 0.0
      %2157 = vmatprep.subr.mxu0 0.0
      %2158 = vmatpush2.msra.mxu0 0.0
      %2159 = vmatprep.subr.mxu0 0.0
      %2160 = vmatpush2.msra.mxu0 0.0
      %2161 = vmatprep.subr.mxu0 0.0
      %2162 = vmatpush2.msra.mxu0 0.0
      %2163 = vmatprep.mubr.f32.mxu0 0.0
      %2164 = vmatmul.mubr.f32.gmra.mxu0 %v2097
      %v2165 = vpop.f32.mrf.mxu0
      %v2166 = vadd.f32 0.0, %v2165
      %v2167 = vpop.f32.mrf.mxu0
      %2168 = vdwg.mxu0
      %v2169 = vadd.f32 %v2093, %v2166
      %v2170 = vxor.u32 %v2169, 2147483648
      %v2171 = vmul.f32 %v2170, 1.442695
      %v2172 = vpow.pop %v2171
      %v2173 = vadd.f32 %v2172, 1.0
      %v2174 = vrcp.pop %v2173
      %v2175 = vmul.f32 1.0, %v2174
      %v2176 = vtanh.pop %v2169
      %v2177 = vld [vmem:[#allocation4] sm:$0x1]
      %v2179 = vlaneseq
      %v2180 = vshrl.u32 %v2179, 7
      %v2181 = vsub.s32 0, %v2180
      %v2182 = vrot.slane %v2177, %v2181
      %2183 = vrot.lane.b32.xlu0 %v2182, 32
      %v2184 = vpop.permute.xlu0 %2183
      %v2186 = vmul.f32 %v2175, %v2184
      %2188 = vrot.lane.b32.xlu0 %v2176, 64
      %v2189 = vpop.permute.xlu0 %2188
      %v2191 = vmul.f32 %v2175, %v2189
      %2193 = vrot.lane.b32.xlu0 %v2191, 32
      %v2194 = vpop.permute.xlu0 %2193
      %v2196 = vadd.f32 %v2186, %v2194
      %v2197 = vtanh.pop %v2196
      %2199 = vrot.lane.b32.xlu0 %v2197, 64
      %v2200 = vpop.permute.xlu0 %2199
      %v2202 = vmul.f32 %v2175, %v2200
      %2204 = vrot.lane.b32.xlu0 %v2202, 32
      %v2205 = vpop.permute.xlu0 %2204
      %2207 = vst.msk [vmem:[#allocation3] sm:$0x1] %vm225, %v2205
      %2209 = vrot.lane.b32.xlu0 %v2196, 96
      %v2210 = vpop.permute.xlu0 %2209
      %2212 = vst.msk [vmem:[#allocation4] sm:$0x1] %vm225, %v2210
    $region101: #{fn.1} parent=1 // pred_fallthru
      _
    %p2213 = scmp.gt.s32.totalorder %s43, 16
    // Predicated region
    $region102: #{fn.1} parent=1 // pred_check
      %p2214 = pneg %p2213
    $region103: #{fn.1} parent=1 // pred_check_branch
      %2216 = sbr.rel (%p2214) target = $region105
    $region104: #{fn.1} parent=1 // pred_region
      %v2217 = vld [vmem:[#allocation2 + $0x10] sm:$0x1]
      %v2218 = vld [vmem:[#allocation3] sm:$0x1]
      %vm2219 = vcmask 261120
      %v2221 = vsel %vm2219, %v2218, 0
      %2223 = vmatprep.subr.mxu0 0.0
      %2224 = vmatpush1.msra.mxu0 0.0
      %2225 = vmatprep.subr.mxu0 0.0
      %2226 = vmatpush1.msra.mxu0 0.0
      %2227 = vmatprep.subr.mxu0 0.0
      %2228 = vmatpush1.msra.mxu0 0.0
      %2229 = vmatprep.subr.mxu0 0.0
      %2230 = vmatpush1.msra.mxu0 0.0
      %2231 = vmatprep.subr.mxu0 0.0
      %2232 = vmatpush1.msra.mxu0 0.0
      %2233 = vmatprep.subr.mxu0 0.0
      %2234 = vmatpush1.msra.mxu0 0.0
      %2235 = vmatprep.subr.mxu0 0.0
      %2236 = vmatpush1.msra.mxu0 0.0
      %2237 = vmatprep.subr.mxu0 0.0
      %2238 = vmatpush1.msra.mxu0 0.0
      %2239 = vmatprep.subr.mxu0 0.0
      %2240 = vmatpush1.msra.mxu0 0.0
      %2241 = vmatprep.subr.mxu0 0.0
      %2242 = vmatpush1.msra.mxu0 0.0
      %2243 = vmatprep.subr.mxu0 0.0
      %2244 = vmatpush1.msra.mxu0 0.0
      %2245 = vmatprep.subr.mxu0 0.0
      %2246 = vmatpush1.msra.mxu0 0.0
      %2247 = vmatprep.subr.mxu0 0.0
      %2248 = vmatpush1.msra.mxu0 %v223
      %2249 = vmatprep.subr.mxu0 0.0
      %2250 = vmatpush1.msra.mxu0 %v222
      %2251 = vmatprep.subr.mxu0 0.0
      %2252 = vmatpush1.msra.mxu0 %v221
      %2253 = vmatprep.subr.mxu0 0.0
      %2254 = vmatpush1.msra.mxu0 %v220
      %2255 = vmatprep.subr.mxu0 0.0
      %2256 = vmatpush2.msra.mxu0 0.0
      %2257 = vmatprep.subr.mxu0 0.0
      %2258 = vmatpush2.msra.mxu0 0.0
      %2259 = vmatprep.subr.mxu0 0.0
      %2260 = vmatpush2.msra.mxu0 0.0
      %2261 = vmatprep.subr.mxu0 0.0
      %2262 = vmatpush2.msra.mxu0 0.0
      %2263 = vmatprep.subr.mxu0 0.0
      %2264 = vmatpush2.msra.mxu0 0.0
      %2265 = vmatprep.subr.mxu0 0.0
      %2266 = vmatpush2.msra.mxu0 0.0
      %2267 = vmatprep.subr.mxu0 0.0
      %2268 = vmatpush2.msra.mxu0 0.0
      %2269 = vmatprep.subr.mxu0 0.0
      %2270 = vmatpush2.msra.mxu0 0.0
      %2271 = vmatprep.subr.mxu0 0.0
      %2272 = vmatpush2.msra.mxu0 0.0
      %2273 = vmatprep.subr.mxu0 0.0
      %2274 = vmatpush2.msra.mxu0 0.0
      %2275 = vmatprep.subr.mxu0 0.0
      %2276 = vmatpush2.msra.mxu0 0.0
      %2277 = vmatprep.subr.mxu0 0.0
      %2278 = vmatpush2.msra.mxu0 0.0
      %2279 = vmatprep.subr.mxu0 0.0
      %2280 = vmatpush2.msra.mxu0 0.0
      %2281 = vmatprep.subr.mxu0 0.0
      %2282 = vmatpush2.msra.mxu0 0.0
      %2283 = vmatprep.subr.mxu0 0.0
      %2284 = vmatpush2.msra.mxu0 0.0
      %2285 = vmatprep.subr.mxu0 0.0
      %2286 = vmatpush2.msra.mxu0 0.0
      %2287 = vmatprep.mubr.f32.mxu0 0.0
      %2288 = vmatmul.mubr.f32.gmra.mxu0 %v2221
      %v2289 = vpop.f32.mrf.mxu0
      %v2290 = vadd.f32 0.0, %v2289
      %v2291 = vpop.f32.mrf.mxu0
      %2292 = vdwg.mxu0
      %v2293 = vadd.f32 %v2217, %v2290
      %v2294 = vxor.u32 %v2293, 2147483648
      %v2295 = vmul.f32 %v2294, 1.442695
      %v2296 = vpow.pop %v2295
      %v2297 = vadd.f32 %v2296, 1.0
      %v2298 = vrcp.pop %v2297
      %v2299 = vmul.f32 1.0, %v2298
      %v2300 = vtanh.pop %v2293
      %v2301 = vld [vmem:[#allocation4] sm:$0x1]
      %v2303 = vlaneseq
      %v2304 = vshrl.u32 %v2303, 7
      %v2305 = vsub.s32 0, %v2304
      %v2306 = vrot.slane %v2301, %v2305
      %2307 = vrot.lane.b32.xlu0 %v2306, 32
      %v2308 = vpop.permute.xlu0 %2307
      %v2310 = vmul.f32 %v2299, %v2308
      %2312 = vrot.lane.b32.xlu0 %v2300, 64
      %v2313 = vpop.permute.xlu0 %2312
      %v2315 = vmul.f32 %v2299, %v2313
      %2317 = vrot.lane.b32.xlu0 %v2315, 32
      %v2318 = vpop.permute.xlu0 %2317
      %v2320 = vadd.f32 %v2310, %v2318
      %v2321 = vtanh.pop %v2320
      %2323 = vrot.lane.b32.xlu0 %v2321, 64
      %v2324 = vpop.permute.xlu0 %2323
      %v2326 = vmul.f32 %v2299, %v2324
      %2328 = vrot.lane.b32.xlu0 %v2326, 32
      %v2329 = vpop.permute.xlu0 %2328
      %2331 = vst.msk [vmem:[#allocation3] sm:$0x1] %vm225, %v2329
      %2333 = vrot.lane.b32.xlu0 %v2320, 96
      %v2334 = vpop.permute.xlu0 %2333
      %2336 = vst.msk [vmem:[#allocation4] sm:$0x1] %vm225, %v2334
    $region105: #{fn.1} parent=1 // pred_fallthru
      _
    %p2337 = scmp.gt.s32.totalorder %s43, 17
    // Predicated region
    $region106: #{fn.1} parent=1 // pred_check
      %p2338 = pneg %p2337
    $region107: #{fn.1} parent=1 // pred_check_branch
      %2340 = sbr.rel (%p2338) target = $region109
    $region108: #{fn.1} parent=1 // pred_region
      %v2341 = vld [vmem:[#allocation2 + $0x11] sm:$0x1]
      %v2342 = vld [vmem:[#allocation3] sm:$0x1]
      %vm2343 = vcmask 261120
      %v2345 = vsel %vm2343, %v2342, 0
      %2347 = vmatprep.subr.mxu0 0.0
      %2348 = vmatpush1.msra.mxu0 0.0
      %2349 = vmatprep.subr.mxu0 0.0
      %2350 = vmatpush1.msra.mxu0 0.0
      %2351 = vmatprep.subr.mxu0 0.0
      %2352 = vmatpush1.msra.mxu0 0.0
      %2353 = vmatprep.subr.mxu0 0.0
      %2354 = vmatpush1.msra.mxu0 0.0
      %2355 = vmatprep.subr.mxu0 0.0
      %2356 = vmatpush1.msra.mxu0 0.0
      %2357 = vmatprep.subr.mxu0 0.0
      %2358 = vmatpush1.msra.mxu0 0.0
      %2359 = vmatprep.subr.mxu0 0.0
      %2360 = vmatpush1.msra.mxu0 0.0
      %2361 = vmatprep.subr.mxu0 0.0
      %2362 = vmatpush1.msra.mxu0 0.0
      %2363 = vmatprep.subr.mxu0 0.0
      %2364 = vmatpush1.msra.mxu0 0.0
      %2365 = vmatprep.subr.mxu0 0.0
      %2366 = vmatpush1.msra.mxu0 0.0
      %2367 = vmatprep.subr.mxu0 0.0
      %2368 = vmatpush1.msra.mxu0 0.0
      %2369 = vmatprep.subr.mxu0 0.0
      %2370 = vmatpush1.msra.mxu0 0.0
      %2371 = vmatprep.subr.mxu0 0.0
      %2372 = vmatpush1.msra.mxu0 %v223
      %2373 = vmatprep.subr.mxu0 0.0
      %2374 = vmatpush1.msra.mxu0 %v222
      %2375 = vmatprep.subr.mxu0 0.0
      %2376 = vmatpush1.msra.mxu0 %v221
      %2377 = vmatprep.subr.mxu0 0.0
      %2378 = vmatpush1.msra.mxu0 %v220
      %2379 = vmatprep.subr.mxu0 0.0
      %2380 = vmatpush2.msra.mxu0 0.0
      %2381 = vmatprep.subr.mxu0 0.0
      %2382 = vmatpush2.msra.mxu0 0.0
      %2383 = vmatprep.subr.mxu0 0.0
      %2384 = vmatpush2.msra.mxu0 0.0
      %2385 = vmatprep.subr.mxu0 0.0
      %2386 = vmatpush2.msra.mxu0 0.0
      %2387 = vmatprep.subr.mxu0 0.0
      %2388 = vmatpush2.msra.mxu0 0.0
      %2389 = vmatprep.subr.mxu0 0.0
      %2390 = vmatpush2.msra.mxu0 0.0
      %2391 = vmatprep.subr.mxu0 0.0
      %2392 = vmatpush2.msra.mxu0 0.0
      %2393 = vmatprep.subr.mxu0 0.0
      %2394 = vmatpush2.msra.mxu0 0.0
      %2395 = vmatprep.subr.mxu0 0.0
      %2396 = vmatpush2.msra.mxu0 0.0
      %2397 = vmatprep.subr.mxu0 0.0
      %2398 = vmatpush2.msra.mxu0 0.0
      %2399 = vmatprep.subr.mxu0 0.0
      %2400 = vmatpush2.msra.mxu0 0.0
      %2401 = vmatprep.subr.mxu0 0.0
      %2402 = vmatpush2.msra.mxu0 0.0
      %2403 = vmatprep.subr.mxu0 0.0
      %2404 = vmatpush2.msra.mxu0 0.0
      %2405 = vmatprep.subr.mxu0 0.0
      %2406 = vmatpush2.msra.mxu0 0.0
      %2407 = vmatprep.subr.mxu0 0.0
      %2408 = vmatpush2.msra.mxu0 0.0
      %2409 = vmatprep.subr.mxu0 0.0
      %2410 = vmatpush2.msra.mxu0 0.0
      %2411 = vmatprep.mubr.f32.mxu0 0.0
      %2412 = vmatmul.mubr.f32.gmra.mxu0 %v2345
      %v2413 = vpop.f32.mrf.mxu0
      %v2414 = vadd.f32 0.0, %v2413
      %v2415 = vpop.f32.mrf.mxu0
      %2416 = vdwg.mxu0
      %v2417 = vadd.f32 %v2341, %v2414
      %v2418 = vxor.u32 %v2417, 2147483648
      %v2419 = vmul.f32 %v2418, 1.442695
      %v2420 = vpow.pop %v2419
      %v2421 = vadd.f32 %v2420, 1.0
      %v2422 = vrcp.pop %v2421
      %v2423 = vmul.f32 1.0, %v2422
      %v2424 = vtanh.pop %v2417
      %v2425 = vld [vmem:[#allocation4] sm:$0x1]
      %v2427 = vlaneseq
      %v2428 = vshrl.u32 %v2427, 7
      %v2429 = vsub.s32 0, %v2428
      %v2430 = vrot.slane %v2425, %v2429
      %2431 = vrot.lane.b32.xlu0 %v2430, 32
      %v2432 = vpop.permute.xlu0 %2431
      %v2434 = vmul.f32 %v2423, %v2432
      %2436 = vrot.lane.b32.xlu0 %v2424, 64
      %v2437 = vpop.permute.xlu0 %2436
      %v2439 = vmul.f32 %v2423, %v2437
      %2441 = vrot.lane.b32.xlu0 %v2439, 32
      %v2442 = vpop.permute.xlu0 %2441
      %v2444 = vadd.f32 %v2434, %v2442
      %v2445 = vtanh.pop %v2444
      %2447 = vrot.lane.b32.xlu0 %v2445, 64
      %v2448 = vpop.permute.xlu0 %2447
      %v2450 = vmul.f32 %v2423, %v2448
      %2452 = vrot.lane.b32.xlu0 %v2450, 32
      %v2453 = vpop.permute.xlu0 %2452
      %2455 = vst.msk [vmem:[#allocation3] sm:$0x1] %vm225, %v2453
      %2457 = vrot.lane.b32.xlu0 %v2444, 96
      %v2458 = vpop.permute.xlu0 %2457
      %2460 = vst.msk [vmem:[#allocation4] sm:$0x1] %vm225, %v2458
    $region109: #{fn.1} parent=1 // pred_fallthru
      _
    %p2461 = scmp.gt.s32.totalorder %s43, 18
    // Predicated region
    $region110: #{fn.1} parent=1 // pred_check
      %p2462 = pneg %p2461
    $region111: #{fn.1} parent=1 // pred_check_branch
      %2464 = sbr.rel (%p2462) target = $region113
    $region112: #{fn.1} parent=1 // pred_region
      %v2465 = vld [vmem:[#allocation2 + $0x12] sm:$0x1]
      %v2466 = vld [vmem:[#allocation3] sm:$0x1]
      %vm2467 = vcmask 261120
      %v2469 = vsel %vm2467, %v2466, 0
      %2471 = vmatprep.subr.mxu0 0.0
      %2472 = vmatpush1.msra.mxu0 0.0
      %2473 = vmatprep.subr.mxu0 0.0
      %2474 = vmatpush1.msra.mxu0 0.0
      %2475 = vmatprep.subr.mxu0 0.0
      %2476 = vmatpush1.msra.mxu0 0.0
      %2477 = vmatprep.subr.mxu0 0.0
      %2478 = vmatpush1.msra.mxu0 0.0
      %2479 = vmatprep.subr.mxu0 0.0
      %2480 = vmatpush1.msra.mxu0 0.0
      %2481 = vmatprep.subr.mxu0 0.0
      %2482 = vmatpush1.msra.mxu0 0.0
      %2483 = vmatprep.subr.mxu0 0.0
      %2484 = vmatpush1.msra.mxu0 0.0
      %2485 = vmatprep.subr.mxu0 0.0
      %2486 = vmatpush1.msra.mxu0 0.0
      %2487 = vmatprep.subr.mxu0 0.0
      %2488 = vmatpush1.msra.mxu0 0.0
      %2489 = vmatprep.subr.mxu0 0.0
      %2490 = vmatpush1.msra.mxu0 0.0
      %2491 = vmatprep.subr.mxu0 0.0
      %2492 = vmatpush1.msra.mxu0 0.0
      %2493 = vmatprep.subr.mxu0 0.0
      %2494 = vmatpush1.msra.mxu0 0.0
      %2495 = vmatprep.subr.mxu0 0.0
      %2496 = vmatpush1.msra.mxu0 %v223
      %2497 = vmatprep.subr.mxu0 0.0
      %2498 = vmatpush1.msra.mxu0 %v222
      %2499 = vmatprep.subr.mxu0 0.0
      %2500 = vmatpush1.msra.mxu0 %v221
      %2501 = vmatprep.subr.mxu0 0.0
      %2502 = vmatpush1.msra.mxu0 %v220
      %2503 = vmatprep.subr.mxu0 0.0
      %2504 = vmatpush2.msra.mxu0 0.0
      %2505 = vmatprep.subr.mxu0 0.0
      %2506 = vmatpush2.msra.mxu0 0.0
      %2507 = vmatprep.subr.mxu0 0.0
      %2508 = vmatpush2.msra.mxu0 0.0
      %2509 = vmatprep.subr.mxu0 0.0
      %2510 = vmatpush2.msra.mxu0 0.0
      %2511 = vmatprep.subr.mxu0 0.0
      %2512 = vmatpush2.msra.mxu0 0.0
      %2513 = vmatprep.subr.mxu0 0.0
      %2514 = vmatpush2.msra.mxu0 0.0
      %2515 = vmatprep.subr.mxu0 0.0
      %2516 = vmatpush2.msra.mxu0 0.0
      %2517 = vmatprep.subr.mxu0 0.0
      %2518 = vmatpush2.msra.mxu0 0.0
      %2519 = vmatprep.subr.mxu0 0.0
      %2520 = vmatpush2.msra.mxu0 0.0
      %2521 = vmatprep.subr.mxu0 0.0
      %2522 = vmatpush2.msra.mxu0 0.0
      %2523 = vmatprep.subr.mxu0 0.0
      %2524 = vmatpush2.msra.mxu0 0.0
      %2525 = vmatprep.subr.mxu0 0.0
      %2526 = vmatpush2.msra.mxu0 0.0
      %2527 = vmatprep.subr.mxu0 0.0
      %2528 = vmatpush2.msra.mxu0 0.0
      %2529 = vmatprep.subr.mxu0 0.0
      %2530 = vmatpush2.msra.mxu0 0.0
      %2531 = vmatprep.subr.mxu0 0.0
      %2532 = vmatpush2.msra.mxu0 0.0
      %2533 = vmatprep.subr.mxu0 0.0
      %2534 = vmatpush2.msra.mxu0 0.0
      %2535 = vmatprep.mubr.f32.mxu0 0.0
      %2536 = vmatmul.mubr.f32.gmra.mxu0 %v2469
      %v2537 = vpop.f32.mrf.mxu0
      %v2538 = vadd.f32 0.0, %v2537
      %v2539 = vpop.f32.mrf.mxu0
      %2540 = vdwg.mxu0
      %v2541 = vadd.f32 %v2465, %v2538
      %v2542 = vxor.u32 %v2541, 2147483648
      %v2543 = vmul.f32 %v2542, 1.442695
      %v2544 = vpow.pop %v2543
      %v2545 = vadd.f32 %v2544, 1.0
      %v2546 = vrcp.pop %v2545
      %v2547 = vmul.f32 1.0, %v2546
      %v2548 = vtanh.pop %v2541
      %v2549 = vld [vmem:[#allocation4] sm:$0x1]
      %v2551 = vlaneseq
      %v2552 = vshrl.u32 %v2551, 7
      %v2553 = vsub.s32 0, %v2552
      %v2554 = vrot.slane %v2549, %v2553
      %2555 = vrot.lane.b32.xlu0 %v2554, 32
      %v2556 = vpop.permute.xlu0 %2555
      %v2558 = vmul.f32 %v2547, %v2556
      %2560 = vrot.lane.b32.xlu0 %v2548, 64
      %v2561 = vpop.permute.xlu0 %2560
      %v2563 = vmul.f32 %v2547, %v2561
      %2565 = vrot.lane.b32.xlu0 %v2563, 32
      %v2566 = vpop.permute.xlu0 %2565
      %v2568 = vadd.f32 %v2558, %v2566
      %v2569 = vtanh.pop %v2568
      %2571 = vrot.lane.b32.xlu0 %v2569, 64
      %v2572 = vpop.permute.xlu0 %2571
      %v2574 = vmul.f32 %v2547, %v2572
      %2576 = vrot.lane.b32.xlu0 %v2574, 32
      %v2577 = vpop.permute.xlu0 %2576
      %2579 = vst.msk [vmem:[#allocation3] sm:$0x1] %vm225, %v2577
      %2581 = vrot.lane.b32.xlu0 %v2568, 96
      %v2582 = vpop.permute.xlu0 %2581
      %2584 = vst.msk [vmem:[#allocation4] sm:$0x1] %vm225, %v2582
    $region113: #{fn.1} parent=1 // pred_fallthru
      _
    %p2585 = scmp.gt.s32.totalorder %s43, 19
    // Predicated region
    $region114: #{fn.1} parent=1 // pred_check
      %p2586 = pneg %p2585
    $region115: #{fn.1} parent=1 // pred_check_branch
      %2588 = sbr.rel (%p2586) target = $region117
    $region116: #{fn.1} parent=1 // pred_region
      %v2589 = vld [vmem:[#allocation2 + $0x13] sm:$0x1]
      %v2590 = vld [vmem:[#allocation3] sm:$0x1]
      %vm2591 = vcmask 261120
      %v2593 = vsel %vm2591, %v2590, 0
      %2595 = vmatprep.subr.mxu0 0.0
      %2596 = vmatpush1.msra.mxu0 0.0
      %2597 = vmatprep.subr.mxu0 0.0
      %2598 = vmatpush1.msra.mxu0 0.0
      %2599 = vmatprep.subr.mxu0 0.0
      %2600 = vmatpush1.msra.mxu0 0.0
      %2601 = vmatprep.subr.mxu0 0.0
      %2602 = vmatpush1.msra.mxu0 0.0
      %2603 = vmatprep.subr.mxu0 0.0
      %2604 = vmatpush1.msra.mxu0 0.0
      %2605 = vmatprep.subr.mxu0 0.0
      %2606 = vmatpush1.msra.mxu0 0.0
      %2607 = vmatprep.subr.mxu0 0.0
      %2608 = vmatpush1.msra.mxu0 0.0
      %2609 = vmatprep.subr.mxu0 0.0
      %2610 = vmatpush1.msra.mxu0 0.0
      %2611 = vmatprep.subr.mxu0 0.0
      %2612 = vmatpush1.msra.mxu0 0.0
      %2613 = vmatprep.subr.mxu0 0.0
      %2614 = vmatpush1.msra.mxu0 0.0
      %2615 = vmatprep.subr.mxu0 0.0
      %2616 = vmatpush1.msra.mxu0 0.0
      %2617 = vmatprep.subr.mxu0 0.0
      %2618 = vmatpush1.msra.mxu0 0.0
      %2619 = vmatprep.subr.mxu0 0.0
      %2620 = vmatpush1.msra.mxu0 %v223
      %2621 = vmatprep.subr.mxu0 0.0
      %2622 = vmatpush1.msra.mxu0 %v222
      %2623 = vmatprep.subr.mxu0 0.0
      %2624 = vmatpush1.msra.mxu0 %v221
      %2625 = vmatprep.subr.mxu0 0.0
      %2626 = vmatpush1.msra.mxu0 %v220
      %2627 = vmatprep.subr.mxu0 0.0
      %2628 = vmatpush2.msra.mxu0 0.0
      %2629 = vmatprep.subr.mxu0 0.0
      %2630 = vmatpush2.msra.mxu0 0.0
      %2631 = vmatprep.subr.mxu0 0.0
      %2632 = vmatpush2.msra.mxu0 0.0
      %2633 = vmatprep.subr.mxu0 0.0
      %2634 = vmatpush2.msra.mxu0 0.0
      %2635 = vmatprep.subr.mxu0 0.0
      %2636 = vmatpush2.msra.mxu0 0.0
      %2637 = vmatprep.subr.mxu0 0.0
      %2638 = vmatpush2.msra.mxu0 0.0
      %2639 = vmatprep.subr.mxu0 0.0
      %2640 = vmatpush2.msra.mxu0 0.0
      %2641 = vmatprep.subr.mxu0 0.0
      %2642 = vmatpush2.msra.mxu0 0.0
      %2643 = vmatprep.subr.mxu0 0.0
      %2644 = vmatpush2.msra.mxu0 0.0
      %2645 = vmatprep.subr.mxu0 0.0
      %2646 = vmatpush2.msra.mxu0 0.0
      %2647 = vmatprep.subr.mxu0 0.0
      %2648 = vmatpush2.msra.mxu0 0.0
      %2649 = vmatprep.subr.mxu0 0.0
      %2650 = vmatpush2.msra.mxu0 0.0
      %2651 = vmatprep.subr.mxu0 0.0
      %2652 = vmatpush2.msra.mxu0 0.0
      %2653 = vmatprep.subr.mxu0 0.0
      %2654 = vmatpush2.msra.mxu0 0.0
      %2655 = vmatprep.subr.mxu0 0.0
      %2656 = vmatpush2.msra.mxu0 0.0
      %2657 = vmatprep.subr.mxu0 0.0
      %2658 = vmatpush2.msra.mxu0 0.0
      %2659 = vmatprep.mubr.f32.mxu0 0.0
      %2660 = vmatmul.mubr.f32.gmra.mxu0 %v2593
      %v2661 = vpop.f32.mrf.mxu0
      %v2662 = vadd.f32 0.0, %v2661
      %v2663 = vpop.f32.mrf.mxu0
      %2664 = vdwg.mxu0
      %v2665 = vadd.f32 %v2589, %v2662
      %v2666 = vxor.u32 %v2665, 2147483648
      %v2667 = vmul.f32 %v2666, 1.442695
      %v2668 = vpow.pop %v2667
      %v2669 = vadd.f32 %v2668, 1.0
      %v2670 = vrcp.pop %v2669
      %v2671 = vmul.f32 1.0, %v2670
      %v2672 = vtanh.pop %v2665
      %v2673 = vld [vmem:[#allocation4] sm:$0x1]
      %v2675 = vlaneseq
      %v2676 = vshrl.u32 %v2675, 7
      %v2677 = vsub.s32 0, %v2676
      %v2678 = vrot.slane %v2673, %v2677
      %2679 = vrot.lane.b32.xlu0 %v2678, 32
      %v2680 = vpop.permute.xlu0 %2679
      %v2682 = vmul.f32 %v2671, %v2680
      %2684 = vrot.lane.b32.xlu0 %v2672, 64
      %v2685 = vpop.permute.xlu0 %2684
      %v2687 = vmul.f32 %v2671, %v2685
      %2689 = vrot.lane.b32.xlu0 %v2687, 32
      %v2690 = vpop.permute.xlu0 %2689
      %v2692 = vadd.f32 %v2682, %v2690
      %v2693 = vtanh.pop %v2692
      %2695 = vrot.lane.b32.xlu0 %v2693, 64
      %v2696 = vpop.permute.xlu0 %2695
      %v2698 = vmul.f32 %v2671, %v2696
      %2700 = vrot.lane.b32.xlu0 %v2698, 32
      %v2701 = vpop.permute.xlu0 %2700
      %2703 = vst.msk [vmem:[#allocation3] sm:$0x1] %vm225, %v2701
      %2705 = vrot.lane.b32.xlu0 %v2692, 96
      %v2706 = vpop.permute.xlu0 %2705
      %2708 = vst.msk [vmem:[#allocation4] sm:$0x1] %vm225, %v2706
    $region117: #{fn.1} parent=1 // pred_fallthru
      _
    %p2709 = scmp.gt.s32.totalorder %s43, 20
    // Predicated region
    $region118: #{fn.1} parent=1 // pred_check
      %p2710 = pneg %p2709
    $region119: #{fn.1} parent=1 // pred_check_branch
      %2712 = sbr.rel (%p2710) target = $region121
    $region120: #{fn.1} parent=1 // pred_region
      %v2713 = vld [vmem:[#allocation2 + $0x14] sm:$0x1]
      %v2714 = vld [vmem:[#allocation3] sm:$0x1]
      %vm2715 = vcmask 261120
      %v2717 = vsel %vm2715, %v2714, 0
      %2719 = vmatprep.subr.mxu0 0.0
      %2720 = vmatpush1.msra.mxu0 0.0
      %2721 = vmatprep.subr.mxu0 0.0
      %2722 = vmatpush1.msra.mxu0 0.0
      %2723 = vmatprep.subr.mxu0 0.0
      %2724 = vmatpush1.msra.mxu0 0.0
      %2725 = vmatprep.subr.mxu0 0.0
      %2726 = vmatpush1.msra.mxu0 0.0
      %2727 = vmatprep.subr.mxu0 0.0
      %2728 = vmatpush1.msra.mxu0 0.0
      %2729 = vmatprep.subr.mxu0 0.0
      %2730 = vmatpush1.msra.mxu0 0.0
      %2731 = vmatprep.subr.mxu0 0.0
      %2732 = vmatpush1.msra.mxu0 0.0
      %2733 = vmatprep.subr.mxu0 0.0
      %2734 = vmatpush1.msra.mxu0 0.0
      %2735 = vmatprep.subr.mxu0 0.0
      %2736 = vmatpush1.msra.mxu0 0.0
      %2737 = vmatprep.subr.mxu0 0.0
      %2738 = vmatpush1.msra.mxu0 0.0
      %2739 = vmatprep.subr.mxu0 0.0
      %2740 = vmatpush1.msra.mxu0 0.0
      %2741 = vmatprep.subr.mxu0 0.0
      %2742 = vmatpush1.msra.mxu0 0.0
      %2743 = vmatprep.subr.mxu0 0.0
      %2744 = vmatpush1.msra.mxu0 %v223
      %2745 = vmatprep.subr.mxu0 0.0
      %2746 = vmatpush1.msra.mxu0 %v222
      %2747 = vmatprep.subr.mxu0 0.0
      %2748 = vmatpush1.msra.mxu0 %v221
      %2749 = vmatprep.subr.mxu0 0.0
      %2750 = vmatpush1.msra.mxu0 %v220
      %2751 = vmatprep.subr.mxu0 0.0
      %2752 = vmatpush2.msra.mxu0 0.0
      %2753 = vmatprep.subr.mxu0 0.0
      %2754 = vmatpush2.msra.mxu0 0.0
      %2755 = vmatprep.subr.mxu0 0.0
      %2756 = vmatpush2.msra.mxu0 0.0
      %2757 = vmatprep.subr.mxu0 0.0
      %2758 = vmatpush2.msra.mxu0 0.0
      %2759 = vmatprep.subr.mxu0 0.0
      %2760 = vmatpush2.msra.mxu0 0.0
      %2761 = vmatprep.subr.mxu0 0.0
      %2762 = vmatpush2.msra.mxu0 0.0
      %2763 = vmatprep.subr.mxu0 0.0
      %2764 = vmatpush2.msra.mxu0 0.0
      %2765 = vmatprep.subr.mxu0 0.0
      %2766 = vmatpush2.msra.mxu0 0.0
      %2767 = vmatprep.subr.mxu0 0.0
      %2768 = vmatpush2.msra.mxu0 0.0
      %2769 = vmatprep.subr.mxu0 0.0
      %2770 = vmatpush2.msra.mxu0 0.0
      %2771 = vmatprep.subr.mxu0 0.0
      %2772 = vmatpush2.msra.mxu0 0.0
      %2773 = vmatprep.subr.mxu0 0.0
      %2774 = vmatpush2.msra.mxu0 0.0
      %2775 = vmatprep.subr.mxu0 0.0
      %2776 = vmatpush2.msra.mxu0 0.0
      %2777 = vmatprep.subr.mxu0 0.0
      %2778 = vmatpush2.msra.mxu0 0.0
      %2779 = vmatprep.subr.mxu0 0.0
      %2780 = vmatpush2.msra.mxu0 0.0
      %2781 = vmatprep.subr.mxu0 0.0
      %2782 = vmatpush2.msra.mxu0 0.0
      %2783 = vmatprep.mubr.f32.mxu0 0.0
      %2784 = vmatmul.mubr.f32.gmra.mxu0 %v2717
      %v2785 = vpop.f32.mrf.mxu0
      %v2786 = vadd.f32 0.0, %v2785
      %v2787 = vpop.f32.mrf.mxu0
      %2788 = vdwg.mxu0
      %v2789 = vadd.f32 %v2713, %v2786
      %v2790 = vxor.u32 %v2789, 2147483648
      %v2791 = vmul.f32 %v2790, 1.442695
      %v2792 = vpow.pop %v2791
      %v2793 = vadd.f32 %v2792, 1.0
      %v2794 = vrcp.pop %v2793
      %v2795 = vmul.f32 1.0, %v2794
      %v2796 = vtanh.pop %v2789
      %v2797 = vld [vmem:[#allocation4] sm:$0x1]
      %v2799 = vlaneseq
      %v2800 = vshrl.u32 %v2799, 7
      %v2801 = vsub.s32 0, %v2800
      %v2802 = vrot.slane %v2797, %v2801
      %2803 = vrot.lane.b32.xlu0 %v2802, 32
      %v2804 = vpop.permute.xlu0 %2803
      %v2806 = vmul.f32 %v2795, %v2804
      %2808 = vrot.lane.b32.xlu0 %v2796, 64
      %v2809 = vpop.permute.xlu0 %2808
      %v2811 = vmul.f32 %v2795, %v2809
      %2813 = vrot.lane.b32.xlu0 %v2811, 32
      %v2814 = vpop.permute.xlu0 %2813
      %v2816 = vadd.f32 %v2806, %v2814
      %v2817 = vtanh.pop %v2816
      %2819 = vrot.lane.b32.xlu0 %v2817, 64
      %v2820 = vpop.permute.xlu0 %2819
      %v2822 = vmul.f32 %v2795, %v2820
      %2824 = vrot.lane.b32.xlu0 %v2822, 32
      %v2825 = vpop.permute.xlu0 %2824
      %2827 = vst.msk [vmem:[#allocation3] sm:$0x1] %vm225, %v2825
      %2829 = vrot.lane.b32.xlu0 %v2816, 96
      %v2830 = vpop.permute.xlu0 %2829
      %2832 = vst.msk [vmem:[#allocation4] sm:$0x1] %vm225, %v2830
    $region121: #{fn.1} parent=1 // pred_fallthru
      _
    %p2833 = scmp.gt.s32.totalorder %s43, 21
    // Predicated region
    $region122: #{fn.1} parent=1 // pred_check
      %p2834 = pneg %p2833
    $region123: #{fn.1} parent=1 // pred_check_branch
      %2836 = sbr.rel (%p2834) target = $region125
    $region124: #{fn.1} parent=1 // pred_region
      %v2837 = vld [vmem:[#allocation2 + $0x15] sm:$0x1]
      %v2838 = vld [vmem:[#allocation3] sm:$0x1]
      %vm2839 = vcmask 261120
      %v2841 = vsel %vm2839, %v2838, 0
      %2843 = vmatprep.subr.mxu0 0.0
      %2844 = vmatpush1.msra.mxu0 0.0
      %2845 = vmatprep.subr.mxu0 0.0
      %2846 = vmatpush1.msra.mxu0 0.0
      %2847 = vmatprep.subr.mxu0 0.0
      %2848 = vmatpush1.msra.mxu0 0.0
      %2849 = vmatprep.subr.mxu0 0.0
      %2850 = vmatpush1.msra.mxu0 0.0
      %2851 = vmatprep.subr.mxu0 0.0
      %2852 = vmatpush1.msra.mxu0 0.0
      %2853 = vmatprep.subr.mxu0 0.0
      %2854 = vmatpush1.msra.mxu0 0.0
      %2855 = vmatprep.subr.mxu0 0.0
      %2856 = vmatpush1.msra.mxu0 0.0
      %2857 = vmatprep.subr.mxu0 0.0
      %2858 = vmatpush1.msra.mxu0 0.0
      %2859 = vmatprep.subr.mxu0 0.0
      %2860 = vmatpush1.msra.mxu0 0.0
      %2861 = vmatprep.subr.mxu0 0.0
      %2862 = vmatpush1.msra.mxu0 0.0
      %2863 = vmatprep.subr.mxu0 0.0
      %2864 = vmatpush1.msra.mxu0 0.0
      %2865 = vmatprep.subr.mxu0 0.0
      %2866 = vmatpush1.msra.mxu0 0.0
      %2867 = vmatprep.subr.mxu0 0.0
      %2868 = vmatpush1.msra.mxu0 %v223
      %2869 = vmatprep.subr.mxu0 0.0
      %2870 = vmatpush1.msra.mxu0 %v222
      %2871 = vmatprep.subr.mxu0 0.0
      %2872 = vmatpush1.msra.mxu0 %v221
      %2873 = vmatprep.subr.mxu0 0.0
      %2874 = vmatpush1.msra.mxu0 %v220
      %2875 = vmatprep.subr.mxu0 0.0
      %2876 = vmatpush2.msra.mxu0 0.0
      %2877 = vmatprep.subr.mxu0 0.0
      %2878 = vmatpush2.msra.mxu0 0.0
      %2879 = vmatprep.subr.mxu0 0.0
      %2880 = vmatpush2.msra.mxu0 0.0
      %2881 = vmatprep.subr.mxu0 0.0
      %2882 = vmatpush2.msra.mxu0 0.0
      %2883 = vmatprep.subr.mxu0 0.0
      %2884 = vmatpush2.msra.mxu0 0.0
      %2885 = vmatprep.subr.mxu0 0.0
      %2886 = vmatpush2.msra.mxu0 0.0
      %2887 = vmatprep.subr.mxu0 0.0
      %2888 = vmatpush2.msra.mxu0 0.0
      %2889 = vmatprep.subr.mxu0 0.0
      %2890 = vmatpush2.msra.mxu0 0.0
      %2891 = vmatprep.subr.mxu0 0.0
      %2892 = vmatpush2.msra.mxu0 0.0
      %2893 = vmatprep.subr.mxu0 0.0
      %2894 = vmatpush2.msra.mxu0 0.0
      %2895 = vmatprep.subr.mxu0 0.0
      %2896 = vmatpush2.msra.mxu0 0.0
      %2897 = vmatprep.subr.mxu0 0.0
      %2898 = vmatpush2.msra.mxu0 0.0
      %2899 = vmatprep.subr.mxu0 0.0
      %2900 = vmatpush2.msra.mxu0 0.0
      %2901 = vmatprep.subr.mxu0 0.0
      %2902 = vmatpush2.msra.mxu0 0.0
      %2903 = vmatprep.subr.mxu0 0.0
      %2904 = vmatpush2.msra.mxu0 0.0
      %2905 = vmatprep.subr.mxu0 0.0
      %2906 = vmatpush2.msra.mxu0 0.0
      %2907 = vmatprep.mubr.f32.mxu0 0.0
      %2908 = vmatmul.mubr.f32.gmra.mxu0 %v2841
      %v2909 = vpop.f32.mrf.mxu0
      %v2910 = vadd.f32 0.0, %v2909
      %v2911 = vpop.f32.mrf.mxu0
      %2912 = vdwg.mxu0
      %v2913 = vadd.f32 %v2837, %v2910
      %v2914 = vxor.u32 %v2913, 2147483648
      %v2915 = vmul.f32 %v2914, 1.442695
      %v2916 = vpow.pop %v2915
      %v2917 = vadd.f32 %v2916, 1.0
      %v2918 = vrcp.pop %v2917
      %v2919 = vmul.f32 1.0, %v2918
      %v2920 = vtanh.pop %v2913
      %v2921 = vld [vmem:[#allocation4] sm:$0x1]
      %v2923 = vlaneseq
      %v2924 = vshrl.u32 %v2923, 7
      %v2925 = vsub.s32 0, %v2924
      %v2926 = vrot.slane %v2921, %v2925
      %2927 = vrot.lane.b32.xlu0 %v2926, 32
      %v2928 = vpop.permute.xlu0 %2927
      %v2930 = vmul.f32 %v2919, %v2928
      %2932 = vrot.lane.b32.xlu0 %v2920, 64
      %v2933 = vpop.permute.xlu0 %2932
      %v2935 = vmul.f32 %v2919, %v2933
      %2937 = vrot.lane.b32.xlu0 %v2935, 32
      %v2938 = vpop.permute.xlu0 %2937
      %v2940 = vadd.f32 %v2930, %v2938
      %v2941 = vtanh.pop %v2940
      %2943 = vrot.lane.b32.xlu0 %v2941, 64
      %v2944 = vpop.permute.xlu0 %2943
      %v2946 = vmul.f32 %v2919, %v2944
      %2948 = vrot.lane.b32.xlu0 %v2946, 32
      %v2949 = vpop.permute.xlu0 %2948
      %2951 = vst.msk [vmem:[#allocation3] sm:$0x1] %vm225, %v2949
      %2953 = vrot.lane.b32.xlu0 %v2940, 96
      %v2954 = vpop.permute.xlu0 %2953
      %2956 = vst.msk [vmem:[#allocation4] sm:$0x1] %vm225, %v2954
    $region125: #{fn.1} parent=1 // pred_fallthru
      _
    %p2957 = scmp.gt.s32.totalorder %s43, 22
    // Predicated region
    $region126: #{fn.1} parent=1 // pred_check
      %p2958 = pneg %p2957
    $region127: #{fn.1} parent=1 // pred_check_branch
      %2960 = sbr.rel (%p2958) target = $region129
    $region128: #{fn.1} parent=1 // pred_region
      %v2961 = vld [vmem:[#allocation2 + $0x16] sm:$0x1]
      %v2962 = vld [vmem:[#allocation3] sm:$0x1]
      %vm2963 = vcmask 261120
      %v2965 = vsel %vm2963, %v2962, 0
      %2967 = vmatprep.subr.mxu0 0.0
      %2968 = vmatpush1.msra.mxu0 0.0
      %2969 = vmatprep.subr.mxu0 0.0
      %2970 = vmatpush1.msra.mxu0 0.0
      %2971 = vmatprep.subr.mxu0 0.0
      %2972 = vmatpush1.msra.mxu0 0.0
      %2973 = vmatprep.subr.mxu0 0.0
      %2974 = vmatpush1.msra.mxu0 0.0
      %2975 = vmatprep.subr.mxu0 0.0
      %2976 = vmatpush1.msra.mxu0 0.0
      %2977 = vmatprep.subr.mxu0 0.0
      %2978 = vmatpush1.msra.mxu0 0.0
      %2979 = vmatprep.subr.mxu0 0.0
      %2980 = vmatpush1.msra.mxu0 0.0
      %2981 = vmatprep.subr.mxu0 0.0
      %2982 = vmatpush1.msra.mxu0 0.0
      %2983 = vmatprep.subr.mxu0 0.0
      %2984 = vmatpush1.msra.mxu0 0.0
      %2985 = vmatprep.subr.mxu0 0.0
      %2986 = vmatpush1.msra.mxu0 0.0
      %2987 = vmatprep.subr.mxu0 0.0
      %2988 = vmatpush1.msra.mxu0 0.0
      %2989 = vmatprep.subr.mxu0 0.0
      %2990 = vmatpush1.msra.mxu0 0.0
      %2991 = vmatprep.subr.mxu0 0.0
      %2992 = vmatpush1.msra.mxu0 %v223
      %2993 = vmatprep.subr.mxu0 0.0
      %2994 = vmatpush1.msra.mxu0 %v222
      %2995 = vmatprep.subr.mxu0 0.0
      %2996 = vmatpush1.msra.mxu0 %v221
      %2997 = vmatprep.subr.mxu0 0.0
      %2998 = vmatpush1.msra.mxu0 %v220
      %2999 = vmatprep.subr.mxu0 0.0
      %3000 = vmatpush2.msra.mxu0 0.0
      %3001 = vmatprep.subr.mxu0 0.0
      %3002 = vmatpush2.msra.mxu0 0.0
      %3003 = vmatprep.subr.mxu0 0.0
      %3004 = vmatpush2.msra.mxu0 0.0
      %3005 = vmatprep.subr.mxu0 0.0
      %3006 = vmatpush2.msra.mxu0 0.0
      %3007 = vmatprep.subr.mxu0 0.0
      %3008 = vmatpush2.msra.mxu0 0.0
      %3009 = vmatprep.subr.mxu0 0.0
      %3010 = vmatpush2.msra.mxu0 0.0
      %3011 = vmatprep.subr.mxu0 0.0
      %3012 = vmatpush2.msra.mxu0 0.0
      %3013 = vmatprep.subr.mxu0 0.0
      %3014 = vmatpush2.msra.mxu0 0.0
      %3015 = vmatprep.subr.mxu0 0.0
      %3016 = vmatpush2.msra.mxu0 0.0
      %3017 = vmatprep.subr.mxu0 0.0
      %3018 = vmatpush2.msra.mxu0 0.0
      %3019 = vmatprep.subr.mxu0 0.0
      %3020 = vmatpush2.msra.mxu0 0.0
      %3021 = vmatprep.subr.mxu0 0.0
      %3022 = vmatpush2.msra.mxu0 0.0
      %3023 = vmatprep.subr.mxu0 0.0
      %3024 = vmatpush2.msra.mxu0 0.0
      %3025 = vmatprep.subr.mxu0 0.0
      %3026 = vmatpush2.msra.mxu0 0.0
      %3027 = vmatprep.subr.mxu0 0.0
      %3028 = vmatpush2.msra.mxu0 0.0
      %3029 = vmatprep.subr.mxu0 0.0
      %3030 = vmatpush2.msra.mxu0 0.0
      %3031 = vmatprep.mubr.f32.mxu0 0.0
      %3032 = vmatmul.mubr.f32.gmra.mxu0 %v2965
      %v3033 = vpop.f32.mrf.mxu0
      %v3034 = vadd.f32 0.0, %v3033
      %v3035 = vpop.f32.mrf.mxu0
      %3036 = vdwg.mxu0
      %v3037 = vadd.f32 %v2961, %v3034
      %v3038 = vxor.u32 %v3037, 2147483648
      %v3039 = vmul.f32 %v3038, 1.442695
      %v3040 = vpow.pop %v3039
      %v3041 = vadd.f32 %v3040, 1.0
      %v3042 = vrcp.pop %v3041
      %v3043 = vmul.f32 1.0, %v3042
      %v3044 = vtanh.pop %v3037
      %v3045 = vld [vmem:[#allocation4] sm:$0x1]
      %v3047 = vlaneseq
      %v3048 = vshrl.u32 %v3047, 7
      %v3049 = vsub.s32 0, %v3048
      %v3050 = vrot.slane %v3045, %v3049
      %3051 = vrot.lane.b32.xlu0 %v3050, 32
      %v3052 = vpop.permute.xlu0 %3051
      %v3054 = vmul.f32 %v3043, %v3052
      %3056 = vrot.lane.b32.xlu0 %v3044, 64
      %v3057 = vpop.permute.xlu0 %3056
      %v3059 = vmul.f32 %v3043, %v3057
      %3061 = vrot.lane.b32.xlu0 %v3059, 32
      %v3062 = vpop.permute.xlu0 %3061
      %v3064 = vadd.f32 %v3054, %v3062
      %v3065 = vtanh.pop %v3064
      %3067 = vrot.lane.b32.xlu0 %v3065, 64
      %v3068 = vpop.permute.xlu0 %3067
      %v3070 = vmul.f32 %v3043, %v3068
      %3072 = vrot.lane.b32.xlu0 %v3070, 32
      %v3073 = vpop.permute.xlu0 %3072
      %3075 = vst.msk [vmem:[#allocation3] sm:$0x1] %vm225, %v3073
      %3077 = vrot.lane.b32.xlu0 %v3064, 96
      %v3078 = vpop.permute.xlu0 %3077
      %3080 = vst.msk [vmem:[#allocation4] sm:$0x1] %vm225, %v3078
    $region129: #{fn.1} parent=1 // pred_fallthru
      _
    %p3081 = scmp.gt.s32.totalorder %s43, 23
    // Predicated region
    $region130: #{fn.1} parent=1 // pred_check
      %p3082 = pneg %p3081
    $region131: #{fn.1} parent=1 // pred_check_branch
      %3084 = sbr.rel (%p3082) target = $region133
    $region132: #{fn.1} parent=1 // pred_region
      %v3085 = vld [vmem:[#allocation2 + $0x17] sm:$0x1]
      %v3086 = vld [vmem:[#allocation3] sm:$0x1]
      %vm3087 = vcmask 261120
      %v3089 = vsel %vm3087, %v3086, 0
      %3091 = vmatprep.subr.mxu0 0.0
      %3092 = vmatpush1.msra.mxu0 0.0
      %3093 = vmatprep.subr.mxu0 0.0
      %3094 = vmatpush1.msra.mxu0 0.0
      %3095 = vmatprep.subr.mxu0 0.0
      %3096 = vmatpush1.msra.mxu0 0.0
      %3097 = vmatprep.subr.mxu0 0.0
      %3098 = vmatpush1.msra.mxu0 0.0
      %3099 = vmatprep.subr.mxu0 0.0
      %3100 = vmatpush1.msra.mxu0 0.0
      %3101 = vmatprep.subr.mxu0 0.0
      %3102 = vmatpush1.msra.mxu0 0.0
      %3103 = vmatprep.subr.mxu0 0.0
      %3104 = vmatpush1.msra.mxu0 0.0
      %3105 = vmatprep.subr.mxu0 0.0
      %3106 = vmatpush1.msra.mxu0 0.0
      %3107 = vmatprep.subr.mxu0 0.0
      %3108 = vmatpush1.msra.mxu0 0.0
      %3109 = vmatprep.subr.mxu0 0.0
      %3110 = vmatpush1.msra.mxu0 0.0
      %3111 = vmatprep.subr.mxu0 0.0
      %3112 = vmatpush1.msra.mxu0 0.0
      %3113 = vmatprep.subr.mxu0 0.0
      %3114 = vmatpush1.msra.mxu0 0.0
      %3115 = vmatprep.subr.mxu0 0.0
      %3116 = vmatpush1.msra.mxu0 %v223
      %3117 = vmatprep.subr.mxu0 0.0
      %3118 = vmatpush1.msra.mxu0 %v222
      %3119 = vmatprep.subr.mxu0 0.0
      %3120 = vmatpush1.msra.mxu0 %v221
      %3121 = vmatprep.subr.mxu0 0.0
      %3122 = vmatpush1.msra.mxu0 %v220
      %3123 = vmatprep.subr.mxu0 0.0
      %3124 = vmatpush2.msra.mxu0 0.0
      %3125 = vmatprep.subr.mxu0 0.0
      %3126 = vmatpush2.msra.mxu0 0.0
      %3127 = vmatprep.subr.mxu0 0.0
      %3128 = vmatpush2.msra.mxu0 0.0
      %3129 = vmatprep.subr.mxu0 0.0
      %3130 = vmatpush2.msra.mxu0 0.0
      %3131 = vmatprep.subr.mxu0 0.0
      %3132 = vmatpush2.msra.mxu0 0.0
      %3133 = vmatprep.subr.mxu0 0.0
      %3134 = vmatpush2.msra.mxu0 0.0
      %3135 = vmatprep.subr.mxu0 0.0
      %3136 = vmatpush2.msra.mxu0 0.0
      %3137 = vmatprep.subr.mxu0 0.0
      %3138 = vmatpush2.msra.mxu0 0.0
      %3139 = vmatprep.subr.mxu0 0.0
      %3140 = vmatpush2.msra.mxu0 0.0
      %3141 = vmatprep.subr.mxu0 0.0
      %3142 = vmatpush2.msra.mxu0 0.0
      %3143 = vmatprep.subr.mxu0 0.0
      %3144 = vmatpush2.msra.mxu0 0.0
      %3145 = vmatprep.subr.mxu0 0.0
      %3146 = vmatpush2.msra.mxu0 0.0
      %3147 = vmatprep.subr.mxu0 0.0
      %3148 = vmatpush2.msra.mxu0 0.0
      %3149 = vmatprep.subr.mxu0 0.0
      %3150 = vmatpush2.msra.mxu0 0.0
      %3151 = vmatprep.subr.mxu0 0.0
      %3152 = vmatpush2.msra.mxu0 0.0
      %3153 = vmatprep.subr.mxu0 0.0
      %3154 = vmatpush2.msra.mxu0 0.0
      %3155 = vmatprep.mubr.f32.mxu0 0.0
      %3156 = vmatmul.mubr.f32.gmra.mxu0 %v3089
      %v3157 = vpop.f32.mrf.mxu0
      %v3158 = vadd.f32 0.0, %v3157
      %v3159 = vpop.f32.mrf.mxu0
      %3160 = vdwg.mxu0
      %v3161 = vadd.f32 %v3085, %v3158
      %v3162 = vxor.u32 %v3161, 2147483648
      %v3163 = vmul.f32 %v3162, 1.442695
      %v3164 = vpow.pop %v3163
      %v3165 = vadd.f32 %v3164, 1.0
      %v3166 = vrcp.pop %v3165
      %v3167 = vmul.f32 1.0, %v3166
      %v3168 = vtanh.pop %v3161
      %v3169 = vld [vmem:[#allocation4] sm:$0x1]
      %v3171 = vlaneseq
      %v3172 = vshrl.u32 %v3171, 7
      %v3173 = vsub.s32 0, %v3172
      %v3174 = vrot.slane %v3169, %v3173
      %3175 = vrot.lane.b32.xlu0 %v3174, 32
      %v3176 = vpop.permute.xlu0 %3175
      %v3178 = vmul.f32 %v3167, %v3176
      %3180 = vrot.lane.b32.xlu0 %v3168, 64
      %v3181 = vpop.permute.xlu0 %3180
      %v3183 = vmul.f32 %v3167, %v3181
      %3185 = vrot.lane.b32.xlu0 %v3183, 32
      %v3186 = vpop.permute.xlu0 %3185
      %v3188 = vadd.f32 %v3178, %v3186
      %v3189 = vtanh.pop %v3188
      %3191 = vrot.lane.b32.xlu0 %v3189, 64
      %v3192 = vpop.permute.xlu0 %3191
      %v3194 = vmul.f32 %v3167, %v3192
      %3196 = vrot.lane.b32.xlu0 %v3194, 32
      %v3197 = vpop.permute.xlu0 %3196
      %3199 = vst.msk [vmem:[#allocation3] sm:$0x1] %vm225, %v3197
      %3201 = vrot.lane.b32.xlu0 %v3188, 96
      %v3202 = vpop.permute.xlu0 %3201
      %3204 = vst.msk [vmem:[#allocation4] sm:$0x1] %vm225, %v3202
    $region133: #{fn.1} parent=1 // pred_fallthru
      _
    %p3205 = scmp.gt.s32.totalorder %s43, 24
    // Predicated region
    $region134: #{fn.1} parent=1 // pred_check
      %p3206 = pneg %p3205
    $region135: #{fn.1} parent=1 // pred_check_branch
      %3208 = sbr.rel (%p3206) target = $region137
    $region136: #{fn.1} parent=1 // pred_region
      %v3209 = vld [vmem:[#allocation2 + $0x18] sm:$0x1]
      %v3210 = vld [vmem:[#allocation3] sm:$0x1]
      %vm3211 = vcmask 261120
      %v3213 = vsel %vm3211, %v3210, 0
      %3215 = vmatprep.subr.mxu0 0.0
      %3216 = vmatpush1.msra.mxu0 0.0
      %3217 = vmatprep.subr.mxu0 0.0
      %3218 = vmatpush1.msra.mxu0 0.0
      %3219 = vmatprep.subr.mxu0 0.0
      %3220 = vmatpush1.msra.mxu0 0.0
      %3221 = vmatprep.subr.mxu0 0.0
      %3222 = vmatpush1.msra.mxu0 0.0
      %3223 = vmatprep.subr.mxu0 0.0
      %3224 = vmatpush1.msra.mxu0 0.0
      %3225 = vmatprep.subr.mxu0 0.0
      %3226 = vmatpush1.msra.mxu0 0.0
      %3227 = vmatprep.subr.mxu0 0.0
      %3228 = vmatpush1.msra.mxu0 0.0
      %3229 = vmatprep.subr.mxu0 0.0
      %3230 = vmatpush1.msra.mxu0 0.0
      %3231 = vmatprep.subr.mxu0 0.0
      %3232 = vmatpush1.msra.mxu0 0.0
      %3233 = vmatprep.subr.mxu0 0.0
      %3234 = vmatpush1.msra.mxu0 0.0
      %3235 = vmatprep.subr.mxu0 0.0
      %3236 = vmatpush1.msra.mxu0 0.0
      %3237 = vmatprep.subr.mxu0 0.0
      %3238 = vmatpush1.msra.mxu0 0.0
      %3239 = vmatprep.subr.mxu0 0.0
      %3240 = vmatpush1.msra.mxu0 %v223
      %3241 = vmatprep.subr.mxu0 0.0
      %3242 = vmatpush1.msra.mxu0 %v222
      %3243 = vmatprep.subr.mxu0 0.0
      %3244 = vmatpush1.msra.mxu0 %v221
      %3245 = vmatprep.subr.mxu0 0.0
      %3246 = vmatpush1.msra.mxu0 %v220
      %3247 = vmatprep.subr.mxu0 0.0
      %3248 = vmatpush2.msra.mxu0 0.0
      %3249 = vmatprep.subr.mxu0 0.0
      %3250 = vmatpush2.msra.mxu0 0.0
      %3251 = vmatprep.subr.mxu0 0.0
      %3252 = vmatpush2.msra.mxu0 0.0
      %3253 = vmatprep.subr.mxu0 0.0
      %3254 = vmatpush2.msra.mxu0 0.0
      %3255 = vmatprep.subr.mxu0 0.0
      %3256 = vmatpush2.msra.mxu0 0.0
      %3257 = vmatprep.subr.mxu0 0.0
      %3258 = vmatpush2.msra.mxu0 0.0
      %3259 = vmatprep.subr.mxu0 0.0
      %3260 = vmatpush2.msra.mxu0 0.0
      %3261 = vmatprep.subr.mxu0 0.0
      %3262 = vmatpush2.msra.mxu0 0.0
      %3263 = vmatprep.subr.mxu0 0.0
      %3264 = vmatpush2.msra.mxu0 0.0
      %3265 = vmatprep.subr.mxu0 0.0
      %3266 = vmatpush2.msra.mxu0 0.0
      %3267 = vmatprep.subr.mxu0 0.0
      %3268 = vmatpush2.msra.mxu0 0.0
      %3269 = vmatprep.subr.mxu0 0.0
      %3270 = vmatpush2.msra.mxu0 0.0
      %3271 = vmatprep.subr.mxu0 0.0
      %3272 = vmatpush2.msra.mxu0 0.0
      %3273 = vmatprep.subr.mxu0 0.0
      %3274 = vmatpush2.msra.mxu0 0.0
      %3275 = vmatprep.subr.mxu0 0.0
      %3276 = vmatpush2.msra.mxu0 0.0
      %3277 = vmatprep.subr.mxu0 0.0
      %3278 = vmatpush2.msra.mxu0 0.0
      %3279 = vmatprep.mubr.f32.mxu0 0.0
      %3280 = vmatmul.mubr.f32.gmra.mxu0 %v3213
      %v3281 = vpop.f32.mrf.mxu0
      %v3282 = vadd.f32 0.0, %v3281
      %v3283 = vpop.f32.mrf.mxu0
      %3284 = vdwg.mxu0
      %v3285 = vadd.f32 %v3209, %v3282
      %v3286 = vxor.u32 %v3285, 2147483648
      %v3287 = vmul.f32 %v3286, 1.442695
      %v3288 = vpow.pop %v3287
      %v3289 = vadd.f32 %v3288, 1.0
      %v3290 = vrcp.pop %v3289
      %v3291 = vmul.f32 1.0, %v3290
      %v3292 = vtanh.pop %v3285
      %v3293 = vld [vmem:[#allocation4] sm:$0x1]
      %v3295 = vlaneseq
      %v3296 = vshrl.u32 %v3295, 7
      %v3297 = vsub.s32 0, %v3296
      %v3298 = vrot.slane %v3293, %v3297
      %3299 = vrot.lane.b32.xlu0 %v3298, 32
      %v3300 = vpop.permute.xlu0 %3299
      %v3302 = vmul.f32 %v3291, %v3300
      %3304 = vrot.lane.b32.xlu0 %v3292, 64
      %v3305 = vpop.permute.xlu0 %3304
      %v3307 = vmul.f32 %v3291, %v3305
      %3309 = vrot.lane.b32.xlu0 %v3307, 32
      %v3310 = vpop.permute.xlu0 %3309
      %v3312 = vadd.f32 %v3302, %v3310
      %v3313 = vtanh.pop %v3312
      %3315 = vrot.lane.b32.xlu0 %v3313, 64
      %v3316 = vpop.permute.xlu0 %3315
      %v3318 = vmul.f32 %v3291, %v3316
      %3320 = vrot.lane.b32.xlu0 %v3318, 32
      %v3321 = vpop.permute.xlu0 %3320
      %3323 = vst.msk [vmem:[#allocation3] sm:$0x1] %vm225, %v3321
      %3325 = vrot.lane.b32.xlu0 %v3312, 96
      %v3326 = vpop.permute.xlu0 %3325
      %3328 = vst.msk [vmem:[#allocation4] sm:$0x1] %vm225, %v3326
    $region137: #{fn.1} parent=1 // pred_fallthru
      _
    %p3329 = scmp.gt.s32.totalorder %s43, 25
    // Predicated region
    $region138: #{fn.1} parent=1 // pred_check
      %p3330 = pneg %p3329
    $region139: #{fn.1} parent=1 // pred_check_branch
      %3332 = sbr.rel (%p3330) target = $region141
    $region140: #{fn.1} parent=1 // pred_region
      %v3333 = vld [vmem:[#allocation2 + $0x19] sm:$0x1]
      %v3334 = vld [vmem:[#allocation3] sm:$0x1]
      %vm3335 = vcmask 261120
      %v3337 = vsel %vm3335, %v3334, 0
      %3339 = vmatprep.subr.mxu0 0.0
      %3340 = vmatpush1.msra.mxu0 0.0
      %3341 = vmatprep.subr.mxu0 0.0
      %3342 = vmatpush1.msra.mxu0 0.0
      %3343 = vmatprep.subr.mxu0 0.0
      %3344 = vmatpush1.msra.mxu0 0.0
      %3345 = vmatprep.subr.mxu0 0.0
      %3346 = vmatpush1.msra.mxu0 0.0
      %3347 = vmatprep.subr.mxu0 0.0
      %3348 = vmatpush1.msra.mxu0 0.0
      %3349 = vmatprep.subr.mxu0 0.0
      %3350 = vmatpush1.msra.mxu0 0.0
      %3351 = vmatprep.subr.mxu0 0.0
      %3352 = vmatpush1.msra.mxu0 0.0
      %3353 = vmatprep.subr.mxu0 0.0
      %3354 = vmatpush1.msra.mxu0 0.0
      %3355 = vmatprep.subr.mxu0 0.0
      %3356 = vmatpush1.msra.mxu0 0.0
      %3357 = vmatprep.subr.mxu0 0.0
      %3358 = vmatpush1.msra.mxu0 0.0
      %3359 = vmatprep.subr.mxu0 0.0
      %3360 = vmatpush1.msra.mxu0 0.0
      %3361 = vmatprep.subr.mxu0 0.0
      %3362 = vmatpush1.msra.mxu0 0.0
      %3363 = vmatprep.subr.mxu0 0.0
      %3364 = vmatpush1.msra.mxu0 %v223
      %3365 = vmatprep.subr.mxu0 0.0
      %3366 = vmatpush1.msra.mxu0 %v222
      %3367 = vmatprep.subr.mxu0 0.0
      %3368 = vmatpush1.msra.mxu0 %v221
      %3369 = vmatprep.subr.mxu0 0.0
      %3370 = vmatpush1.msra.mxu0 %v220
      %3371 = vmatprep.subr.mxu0 0.0
      %3372 = vmatpush2.msra.mxu0 0.0
      %3373 = vmatprep.subr.mxu0 0.0
      %3374 = vmatpush2.msra.mxu0 0.0
      %3375 = vmatprep.subr.mxu0 0.0
      %3376 = vmatpush2.msra.mxu0 0.0
      %3377 = vmatprep.subr.mxu0 0.0
      %3378 = vmatpush2.msra.mxu0 0.0
      %3379 = vmatprep.subr.mxu0 0.0
      %3380 = vmatpush2.msra.mxu0 0.0
      %3381 = vmatprep.subr.mxu0 0.0
      %3382 = vmatpush2.msra.mxu0 0.0
      %3383 = vmatprep.subr.mxu0 0.0
      %3384 = vmatpush2.msra.mxu0 0.0
      %3385 = vmatprep.subr.mxu0 0.0
      %3386 = vmatpush2.msra.mxu0 0.0
      %3387 = vmatprep.subr.mxu0 0.0
      %3388 = vmatpush2.msra.mxu0 0.0
      %3389 = vmatprep.subr.mxu0 0.0
      %3390 = vmatpush2.msra.mxu0 0.0
      %3391 = vmatprep.subr.mxu0 0.0
      %3392 = vmatpush2.msra.mxu0 0.0
      %3393 = vmatprep.subr.mxu0 0.0
      %3394 = vmatpush2.msra.mxu0 0.0
      %3395 = vmatprep.subr.mxu0 0.0
      %3396 = vmatpush2.msra.mxu0 0.0
      %3397 = vmatprep.subr.mxu0 0.0
      %3398 = vmatpush2.msra.mxu0 0.0
      %3399 = vmatprep.subr.mxu0 0.0
      %3400 = vmatpush2.msra.mxu0 0.0
      %3401 = vmatprep.subr.mxu0 0.0
      %3402 = vmatpush2.msra.mxu0 0.0
      %3403 = vmatprep.mubr.f32.mxu0 0.0
      %3404 = vmatmul.mubr.f32.gmra.mxu0 %v3337
      %v3405 = vpop.f32.mrf.mxu0
      %v3406 = vadd.f32 0.0, %v3405
      %v3407 = vpop.f32.mrf.mxu0
      %3408 = vdwg.mxu0
      %v3409 = vadd.f32 %v3333, %v3406
      %v3410 = vxor.u32 %v3409, 2147483648
      %v3411 = vmul.f32 %v3410, 1.442695
      %v3412 = vpow.pop %v3411
      %v3413 = vadd.f32 %v3412, 1.0
      %v3414 = vrcp.pop %v3413
      %v3415 = vmul.f32 1.0, %v3414
      %v3416 = vtanh.pop %v3409
      %v3417 = vld [vmem:[#allocation4] sm:$0x1]
      %v3419 = vlaneseq
      %v3420 = vshrl.u32 %v3419, 7
      %v3421 = vsub.s32 0, %v3420
      %v3422 = vrot.slane %v3417, %v3421
      %3423 = vrot.lane.b32.xlu0 %v3422, 32
      %v3424 = vpop.permute.xlu0 %3423
      %v3426 = vmul.f32 %v3415, %v3424
      %3428 = vrot.lane.b32.xlu0 %v3416, 64
      %v3429 = vpop.permute.xlu0 %3428
      %v3431 = vmul.f32 %v3415, %v3429
      %3433 = vrot.lane.b32.xlu0 %v3431, 32
      %v3434 = vpop.permute.xlu0 %3433
      %v3436 = vadd.f32 %v3426, %v3434
      %v3437 = vtanh.pop %v3436
      %3439 = vrot.lane.b32.xlu0 %v3437, 64
      %v3440 = vpop.permute.xlu0 %3439
      %v3442 = vmul.f32 %v3415, %v3440
      %3444 = vrot.lane.b32.xlu0 %v3442, 32
      %v3445 = vpop.permute.xlu0 %3444
      %3447 = vst.msk [vmem:[#allocation3] sm:$0x1] %vm225, %v3445
      %3449 = vrot.lane.b32.xlu0 %v3436, 96
      %v3450 = vpop.permute.xlu0 %3449
      %3452 = vst.msk [vmem:[#allocation4] sm:$0x1] %vm225, %v3450
    $region141: #{fn.1} parent=1 // pred_fallthru
      _
    %p3453 = scmp.gt.s32.totalorder %s43, 26
    // Predicated region
    $region142: #{fn.1} parent=1 // pred_check
      %p3454 = pneg %p3453
    $region143: #{fn.1} parent=1 // pred_check_branch
      %3456 = sbr.rel (%p3454) target = $region145
    $region144: #{fn.1} parent=1 // pred_region
      %v3457 = vld [vmem:[#allocation2 + $0x1a] sm:$0x1]
      %v3458 = vld [vmem:[#allocation3] sm:$0x1]
      %vm3459 = vcmask 261120
      %v3461 = vsel %vm3459, %v3458, 0
      %3463 = vmatprep.subr.mxu0 0.0
      %3464 = vmatpush1.msra.mxu0 0.0
      %3465 = vmatprep.subr.mxu0 0.0
      %3466 = vmatpush1.msra.mxu0 0.0
      %3467 = vmatprep.subr.mxu0 0.0
      %3468 = vmatpush1.msra.mxu0 0.0
      %3469 = vmatprep.subr.mxu0 0.0
      %3470 = vmatpush1.msra.mxu0 0.0
      %3471 = vmatprep.subr.mxu0 0.0
      %3472 = vmatpush1.msra.mxu0 0.0
      %3473 = vmatprep.subr.mxu0 0.0
      %3474 = vmatpush1.msra.mxu0 0.0
      %3475 = vmatprep.subr.mxu0 0.0
      %3476 = vmatpush1.msra.mxu0 0.0
      %3477 = vmatprep.subr.mxu0 0.0
      %3478 = vmatpush1.msra.mxu0 0.0
      %3479 = vmatprep.subr.mxu0 0.0
      %3480 = vmatpush1.msra.mxu0 0.0
      %3481 = vmatprep.subr.mxu0 0.0
      %3482 = vmatpush1.msra.mxu0 0.0
      %3483 = vmatprep.subr.mxu0 0.0
      %3484 = vmatpush1.msra.mxu0 0.0
      %3485 = vmatprep.subr.mxu0 0.0
      %3486 = vmatpush1.msra.mxu0 0.0
      %3487 = vmatprep.subr.mxu0 0.0
      %3488 = vmatpush1.msra.mxu0 %v223
      %3489 = vmatprep.subr.mxu0 0.0
      %3490 = vmatpush1.msra.mxu0 %v222
      %3491 = vmatprep.subr.mxu0 0.0
      %3492 = vmatpush1.msra.mxu0 %v221
      %3493 = vmatprep.subr.mxu0 0.0
      %3494 = vmatpush1.msra.mxu0 %v220
      %3495 = vmatprep.subr.mxu0 0.0
      %3496 = vmatpush2.msra.mxu0 0.0
      %3497 = vmatprep.subr.mxu0 0.0
      %3498 = vmatpush2.msra.mxu0 0.0
      %3499 = vmatprep.subr.mxu0 0.0
      %3500 = vmatpush2.msra.mxu0 0.0
      %3501 = vmatprep.subr.mxu0 0.0
      %3502 = vmatpush2.msra.mxu0 0.0
      %3503 = vmatprep.subr.mxu0 0.0
      %3504 = vmatpush2.msra.mxu0 0.0
      %3505 = vmatprep.subr.mxu0 0.0
      %3506 = vmatpush2.msra.mxu0 0.0
      %3507 = vmatprep.subr.mxu0 0.0
      %3508 = vmatpush2.msra.mxu0 0.0
      %3509 = vmatprep.subr.mxu0 0.0
      %3510 = vmatpush2.msra.mxu0 0.0
      %3511 = vmatprep.subr.mxu0 0.0
      %3512 = vmatpush2.msra.mxu0 0.0
      %3513 = vmatprep.subr.mxu0 0.0
      %3514 = vmatpush2.msra.mxu0 0.0
      %3515 = vmatprep.subr.mxu0 0.0
      %3516 = vmatpush2.msra.mxu0 0.0
      %3517 = vmatprep.subr.mxu0 0.0
      %3518 = vmatpush2.msra.mxu0 0.0
      %3519 = vmatprep.subr.mxu0 0.0
      %3520 = vmatpush2.msra.mxu0 0.0
      %3521 = vmatprep.subr.mxu0 0.0
      %3522 = vmatpush2.msra.mxu0 0.0
      %3523 = vmatprep.subr.mxu0 0.0
      %3524 = vmatpush2.msra.mxu0 0.0
      %3525 = vmatprep.subr.mxu0 0.0
      %3526 = vmatpush2.msra.mxu0 0.0
      %3527 = vmatprep.mubr.f32.mxu0 0.0
      %3528 = vmatmul.mubr.f32.gmra.mxu0 %v3461
      %v3529 = vpop.f32.mrf.mxu0
      %v3530 = vadd.f32 0.0, %v3529
      %v3531 = vpop.f32.mrf.mxu0
      %3532 = vdwg.mxu0
      %v3533 = vadd.f32 %v3457, %v3530
      %v3534 = vxor.u32 %v3533, 2147483648
      %v3535 = vmul.f32 %v3534, 1.442695
      %v3536 = vpow.pop %v3535
      %v3537 = vadd.f32 %v3536, 1.0
      %v3538 = vrcp.pop %v3537
      %v3539 = vmul.f32 1.0, %v3538
      %v3540 = vtanh.pop %v3533
      %v3541 = vld [vmem:[#allocation4] sm:$0x1]
      %v3543 = vlaneseq
      %v3544 = vshrl.u32 %v3543, 7
      %v3545 = vsub.s32 0, %v3544
      %v3546 = vrot.slane %v3541, %v3545
      %3547 = vrot.lane.b32.xlu0 %v3546, 32
      %v3548 = vpop.permute.xlu0 %3547
      %v3550 = vmul.f32 %v3539, %v3548
      %3552 = vrot.lane.b32.xlu0 %v3540, 64
      %v3553 = vpop.permute.xlu0 %3552
      %v3555 = vmul.f32 %v3539, %v3553
      %3557 = vrot.lane.b32.xlu0 %v3555, 32
      %v3558 = vpop.permute.xlu0 %3557
      %v3560 = vadd.f32 %v3550, %v3558
      %v3561 = vtanh.pop %v3560
      %3563 = vrot.lane.b32.xlu0 %v3561, 64
      %v3564 = vpop.permute.xlu0 %3563
      %v3566 = vmul.f32 %v3539, %v3564
      %3568 = vrot.lane.b32.xlu0 %v3566, 32
      %v3569 = vpop.permute.xlu0 %3568
      %3571 = vst.msk [vmem:[#allocation3] sm:$0x1] %vm225, %v3569
      %3573 = vrot.lane.b32.xlu0 %v3560, 96
      %v3574 = vpop.permute.xlu0 %3573
      %3576 = vst.msk [vmem:[#allocation4] sm:$0x1] %vm225, %v3574
    $region145: #{fn.1} parent=1 // pred_fallthru
      _
    %p3577 = scmp.gt.s32.totalorder %s43, 27
    // Predicated region
    $region146: #{fn.1} parent=1 // pred_check
      %p3578 = pneg %p3577
    $region147: #{fn.1} parent=1 // pred_check_branch
      %3580 = sbr.rel (%p3578) target = $region149
    $region148: #{fn.1} parent=1 // pred_region
      %v3581 = vld [vmem:[#allocation2 + $0x1b] sm:$0x1]
      %v3582 = vld [vmem:[#allocation3] sm:$0x1]
      %vm3583 = vcmask 261120
      %v3585 = vsel %vm3583, %v3582, 0
      %3587 = vmatprep.subr.mxu0 0.0
      %3588 = vmatpush1.msra.mxu0 0.0
      %3589 = vmatprep.subr.mxu0 0.0
      %3590 = vmatpush1.msra.mxu0 0.0
      %3591 = vmatprep.subr.mxu0 0.0
      %3592 = vmatpush1.msra.mxu0 0.0
      %3593 = vmatprep.subr.mxu0 0.0
      %3594 = vmatpush1.msra.mxu0 0.0
      %3595 = vmatprep.subr.mxu0 0.0
      %3596 = vmatpush1.msra.mxu0 0.0
      %3597 = vmatprep.subr.mxu0 0.0
      %3598 = vmatpush1.msra.mxu0 0.0
      %3599 = vmatprep.subr.mxu0 0.0
      %3600 = vmatpush1.msra.mxu0 0.0
      %3601 = vmatprep.subr.mxu0 0.0
      %3602 = vmatpush1.msra.mxu0 0.0
      %3603 = vmatprep.subr.mxu0 0.0
      %3604 = vmatpush1.msra.mxu0 0.0
      %3605 = vmatprep.subr.mxu0 0.0
      %3606 = vmatpush1.msra.mxu0 0.0
      %3607 = vmatprep.subr.mxu0 0.0
      %3608 = vmatpush1.msra.mxu0 0.0
      %3609 = vmatprep.subr.mxu0 0.0
      %3610 = vmatpush1.msra.mxu0 0.0
      %3611 = vmatprep.subr.mxu0 0.0
      %3612 = vmatpush1.msra.mxu0 %v223
      %3613 = vmatprep.subr.mxu0 0.0
      %3614 = vmatpush1.msra.mxu0 %v222
      %3615 = vmatprep.subr.mxu0 0.0
      %3616 = vmatpush1.msra.mxu0 %v221
      %3617 = vmatprep.subr.mxu0 0.0
      %3618 = vmatpush1.msra.mxu0 %v220
      %3619 = vmatprep.subr.mxu0 0.0
      %3620 = vmatpush2.msra.mxu0 0.0
      %3621 = vmatprep.subr.mxu0 0.0
      %3622 = vmatpush2.msra.mxu0 0.0
      %3623 = vmatprep.subr.mxu0 0.0
      %3624 = vmatpush2.msra.mxu0 0.0
      %3625 = vmatprep.subr.mxu0 0.0
      %3626 = vmatpush2.msra.mxu0 0.0
      %3627 = vmatprep.subr.mxu0 0.0
      %3628 = vmatpush2.msra.mxu0 0.0
      %3629 = vmatprep.subr.mxu0 0.0
      %3630 = vmatpush2.msra.mxu0 0.0
      %3631 = vmatprep.subr.mxu0 0.0
      %3632 = vmatpush2.msra.mxu0 0.0
      %3633 = vmatprep.subr.mxu0 0.0
      %3634 = vmatpush2.msra.mxu0 0.0
      %3635 = vmatprep.subr.mxu0 0.0
      %3636 = vmatpush2.msra.mxu0 0.0
      %3637 = vmatprep.subr.mxu0 0.0
      %3638 = vmatpush2.msra.mxu0 0.0
      %3639 = vmatprep.subr.mxu0 0.0
      %3640 = vmatpush2.msra.mxu0 0.0
      %3641 = vmatprep.subr.mxu0 0.0
      %3642 = vmatpush2.msra.mxu0 0.0
      %3643 = vmatprep.subr.mxu0 0.0
      %3644 = vmatpush2.msra.mxu0 0.0
      %3645 = vmatprep.subr.mxu0 0.0
      %3646 = vmatpush2.msra.mxu0 0.0
      %3647 = vmatprep.subr.mxu0 0.0
      %3648 = vmatpush2.msra.mxu0 0.0
      %3649 = vmatprep.subr.mxu0 0.0
      %3650 = vmatpush2.msra.mxu0 0.0
      %3651 = vmatprep.mubr.f32.mxu0 0.0
      %3652 = vmatmul.mubr.f32.gmra.mxu0 %v3585
      %v3653 = vpop.f32.mrf.mxu0
      %v3654 = vadd.f32 0.0, %v3653
      %v3655 = vpop.f32.mrf.mxu0
      %3656 = vdwg.mxu0
      %v3657 = vadd.f32 %v3581, %v3654
      %v3658 = vxor.u32 %v3657, 2147483648
      %v3659 = vmul.f32 %v3658, 1.442695
      %v3660 = vpow.pop %v3659
      %v3661 = vadd.f32 %v3660, 1.0
      %v3662 = vrcp.pop %v3661
      %v3663 = vmul.f32 1.0, %v3662
      %v3664 = vtanh.pop %v3657
      %v3665 = vld [vmem:[#allocation4] sm:$0x1]
      %v3667 = vlaneseq
      %v3668 = vshrl.u32 %v3667, 7
      %v3669 = vsub.s32 0, %v3668
      %v3670 = vrot.slane %v3665, %v3669
      %3671 = vrot.lane.b32.xlu0 %v3670, 32
      %v3672 = vpop.permute.xlu0 %3671
      %v3674 = vmul.f32 %v3663, %v3672
      %3676 = vrot.lane.b32.xlu0 %v3664, 64
      %v3677 = vpop.permute.xlu0 %3676
      %v3679 = vmul.f32 %v3663, %v3677
      %3681 = vrot.lane.b32.xlu0 %v3679, 32
      %v3682 = vpop.permute.xlu0 %3681
      %v3684 = vadd.f32 %v3674, %v3682
      %v3685 = vtanh.pop %v3684
      %3687 = vrot.lane.b32.xlu0 %v3685, 64
      %v3688 = vpop.permute.xlu0 %3687
      %v3690 = vmul.f32 %v3663, %v3688
      %3692 = vrot.lane.b32.xlu0 %v3690, 32
      %v3693 = vpop.permute.xlu0 %3692
      %3695 = vst.msk [vmem:[#allocation3] sm:$0x1] %vm225, %v3693
      %3697 = vrot.lane.b32.xlu0 %v3684, 96
      %v3698 = vpop.permute.xlu0 %3697
      %3700 = vst.msk [vmem:[#allocation4] sm:$0x1] %vm225, %v3698
    $region149: #{fn.1} parent=1 // pred_fallthru
      _
    %p3701 = scmp.gt.s32.totalorder %s43, 28
    // Predicated region
    $region150: #{fn.1} parent=1 // pred_check
      %p3702 = pneg %p3701
    $region151: #{fn.1} parent=1 // pred_check_branch
      %3704 = sbr.rel (%p3702) target = $region153
    $region152: #{fn.1} parent=1 // pred_region
      %v3705 = vld [vmem:[#allocation2 + $0x1c] sm:$0x1]
      %v3706 = vld [vmem:[#allocation3] sm:$0x1]
      %vm3707 = vcmask 261120
      %v3709 = vsel %vm3707, %v3706, 0
      %3711 = vmatprep.subr.mxu0 0.0
      %3712 = vmatpush1.msra.mxu0 0.0
      %3713 = vmatprep.subr.mxu0 0.0
      %3714 = vmatpush1.msra.mxu0 0.0
      %3715 = vmatprep.subr.mxu0 0.0
      %3716 = vmatpush1.msra.mxu0 0.0
      %3717 = vmatprep.subr.mxu0 0.0
      %3718 = vmatpush1.msra.mxu0 0.0
      %3719 = vmatprep.subr.mxu0 0.0
      %3720 = vmatpush1.msra.mxu0 0.0
      %3721 = vmatprep.subr.mxu0 0.0
      %3722 = vmatpush1.msra.mxu0 0.0
      %3723 = vmatprep.subr.mxu0 0.0
      %3724 = vmatpush1.msra.mxu0 0.0
      %3725 = vmatprep.subr.mxu0 0.0
      %3726 = vmatpush1.msra.mxu0 0.0
      %3727 = vmatprep.subr.mxu0 0.0
      %3728 = vmatpush1.msra.mxu0 0.0
      %3729 = vmatprep.subr.mxu0 0.0
      %3730 = vmatpush1.msra.mxu0 0.0
      %3731 = vmatprep.subr.mxu0 0.0
      %3732 = vmatpush1.msra.mxu0 0.0
      %3733 = vmatprep.subr.mxu0 0.0
      %3734 = vmatpush1.msra.mxu0 0.0
      %3735 = vmatprep.subr.mxu0 0.0
      %3736 = vmatpush1.msra.mxu0 %v223
      %3737 = vmatprep.subr.mxu0 0.0
      %3738 = vmatpush1.msra.mxu0 %v222
      %3739 = vmatprep.subr.mxu0 0.0
      %3740 = vmatpush1.msra.mxu0 %v221
      %3741 = vmatprep.subr.mxu0 0.0
      %3742 = vmatpush1.msra.mxu0 %v220
      %3743 = vmatprep.subr.mxu0 0.0
      %3744 = vmatpush2.msra.mxu0 0.0
      %3745 = vmatprep.subr.mxu0 0.0
      %3746 = vmatpush2.msra.mxu0 0.0
      %3747 = vmatprep.subr.mxu0 0.0
      %3748 = vmatpush2.msra.mxu0 0.0
      %3749 = vmatprep.subr.mxu0 0.0
      %3750 = vmatpush2.msra.mxu0 0.0
      %3751 = vmatprep.subr.mxu0 0.0
      %3752 = vmatpush2.msra.mxu0 0.0
      %3753 = vmatprep.subr.mxu0 0.0
      %3754 = vmatpush2.msra.mxu0 0.0
      %3755 = vmatprep.subr.mxu0 0.0
      %3756 = vmatpush2.msra.mxu0 0.0
      %3757 = vmatprep.subr.mxu0 0.0
      %3758 = vmatpush2.msra.mxu0 0.0
      %3759 = vmatprep.subr.mxu0 0.0
      %3760 = vmatpush2.msra.mxu0 0.0
      %3761 = vmatprep.subr.mxu0 0.0
      %3762 = vmatpush2.msra.mxu0 0.0
      %3763 = vmatprep.subr.mxu0 0.0
      %3764 = vmatpush2.msra.mxu0 0.0
      %3765 = vmatprep.subr.mxu0 0.0
      %3766 = vmatpush2.msra.mxu0 0.0
      %3767 = vmatprep.subr.mxu0 0.0
      %3768 = vmatpush2.msra.mxu0 0.0
      %3769 = vmatprep.subr.mxu0 0.0
      %3770 = vmatpush2.msra.mxu0 0.0
      %3771 = vmatprep.subr.mxu0 0.0
      %3772 = vmatpush2.msra.mxu0 0.0
      %3773 = vmatprep.subr.mxu0 0.0
      %3774 = vmatpush2.msra.mxu0 0.0
      %3775 = vmatprep.mubr.f32.mxu0 0.0
      %3776 = vmatmul.mubr.f32.gmra.mxu0 %v3709
      %v3777 = vpop.f32.mrf.mxu0
      %v3778 = vadd.f32 0.0, %v3777
      %v3779 = vpop.f32.mrf.mxu0
      %3780 = vdwg.mxu0
      %v3781 = vadd.f32 %v3705, %v3778
      %v3782 = vxor.u32 %v3781, 2147483648
      %v3783 = vmul.f32 %v3782, 1.442695
      %v3784 = vpow.pop %v3783
      %v3785 = vadd.f32 %v3784, 1.0
      %v3786 = vrcp.pop %v3785
      %v3787 = vmul.f32 1.0, %v3786
      %v3788 = vtanh.pop %v3781
      %v3789 = vld [vmem:[#allocation4] sm:$0x1]
      %v3791 = vlaneseq
      %v3792 = vshrl.u32 %v3791, 7
      %v3793 = vsub.s32 0, %v3792
      %v3794 = vrot.slane %v3789, %v3793
      %3795 = vrot.lane.b32.xlu0 %v3794, 32
      %v3796 = vpop.permute.xlu0 %3795
      %v3798 = vmul.f32 %v3787, %v3796
      %3800 = vrot.lane.b32.xlu0 %v3788, 64
      %v3801 = vpop.permute.xlu0 %3800
      %v3803 = vmul.f32 %v3787, %v3801
      %3805 = vrot.lane.b32.xlu0 %v3803, 32
      %v3806 = vpop.permute.xlu0 %3805
      %v3808 = vadd.f32 %v3798, %v3806
      %v3809 = vtanh.pop %v3808
      %3811 = vrot.lane.b32.xlu0 %v3809, 64
      %v3812 = vpop.permute.xlu0 %3811
      %v3814 = vmul.f32 %v3787, %v3812
      %3816 = vrot.lane.b32.xlu0 %v3814, 32
      %v3817 = vpop.permute.xlu0 %3816
      %3819 = vst.msk [vmem:[#allocation3] sm:$0x1] %vm225, %v3817
      %3821 = vrot.lane.b32.xlu0 %v3808, 96
      %v3822 = vpop.permute.xlu0 %3821
      %3824 = vst.msk [vmem:[#allocation4] sm:$0x1] %vm225, %v3822
    $region153: #{fn.1} parent=1 // pred_fallthru
      _
    %p3825 = scmp.gt.s32.totalorder %s43, 29
    // Predicated region
    $region154: #{fn.1} parent=1 // pred_check
      %p3826 = pneg %p3825
    $region155: #{fn.1} parent=1 // pred_check_branch
      %3828 = sbr.rel (%p3826) target = $region157
    $region156: #{fn.1} parent=1 // pred_region
      %v3829 = vld [vmem:[#allocation2 + $0x1d] sm:$0x1]
      %v3830 = vld [vmem:[#allocation3] sm:$0x1]
      %vm3831 = vcmask 261120
      %v3833 = vsel %vm3831, %v3830, 0
      %3835 = vmatprep.subr.mxu0 0.0
      %3836 = vmatpush1.msra.mxu0 0.0
      %3837 = vmatprep.subr.mxu0 0.0
      %3838 = vmatpush1.msra.mxu0 0.0
      %3839 = vmatprep.subr.mxu0 0.0
      %3840 = vmatpush1.msra.mxu0 0.0
      %3841 = vmatprep.subr.mxu0 0.0
      %3842 = vmatpush1.msra.mxu0 0.0
      %3843 = vmatprep.subr.mxu0 0.0
      %3844 = vmatpush1.msra.mxu0 0.0
      %3845 = vmatprep.subr.mxu0 0.0
      %3846 = vmatpush1.msra.mxu0 0.0
      %3847 = vmatprep.subr.mxu0 0.0
      %3848 = vmatpush1.msra.mxu0 0.0
      %3849 = vmatprep.subr.mxu0 0.0
      %3850 = vmatpush1.msra.mxu0 0.0
      %3851 = vmatprep.subr.mxu0 0.0
      %3852 = vmatpush1.msra.mxu0 0.0
      %3853 = vmatprep.subr.mxu0 0.0
      %3854 = vmatpush1.msra.mxu0 0.0
      %3855 = vmatprep.subr.mxu0 0.0
      %3856 = vmatpush1.msra.mxu0 0.0
      %3857 = vmatprep.subr.mxu0 0.0
      %3858 = vmatpush1.msra.mxu0 0.0
      %3859 = vmatprep.subr.mxu0 0.0
      %3860 = vmatpush1.msra.mxu0 %v223
      %3861 = vmatprep.subr.mxu0 0.0
      %3862 = vmatpush1.msra.mxu0 %v222
      %3863 = vmatprep.subr.mxu0 0.0
      %3864 = vmatpush1.msra.mxu0 %v221
      %3865 = vmatprep.subr.mxu0 0.0
      %3866 = vmatpush1.msra.mxu0 %v220
      %3867 = vmatprep.subr.mxu0 0.0
      %3868 = vmatpush2.msra.mxu0 0.0
      %3869 = vmatprep.subr.mxu0 0.0
      %3870 = vmatpush2.msra.mxu0 0.0
      %3871 = vmatprep.subr.mxu0 0.0
      %3872 = vmatpush2.msra.mxu0 0.0
      %3873 = vmatprep.subr.mxu0 0.0
      %3874 = vmatpush2.msra.mxu0 0.0
      %3875 = vmatprep.subr.mxu0 0.0
      %3876 = vmatpush2.msra.mxu0 0.0
      %3877 = vmatprep.subr.mxu0 0.0
      %3878 = vmatpush2.msra.mxu0 0.0
      %3879 = vmatprep.subr.mxu0 0.0
      %3880 = vmatpush2.msra.mxu0 0.0
      %3881 = vmatprep.subr.mxu0 0.0
      %3882 = vmatpush2.msra.mxu0 0.0
      %3883 = vmatprep.subr.mxu0 0.0
      %3884 = vmatpush2.msra.mxu0 0.0
      %3885 = vmatprep.subr.mxu0 0.0
      %3886 = vmatpush2.msra.mxu0 0.0
      %3887 = vmatprep.subr.mxu0 0.0
      %3888 = vmatpush2.msra.mxu0 0.0
      %3889 = vmatprep.subr.mxu0 0.0
      %3890 = vmatpush2.msra.mxu0 0.0
      %3891 = vmatprep.subr.mxu0 0.0
      %3892 = vmatpush2.msra.mxu0 0.0
      %3893 = vmatprep.subr.mxu0 0.0
      %3894 = vmatpush2.msra.mxu0 0.0
      %3895 = vmatprep.subr.mxu0 0.0
      %3896 = vmatpush2.msra.mxu0 0.0
      %3897 = vmatprep.subr.mxu0 0.0
      %3898 = vmatpush2.msra.mxu0 0.0
      %3899 = vmatprep.mubr.f32.mxu0 0.0
      %3900 = vmatmul.mubr.f32.gmra.mxu0 %v3833
      %v3901 = vpop.f32.mrf.mxu0
      %v3902 = vadd.f32 0.0, %v3901
      %v3903 = vpop.f32.mrf.mxu0
      %3904 = vdwg.mxu0
      %v3905 = vadd.f32 %v3829, %v3902
      %v3906 = vxor.u32 %v3905, 2147483648
      %v3907 = vmul.f32 %v3906, 1.442695
      %v3908 = vpow.pop %v3907
      %v3909 = vadd.f32 %v3908, 1.0
      %v3910 = vrcp.pop %v3909
      %v3911 = vmul.f32 1.0, %v3910
      %v3912 = vtanh.pop %v3905
      %v3913 = vld [vmem:[#allocation4] sm:$0x1]
      %v3915 = vlaneseq
      %v3916 = vshrl.u32 %v3915, 7
      %v3917 = vsub.s32 0, %v3916
      %v3918 = vrot.slane %v3913, %v3917
      %3919 = vrot.lane.b32.xlu0 %v3918, 32
      %v3920 = vpop.permute.xlu0 %3919
      %v3922 = vmul.f32 %v3911, %v3920
      %3924 = vrot.lane.b32.xlu0 %v3912, 64
      %v3925 = vpop.permute.xlu0 %3924
      %v3927 = vmul.f32 %v3911, %v3925
      %3929 = vrot.lane.b32.xlu0 %v3927, 32
      %v3930 = vpop.permute.xlu0 %3929
      %v3932 = vadd.f32 %v3922, %v3930
      %v3933 = vtanh.pop %v3932
      %3935 = vrot.lane.b32.xlu0 %v3933, 64
      %v3936 = vpop.permute.xlu0 %3935
      %v3938 = vmul.f32 %v3911, %v3936
      %3940 = vrot.lane.b32.xlu0 %v3938, 32
      %v3941 = vpop.permute.xlu0 %3940
      %3943 = vst.msk [vmem:[#allocation3] sm:$0x1] %vm225, %v3941
      %3945 = vrot.lane.b32.xlu0 %v3932, 96
      %v3946 = vpop.permute.xlu0 %3945
      %3948 = vst.msk [vmem:[#allocation4] sm:$0x1] %vm225, %v3946
    $region157: #{fn.1} parent=1 // pred_fallthru
      _
    %p3949 = scmp.gt.s32.totalorder %s43, 30
    // Predicated region
    $region158: #{fn.1} parent=1 // pred_check
      %p3950 = pneg %p3949
    $region159: #{fn.1} parent=1 // pred_check_branch
      %3952 = sbr.rel (%p3950) target = $region161
    $region160: #{fn.1} parent=1 // pred_region
      %v3953 = vld [vmem:[#allocation2 + $0x1e] sm:$0x1]
      %v3954 = vld [vmem:[#allocation3] sm:$0x1]
      %vm3955 = vcmask 261120
      %v3957 = vsel %vm3955, %v3954, 0
      %3959 = vmatprep.subr.mxu0 0.0
      %3960 = vmatpush1.msra.mxu0 0.0
      %3961 = vmatprep.subr.mxu0 0.0
      %3962 = vmatpush1.msra.mxu0 0.0
      %3963 = vmatprep.subr.mxu0 0.0
      %3964 = vmatpush1.msra.mxu0 0.0
      %3965 = vmatprep.subr.mxu0 0.0
      %3966 = vmatpush1.msra.mxu0 0.0
      %3967 = vmatprep.subr.mxu0 0.0
      %3968 = vmatpush1.msra.mxu0 0.0
      %3969 = vmatprep.subr.mxu0 0.0
      %3970 = vmatpush1.msra.mxu0 0.0
      %3971 = vmatprep.subr.mxu0 0.0
      %3972 = vmatpush1.msra.mxu0 0.0
      %3973 = vmatprep.subr.mxu0 0.0
      %3974 = vmatpush1.msra.mxu0 0.0
      %3975 = vmatprep.subr.mxu0 0.0
      %3976 = vmatpush1.msra.mxu0 0.0
      %3977 = vmatprep.subr.mxu0 0.0
      %3978 = vmatpush1.msra.mxu0 0.0
      %3979 = vmatprep.subr.mxu0 0.0
      %3980 = vmatpush1.msra.mxu0 0.0
      %3981 = vmatprep.subr.mxu0 0.0
      %3982 = vmatpush1.msra.mxu0 0.0
      %3983 = vmatprep.subr.mxu0 0.0
      %3984 = vmatpush1.msra.mxu0 %v223
      %3985 = vmatprep.subr.mxu0 0.0
      %3986 = vmatpush1.msra.mxu0 %v222
      %3987 = vmatprep.subr.mxu0 0.0
      %3988 = vmatpush1.msra.mxu0 %v221
      %3989 = vmatprep.subr.mxu0 0.0
      %3990 = vmatpush1.msra.mxu0 %v220
      %3991 = vmatprep.subr.mxu0 0.0
      %3992 = vmatpush2.msra.mxu0 0.0
      %3993 = vmatprep.subr.mxu0 0.0
      %3994 = vmatpush2.msra.mxu0 0.0
      %3995 = vmatprep.subr.mxu0 0.0
      %3996 = vmatpush2.msra.mxu0 0.0
      %3997 = vmatprep.subr.mxu0 0.0
      %3998 = vmatpush2.msra.mxu0 0.0
      %3999 = vmatprep.subr.mxu0 0.0
      %4000 = vmatpush2.msra.mxu0 0.0
      %4001 = vmatprep.subr.mxu0 0.0
      %4002 = vmatpush2.msra.mxu0 0.0
      %4003 = vmatprep.subr.mxu0 0.0
      %4004 = vmatpush2.msra.mxu0 0.0
      %4005 = vmatprep.subr.mxu0 0.0
      %4006 = vmatpush2.msra.mxu0 0.0
      %4007 = vmatprep.subr.mxu0 0.0
      %4008 = vmatpush2.msra.mxu0 0.0
      %4009 = vmatprep.subr.mxu0 0.0
      %4010 = vmatpush2.msra.mxu0 0.0
      %4011 = vmatprep.subr.mxu0 0.0
      %4012 = vmatpush2.msra.mxu0 0.0
      %4013 = vmatprep.subr.mxu0 0.0
      %4014 = vmatpush2.msra.mxu0 0.0
      %4015 = vmatprep.subr.mxu0 0.0
      %4016 = vmatpush2.msra.mxu0 0.0
      %4017 = vmatprep.subr.mxu0 0.0
      %4018 = vmatpush2.msra.mxu0 0.0
      %4019 = vmatprep.subr.mxu0 0.0
      %4020 = vmatpush2.msra.mxu0 0.0
      %4021 = vmatprep.subr.mxu0 0.0
      %4022 = vmatpush2.msra.mxu0 0.0
      %4023 = vmatprep.mubr.f32.mxu0 0.0
      %4024 = vmatmul.mubr.f32.gmra.mxu0 %v3957
      %v4025 = vpop.f32.mrf.mxu0
      %v4026 = vadd.f32 0.0, %v4025
      %v4027 = vpop.f32.mrf.mxu0
      %4028 = vdwg.mxu0
      %v4029 = vadd.f32 %v3953, %v4026
      %v4030 = vxor.u32 %v4029, 2147483648
      %v4031 = vmul.f32 %v4030, 1.442695
      %v4032 = vpow.pop %v4031
      %v4033 = vadd.f32 %v4032, 1.0
      %v4034 = vrcp.pop %v4033
      %v4035 = vmul.f32 1.0, %v4034
      %v4036 = vtanh.pop %v4029
      %v4037 = vld [vmem:[#allocation4] sm:$0x1]
      %v4039 = vlaneseq
      %v4040 = vshrl.u32 %v4039, 7
      %v4041 = vsub.s32 0, %v4040
      %v4042 = vrot.slane %v4037, %v4041
      %4043 = vrot.lane.b32.xlu0 %v4042, 32
      %v4044 = vpop.permute.xlu0 %4043
      %v4046 = vmul.f32 %v4035, %v4044
      %4048 = vrot.lane.b32.xlu0 %v4036, 64
      %v4049 = vpop.permute.xlu0 %4048
      %v4051 = vmul.f32 %v4035, %v4049
      %4053 = vrot.lane.b32.xlu0 %v4051, 32
      %v4054 = vpop.permute.xlu0 %4053
      %v4056 = vadd.f32 %v4046, %v4054
      %v4057 = vtanh.pop %v4056
      %4059 = vrot.lane.b32.xlu0 %v4057, 64
      %v4060 = vpop.permute.xlu0 %4059
      %v4062 = vmul.f32 %v4035, %v4060
      %4064 = vrot.lane.b32.xlu0 %v4062, 32
      %v4065 = vpop.permute.xlu0 %4064
      %4067 = vst.msk [vmem:[#allocation3] sm:$0x1] %vm225, %v4065
      %4069 = vrot.lane.b32.xlu0 %v4056, 96
      %v4070 = vpop.permute.xlu0 %4069
      %4072 = vst.msk [vmem:[#allocation4] sm:$0x1] %vm225, %v4070
    $region161: #{fn.1} parent=1 // pred_fallthru
      _
    %p4073 = scmp.gt.s32.totalorder %s43, 31
    // Predicated region
    $region162: #{fn.1} parent=1 // pred_check
      %p4074 = pneg %p4073
    $region163: #{fn.1} parent=1 // pred_check_branch
      %4076 = sbr.rel (%p4074) target = $region165
    $region164: #{fn.1} parent=1 // pred_region
      %v4077 = vld [vmem:[#allocation2 + $0x1f] sm:$0x1]
      %v4078 = vld [vmem:[#allocation3] sm:$0x1]
      %vm4079 = vcmask 261120
      %v4081 = vsel %vm4079, %v4078, 0
      %4083 = vmatprep.subr.mxu0 0.0
      %4084 = vmatpush1.msra.mxu0 0.0
      %4085 = vmatprep.subr.mxu0 0.0
      %4086 = vmatpush1.msra.mxu0 0.0
      %4087 = vmatprep.subr.mxu0 0.0
      %4088 = vmatpush1.msra.mxu0 0.0
      %4089 = vmatprep.subr.mxu0 0.0
      %4090 = vmatpush1.msra.mxu0 0.0
      %4091 = vmatprep.subr.mxu0 0.0
      %4092 = vmatpush1.msra.mxu0 0.0
      %4093 = vmatprep.subr.mxu0 0.0
      %4094 = vmatpush1.msra.mxu0 0.0
      %4095 = vmatprep.subr.mxu0 0.0
      %4096 = vmatpush1.msra.mxu0 0.0
      %4097 = vmatprep.subr.mxu0 0.0
      %4098 = vmatpush1.msra.mxu0 0.0
      %4099 = vmatprep.subr.mxu0 0.0
      %4100 = vmatpush1.msra.mxu0 0.0
      %4101 = vmatprep.subr.mxu0 0.0
      %4102 = vmatpush1.msra.mxu0 0.0
      %4103 = vmatprep.subr.mxu0 0.0
      %4104 = vmatpush1.msra.mxu0 0.0
      %4105 = vmatprep.subr.mxu0 0.0
      %4106 = vmatpush1.msra.mxu0 0.0
      %4107 = vmatprep.subr.mxu0 0.0
      %4108 = vmatpush1.msra.mxu0 %v223
      %4109 = vmatprep.subr.mxu0 0.0
      %4110 = vmatpush1.msra.mxu0 %v222
      %4111 = vmatprep.subr.mxu0 0.0
      %4112 = vmatpush1.msra.mxu0 %v221
      %4113 = vmatprep.subr.mxu0 0.0
      %4114 = vmatpush1.msra.mxu0 %v220
      %4115 = vmatprep.subr.mxu0 0.0
      %4116 = vmatpush2.msra.mxu0 0.0
      %4117 = vmatprep.subr.mxu0 0.0
      %4118 = vmatpush2.msra.mxu0 0.0
      %4119 = vmatprep.subr.mxu0 0.0
      %4120 = vmatpush2.msra.mxu0 0.0
      %4121 = vmatprep.subr.mxu0 0.0
      %4122 = vmatpush2.msra.mxu0 0.0
      %4123 = vmatprep.subr.mxu0 0.0
      %4124 = vmatpush2.msra.mxu0 0.0
      %4125 = vmatprep.subr.mxu0 0.0
      %4126 = vmatpush2.msra.mxu0 0.0
      %4127 = vmatprep.subr.mxu0 0.0
      %4128 = vmatpush2.msra.mxu0 0.0
      %4129 = vmatprep.subr.mxu0 0.0
      %4130 = vmatpush2.msra.mxu0 0.0
      %4131 = vmatprep.subr.mxu0 0.0
      %4132 = vmatpush2.msra.mxu0 0.0
      %4133 = vmatprep.subr.mxu0 0.0
      %4134 = vmatpush2.msra.mxu0 0.0
      %4135 = vmatprep.subr.mxu0 0.0
      %4136 = vmatpush2.msra.mxu0 0.0
      %4137 = vmatprep.subr.mxu0 0.0
      %4138 = vmatpush2.msra.mxu0 0.0
      %4139 = vmatprep.subr.mxu0 0.0
      %4140 = vmatpush2.msra.mxu0 0.0
      %4141 = vmatprep.subr.mxu0 0.0
      %4142 = vmatpush2.msra.mxu0 0.0
      %4143 = vmatprep.subr.mxu0 0.0
      %4144 = vmatpush2.msra.mxu0 0.0
      %4145 = vmatprep.subr.mxu0 0.0
      %4146 = vmatpush2.msra.mxu0 0.0
      %4147 = vmatprep.mubr.f32.mxu0 0.0
      %4148 = vmatmul.mubr.f32.gmra.mxu0 %v4081
      %v4149 = vpop.f32.mrf.mxu0
      %v4150 = vadd.f32 0.0, %v4149
      %v4151 = vpop.f32.mrf.mxu0
      %4152 = vdwg.mxu0
      %v4153 = vadd.f32 %v4077, %v4150
      %v4154 = vxor.u32 %v4153, 2147483648
      %v4155 = vmul.f32 %v4154, 1.442695
      %v4156 = vpow.pop %v4155
      %v4157 = vadd.f32 %v4156, 1.0
      %v4158 = vrcp.pop %v4157
      %v4159 = vmul.f32 1.0, %v4158
      %v4160 = vtanh.pop %v4153
      %v4161 = vld [vmem:[#allocation4] sm:$0x1]
      %v4163 = vlaneseq
      %v4164 = vshrl.u32 %v4163, 7
      %v4165 = vsub.s32 0, %v4164
      %v4166 = vrot.slane %v4161, %v4165
      %4167 = vrot.lane.b32.xlu0 %v4166, 32
      %v4168 = vpop.permute.xlu0 %4167
      %v4170 = vmul.f32 %v4159, %v4168
      %4172 = vrot.lane.b32.xlu0 %v4160, 64
      %v4173 = vpop.permute.xlu0 %4172
      %v4175 = vmul.f32 %v4159, %v4173
      %4177 = vrot.lane.b32.xlu0 %v4175, 32
      %v4178 = vpop.permute.xlu0 %4177
      %v4180 = vadd.f32 %v4170, %v4178
      %v4181 = vtanh.pop %v4180
      %4183 = vrot.lane.b32.xlu0 %v4181, 64
      %v4184 = vpop.permute.xlu0 %4183
      %v4186 = vmul.f32 %v4159, %v4184
      %4188 = vrot.lane.b32.xlu0 %v4186, 32
      %v4189 = vpop.permute.xlu0 %4188
      %4191 = vst.msk [vmem:[#allocation3] sm:$0x1] %vm225, %v4189
      %4193 = vrot.lane.b32.xlu0 %v4180, 96
      %v4194 = vpop.permute.xlu0 %4193
      %4196 = vst.msk [vmem:[#allocation4] sm:$0x1] %vm225, %v4194
    $region165: #{fn.1} parent=1 // pred_fallthru
      _
    %v4197 = vld [vmem:[#allocation3] sm:$0x1]
    %4198 = vst.msk [vmem:[#allocation8] sm:$0x1] %vm225, %v4197
    // Predicated region
    $region166: #{fn.1} parent=1 // pred_check
      _
    $region167: #{fn.1} parent=1 // pred_check_branch
      %4200 = sbr.rel (0) target = $region169
    $region168: #{fn.1} parent=1 // pred_region
      %s4202 = ssub.s32 16, 16
      %4203 = vsyncadd [#allocation6], %s4202
      %s4205 = sshll.u32 [#allocation8], 4
      %s4206 = int_to_ptr.vmem [resolvable:$true] %s4205
      %4208 = dma.vmem_to_hbm [thread:$0]  %s4206, 16, %s8, [#allocation6]
    $region169: #{fn.1} parent=1 // pred_fallthru
      _
    // Predicated region
    $region170: #{fn.1} parent=1 // pred_check
      _
    $region171: #{fn.1} parent=1 // pred_check_branch
      %4210 = sbr.rel (0) target = $region173
    $region172: #{fn.1} parent=1 // pred_region
      %4211 = dma.done [#allocation6], 16
    $region173: #{fn.1} parent=1 // pred_fallthru
      _
    %4212 = vsyncpa [#allocation6], 1
    %4213 = vsyncpa [#allocation7], 1

</llo_original>
